<compile_context>
chip_gen: v6e
topology: v6e:2x2x1
jax: 0.10.0
libtpu: 0.0.40
codegen_flags: <defaults>
</compile_context>

<pallas_src>
import functools

import jax
import jax.numpy as jnp
from jax.experimental import pallas as pl
from jax.experimental.pallas import tpu as pltpu


# ---------------------------------------------------------------------------
# tile-size helper: largest multiple of `align` that divides `dim` and is
# <= target; falls back to the full dim (always legal for BlockSpec).
# ---------------------------------------------------------------------------
def _pick_tile(dim, target, align):
    if dim <= target:
        return dim
    t = (target // align) * align
    while t >= align:
        if dim % t == 0:
            return t
        t -= align
    return dim


# ---------------------------------------------------------------------------
# Tiled matmul + bias (+ optional activation, + optional fused residual add)
# ---------------------------------------------------------------------------
def _matmul_kernel(x_ref, w_ref, b_ref, *rest, activation, has_residual):
    if has_residual:
        r_ref, o_ref, acc_ref = rest
    else:
        o_ref, acc_ref = rest

    @pl.when(pl.program_id(2) == 0)
    def _():
        acc_ref[...] = jnp.zeros_like(acc_ref)

    acc_ref[...] += jnp.dot(x_ref[...], w_ref[...],
                            preferred_element_type=jnp.float32)

    @pl.when(pl.program_id(2) == pl.num_programs(2) - 1)
    def _():
        y = acc_ref[...] + b_ref[...]          # bias only once, in finalize
        if activation == "relu":
            y = jnp.maximum(y, 0.0)
        elif activation == "gelu":
            y = jax.nn.gelu(y, approximate=True)
        if has_residual:
            y = y + r_ref[...]
        o_ref[...] = y.astype(o_ref.dtype)


def pallas_linear(x, w, b, activation=None, residual=None,
                  out_dtype=jnp.float32, tm=256, tn=256, tk=512):
    """y = act(x @ w + b) [+ residual]; matmul in bf16, accumulate in f32."""
    M, K = x.shape
    _, N = w.shape
    tm = _pick_tile(M, tm, 16)
    tn = _pick_tile(N, tn, 128)
    tk = _pick_tile(K, tk, 128)

    x_bf = x.astype(jnp.bfloat16)
    w_bf = w.astype(jnp.bfloat16)
    b2 = b.reshape(1, N).astype(jnp.float32)

    in_specs = [
        pl.BlockSpec((tm, tk), lambda i, j, k: (i, k)),
        pl.BlockSpec((tk, tn), lambda i, j, k: (k, j)),
        pl.BlockSpec((1, tn), lambda i, j, k: (0, j)),
    ]
    args = [x_bf, w_bf, b2]
    if residual is not None:
        in_specs.append(pl.BlockSpec((tm, tn), lambda i, j, k: (i, j)))
        args.append(residual)

    return pl.pallas_call(
        functools.partial(_matmul_kernel, activation=activation,
                          has_residual=residual is not None),
        out_shape=jax.ShapeDtypeStruct((M, N), out_dtype),
        grid=(M // tm, N // tn, K // tk),
        in_specs=in_specs,
        out_specs=pl.BlockSpec((tm, tn), lambda i, j, k: (i, j)),
        scratch_shapes=[pltpu.VMEM((tm, tn), jnp.float32)],
        compiler_params=pltpu.CompilerParams(
            dimension_semantics=("parallel", "parallel", "arbitrary")),
    )(*args)


# ---------------------------------------------------------------------------
# Fused LayerNorm -> matmul (+bias).  Full K per block (LN needs the whole
# feature row); tiled over rows and output columns.   Used for LN1 + QKV.
# ---------------------------------------------------------------------------
def _ln_linear_kernel(x_ref, g_ref, bl_ref, w_ref, b_ref, o_ref, *, eps):
    x = x_ref[...].astype(jnp.float32)                       # (tm, K) f32
    mu = jnp.mean(x, axis=-1, keepdims=True)
    var = jnp.mean(jnp.square(x - mu), axis=-1, keepdims=True)
    h = (x - mu) * jax.lax.rsqrt(var + eps) * g_ref[...] + bl_ref[...]
    y = jnp.dot(h.astype(jnp.bfloat16), w_ref[...],
                preferred_element_type=jnp.float32) + b_ref[...]
    o_ref[...] = y.astype(o_ref.dtype)


def pallas_ln_linear(x, g, bl, w, b, out_dtype=jnp.bfloat16,
                     eps=1e-12, tm=256, tn=256):
    M, K = x.shape
    _, N = w.shape
    tm = _pick_tile(M, tm, 16)
    tn = _pick_tile(N, tn, 128)
    return pl.pallas_call(
        functools.partial(_ln_linear_kernel, eps=eps),
        out_shape=jax.ShapeDtypeStruct((M, N), out_dtype),
        grid=(M // tm, N // tn),
        in_specs=[
            pl.BlockSpec((tm, K), lambda i, j: (i, 0)),
            pl.BlockSpec((1, K), lambda i, j: (0, 0)),
            pl.BlockSpec((1, K), lambda i, j: (0, 0)),
            pl.BlockSpec((K, tn), lambda i, j: (0, j)),
            pl.BlockSpec((1, tn), lambda i, j: (0, j)),
        ],
        out_specs=pl.BlockSpec((tm, tn), lambda i, j: (i, j)),
        compiler_params=pltpu.CompilerParams(
            dimension_semantics=("parallel", "parallel")),
    )(x, g.reshape(1, K).astype(jnp.float32),
      bl.reshape(1, K).astype(jnp.float32),
      w.astype(jnp.bfloat16), b.reshape(1, N).astype(jnp.float32))


# ---------------------------------------------------------------------------
# Fused multi-head self-attention + output projection + residual add.
# One sequence per grid step, all heads inside the kernel (static lane
# slices of the concatenated [q|k|v] columns), softmax in f32, single
# lane-dense (T, D) store.  The attention output never round-trips HBM.
# ---------------------------------------------------------------------------
def _mhsa_proj_kernel(qkv_ref, wo_ref, bo_ref, res_ref, o_ref, *, heads, scale):
    qkv = qkv_ref[0]                               # (T, 3D) bf16
    D = qkv.shape[-1] // 3
    dh = D // heads
    outs = []
    for h in range(heads):
        q = qkv[:, h * dh:(h + 1) * dh]
        k = qkv[:, D + h * dh:D + (h + 1) * dh]
        v = qkv[:, 2 * D + h * dh:2 * D + (h + 1) * dh]
        s = jax.lax.dot_general(q, k, (((1,), (1,)), ((), ())),
                                preferred_element_type=jnp.float32) * scale
        m = jnp.max(s, axis=-1, keepdims=True)
        p = jnp.exp(s - m)
        denom = jnp.sum(p, axis=-1, keepdims=True)
        p = p * pl.reciprocal(denom, approx=True)
        outs.append(jnp.dot(p.astype(jnp.bfloat16), v,
                            preferred_element_type=jnp.float32))
    attn = jnp.concatenate(outs, axis=-1).astype(jnp.bfloat16)        # (T, D)
    y = jnp.dot(attn, wo_ref[...], preferred_element_type=jnp.float32)
    o_ref[0] = (y + bo_ref[...] + res_ref[0]).astype(o_ref.dtype)


def pallas_mhsa_proj(qkv, wo, bo, residual, heads, scale):
    """qkv: (BN, T, 3D) bf16, residual: (BN, T, D) f32 -> (BN, T, D) f32."""
    BN, T, D3 = qkv.shape
    D = D3 // 3
    return pl.pallas_call(
        functools.partial(_mhsa_proj_kernel, heads=heads, scale=scale),
        out_shape=jax.ShapeDtypeStruct((BN, T, D), jnp.float32),
        grid=(BN,),
        in_specs=[
            pl.BlockSpec((1, T, D3), lambda i: (i, 0, 0)),
            pl.BlockSpec((D, D), lambda i: (0, 0)),
            pl.BlockSpec((1, D), lambda i: (0, 0)),
            pl.BlockSpec((1, T, D), lambda i: (i, 0, 0)),
        ],
        out_specs=pl.BlockSpec((1, T, D), lambda i: (i, 0, 0)),
        compiler_params=pltpu.CompilerParams(dimension_semantics=("parallel",)),
    )(qkv, wo.astype(jnp.bfloat16), bo.reshape(1, D).astype(jnp.float32),
      residual)


# ---------------------------------------------------------------------------
# Fused LN2 + MLP-up (GELU) + MLP-down + residual add, tiled over rows.
# The (rows, mlp_dim) intermediate stays in VMEM/vregs.
# ---------------------------------------------------------------------------
def _ln_mlp_kernel(x_ref, g_ref, bl_ref, w1_ref, b1_ref, w2_ref, b2_ref,
                   o_ref, *, eps):
    x = x_ref[...].astype(jnp.float32)                       # (tm, D) f32
    mu = jnp.mean(x, axis=-1, keepdims=True)
    var = jnp.mean(jnp.square(x - mu), axis=-1, keepdims=True)
    h = (x - mu) * jax.lax.rsqrt(var + eps) * g_ref[...] + bl_ref[...]
    u = jnp.dot(h.astype(jnp.bfloat16), w1_ref[...],
                preferred_element_type=jnp.float32) + b1_ref[...]
    u = jax.nn.gelu(u, approximate=True)
    y = jnp.dot(u.astype(jnp.bfloat16), w2_ref[...],
                preferred_element_type=jnp.float32) + b2_ref[...]
    o_ref[...] = (y + x).astype(o_ref.dtype)


def pallas_ln_mlp(x, g, bl, w1, b1, w2, b2, eps=1e-12, tm=256):
    M, D = x.shape
    Hm = w1.shape[1]
    tm = _pick_tile(M, tm, 16)
    return pl.pallas_call(
        functools.partial(_ln_mlp_kernel, eps=eps),
        out_shape=jax.ShapeDtypeStruct((M, D), jnp.float32),
        grid=(M // tm,),
        in_specs=[
            pl.BlockSpec((tm, D), lambda i: (i, 0)),
            pl.BlockSpec((1, D), lambda i: (0, 0)),
            pl.BlockSpec((1, D), lambda i: (0, 0)),
            pl.BlockSpec((D, Hm), lambda i: (0, 0)),
            pl.BlockSpec((1, Hm), lambda i: (0, 0)),
            pl.BlockSpec((Hm, D), lambda i: (0, 0)),
            pl.BlockSpec((1, D), lambda i: (0, 0)),
        ],
        out_specs=pl.BlockSpec((tm, D), lambda i: (i, 0)),
        compiler_params=pltpu.CompilerParams(dimension_semantics=("parallel",)),
    )(x, g.reshape(1, D).astype(jnp.float32),
      bl.reshape(1, D).astype(jnp.float32),
      w1.astype(jnp.bfloat16), b1.reshape(1, Hm).astype(jnp.float32),
      w2.astype(jnp.bfloat16), b2.reshape(1, D).astype(jnp.float32))


# ---------------------------------------------------------------------------
# Fused final LayerNorm + token mean-pool, tiled over the BN axis.
# ---------------------------------------------------------------------------
def _lnf_meanpool_kernel(x_ref, g_ref, b_ref, o_ref, *, eps):
    x = x_ref[...]                                 # (tb, T, D) f32
    mu = jnp.mean(x, axis=-1, keepdims=True)
    var = jnp.mean(jnp.square(x - mu), axis=-1, keepdims=True)
    h = (x - mu) * jax.lax.rsqrt(var + eps) * g_ref[...] + b_ref[...]
    o_ref[...] = jnp.mean(h, axis=1)


def pallas_lnf_meanpool(x, g, b, eps=1e-12, tb=8):
    BN, T, D = x.shape
    tb = _pick_tile(BN, tb, 8)
    return pl.pallas_call(
        functools.partial(_lnf_meanpool_kernel, eps=eps),
        out_shape=jax.ShapeDtypeStruct((BN, D), jnp.float32),
        grid=(BN // tb,),
        in_specs=[
            pl.BlockSpec((tb, T, D), lambda i: (i, 0, 0)),
            pl.BlockSpec((1, 1, D), lambda i: (0, 0, 0)),
            pl.BlockSpec((1, 1, D), lambda i: (0, 0, 0)),
        ],
        out_specs=pl.BlockSpec((tb, D), lambda i: (i, 0)),
        compiler_params=pltpu.CompilerParams(dimension_semantics=("parallel",)),
    )(x, g.reshape(1, 1, D), b.reshape(1, 1, D))


# ---------------------------------------------------------------------------
# Camera-attention fusion:
#   weight    = einsum('bch,bch->bc', attention.expand(B,-1,-1), rep)
#   final_rep = einsum('bn,bnh->bnh', weight, rep).sum(1)
# ---------------------------------------------------------------------------
def _cam_fuse_kernel(rep_ref, att_ref, o_ref):
    rep = rep_ref[...]                             # (B, N, L)
    att = att_ref[...]                             # (N, L)
    w = jnp.sum(rep * att[None, :, :], axis=-1, keepdims=True)   # (B, N, 1)
    o_ref[...] = jnp.sum(w * rep, axis=1)          # (B, L)


def pallas_cam_fuse(rep, att):
    B, N, L = rep.shape
    return pl.pallas_call(
        _cam_fuse_kernel,
        out_shape=jax.ShapeDtypeStruct((B, L), jnp.float32),
        grid=(1,),
        in_specs=[
            pl.BlockSpec((B, N, L), lambda i: (0, 0, 0)),
            pl.BlockSpec((N, L), lambda i: (0, 0)),
        ],
        out_specs=pl.BlockSpec((B, L), lambda i: (0, 0)),
    )(rep, att)


# ---------------------------------------------------------------------------
# Tiny ViT forward (frozen feature extractor stand-in)
# ---------------------------------------------------------------------------
def tiny_vit_forward(p, x_nchw, cfg):
    BN, C, H, W = x_nchw.shape
    ps = cfg["patch"]
    gh, gw = H // ps, W // ps
    npatch = gh * gw
    D, heads = cfg["vit_dim"], cfg["heads"]
    dh = D // heads
    T = npatch + 1
    scale = 1.0 / (dh ** 0.5)

    # patchify (glue): NCHW -> (BN*np, C*p*p); row-major patch grid,
    # channel-first flattening inside each patch (conv-as-matmul layout).
    patches = x_nchw.reshape(BN, C, gh, ps, gw, ps)
    patches = patches.transpose(0, 2, 4, 1, 3, 5).reshape(BN * npatch, C * ps * ps)
    emb = pallas_linear(patches, p["patch_w"], p["patch_b"]).reshape(BN, npatch, D)

    cls = jnp.broadcast_to(p["cls"], (BN, 1, D))
    x = jnp.concatenate([cls, emb], axis=1) + p["pos"]          # (BN, T, D) f32

    for layer in p["layers"]:
        xf = x.reshape(BN * T, D)
        # fused LN1 + QKV projection (weight is [q|k|v] along output dim)
        qkv = pallas_ln_linear(xf, layer["ln1_g"], layer["ln1_b"],
                               layer["wqkv"], layer["bqkv"],
                               out_dtype=jnp.bfloat16)           # (BN*T, 3D)
        # fused MHSA + output projection + residual add
        x = pallas_mhsa_proj(qkv.reshape(BN, T, 3 * D),
                             layer["wo"], layer["bo"], x, heads, scale)
        # fused LN2 + MLP up (GELU) + MLP down + residual add
        x = pallas_ln_mlp(x.reshape(BN * T, D),
                          layer["ln2_g"], layer["ln2_b"],
                          layer["w1"], layer["b1"],
                          layer["w2"], layer["b2"]).reshape(BN, T, D)

    # fused final LN + token mean-pool  == last_hidden_state.mean(1)
    return pallas_lnf_meanpool(x, p["lnf_g"], p["lnf_b"])        # (BN, D)


# ---------------------------------------------------------------------------
# ViTEncoder forward
# ---------------------------------------------------------------------------
def vit_encoder_forward(params, imgs, x_p, u_p, cfg):
    B, N, C, H, W = imgs.shape
    feats = tiny_vit_forward(params["vit"], imgs.reshape(B * N, C, H, W), cfg)

    pos_enc = jnp.broadcast_to(jnp.eye(N, dtype=jnp.float32), (B, N, N))
    rep = jnp.concatenate([feats.reshape(B, N, -1), pos_enc], axis=-1)   # (B,N,D+N)

    L = cfg["latent_dim"]
    rep_f = rep.reshape(B * N, -1)
    rep_f = pallas_linear(rep_f, params["mlp_w1"], params["mlp_b1"],
                          activation="relu")
    rep_f = pallas_linear(rep_f, params["mlp_w2"], params["mlp_b2"])
    rep = rep_f.reshape(B, N, L)

    final_rep = pallas_cam_fuse(rep, params["attention"])                # (B, L)
    final_rep = jnp.concatenate([final_rep, x_p, u_p], axis=-1)          # (B, 2L+nc)
    return pallas_linear(final_rep, params["lin_w"], params["lin_b"])    # (B, L)


# ---------------------------------------------------------------------------
# Deterministic parameter init (matmul weights stored in bf16)
# ---------------------------------------------------------------------------
def init_params(key, cfg):
    C, ps, D = cfg["C"], cfg["patch"], cfg["vit_dim"]
    mlp_h, nl = cfg["mlp_dim"], cfg["layers"]
    npatch = (cfg["H"] // ps) * (cfg["W"] // ps)
    T = npatch + 1
    L, N, nc = cfg["latent_dim"], cfg["num_cam"], cfg["n_control"]

    keys = iter(jax.random.split(key, 256))

    def w(shape, scale=0.02):
        return (scale * jax.random.normal(next(keys), shape, jnp.float32)
                ).astype(jnp.bfloat16)

    def wf(shape, scale=0.02):
        return scale * jax.random.normal(next(keys), shape, jnp.float32)

    def z(shape):
        return jnp.zeros(shape, jnp.float32)

    def ones(shape):
        return jnp.ones(shape, jnp.float32)

    layers = []
    for _ in range(nl):
        layers.append(dict(
            ln1_g=ones((D,)), ln1_b=z((D,)),
            wqkv=w((D, 3 * D)), bqkv=z((3 * D,)),      # [q|k|v] concatenated
            wo=w((D, D)), bo=z((D,)),
            ln2_g=ones((D,)), ln2_b=z((D,)),
            w1=w((D, mlp_h)), b1=z((mlp_h,)),
            w2=w((mlp_h, D)), b2=z((D,)),
        ))
    vit = dict(
        patch_w=w((C * ps * ps, D)), patch_b=z((D,)),
        cls=wf((1, 1, D)), pos=wf((1, T, D)),
        layers=layers,
        lnf_g=ones((D,)), lnf_b=z((D,)),
    )
    return dict(
        vit=vit,
        mlp_w1=w((D + N, L)), mlp_b1=z((L,)),
        mlp_w2=w((L, L)), mlp_b2=z((L,)),
        attention=jax.random.uniform(next(keys), (N, L), jnp.float32),
        lin_w=w((2 * L + nc, L)), lin_b=z((L,)),
    )


# ---------------------------------------------------------------------------
# Driver
# ---------------------------------------------------------------------------
if __name__ == "__main__":
    # vit_dim chosen lane-dense (multiple of 128); T = 17 tokens.
    cfg = dict(C=3, H=16, W=16, patch=4,
               vit_dim=128, heads=2, mlp_dim=256, layers=2,
               latent_dim=16, num_cam=4, n_control=2)

    B, N = 2, cfg["num_cam"]
    key = jax.random.PRNGKey(0)
    k_img, k_x, k_u, k_p = jax.random.split(key, 4)

    imgs = jax.random.normal(k_img, (B, N, cfg["C"], cfg["H"], cfg["W"]), jnp.float32)
    x_p = jax.random.normal(k_x, (B, cfg["latent_dim"]), jnp.float32)
    u_p = jax.random.normal(k_u, (B, cfg["n_control"]), jnp.float32)
    params = init_params(k_p, cfg)

    fwd = jax.jit(functools.partial(vit_encoder_forward, cfg=cfg))
    out = fwd(params, imgs, x_p, u_p)
    out = jax.block_until_ready(out)

    assert out.shape == (B, cfg["latent_dim"]), out.shape
    assert bool(jnp.all(jnp.isfinite(out)))
    print("KERNEL_OK")
</pallas_src>

<mosaic_0001>
module attributes {stable_mosaic.version = 11 : i64} {
  func.func @_matmul_kernel(%arg0: i32, %arg1: i32, %arg2: i32, %arg3: memref<128x48xbf16, #tpu.memory_space<vmem>>, %arg4: memref<48x128xbf16, #tpu.memory_space<vmem>>, %arg5: memref<1x128xf32, #tpu.memory_space<vmem>>, %arg6: memref<128x128xf32, #tpu.memory_space<vmem>>, %arg7: memref<128x128xf32, #tpu.memory_space<vmem>>) attributes {dimension_semantics = [#tpu.dimension_semantics<parallel>, #tpu.dimension_semantics<parallel>, #tpu.dimension_semantics<arbitrary>], iteration_bounds = array<i64: 1, 1, 1>, scalar_prefetch = 0 : i64, scratch_operands = 1 : i64, tpu.core_type = #tpu.core_type<tc>, window_params = [{transform_indices = @transform_0, window_bounds = array<i64: 128, 48>}, {transform_indices = @transform_1, window_bounds = array<i64: 48, 128>}, {transform_indices = @transform_2, window_bounds = array<i64: 1, 128>}, {transform_indices = @transform_3, window_bounds = array<i64: 128, 128>}]} {
    %c0_i32 = arith.constant 0 : i32
    %0 = arith.cmpi eq, %arg2, %c0_i32 : i32
    %1 = arith.extui %0 : i1 to i32
    %c0_i32_0 = arith.constant 0 : i32
    %2 = arith.cmpi ne, %1, %c0_i32_0 : i32
    scf.if %2 {
      %cst_10 = arith.constant 0.000000e+00 : f32
      %12 = vector.broadcast %cst_10 : f32 to vector<128x128xf32>
      %c0_11 = arith.constant 0 : index
      %c0_12 = arith.constant 0 : index
      %13 = vector.load %arg7[%c0_11, %c0_12] : memref<128x128xf32, #tpu.memory_space<vmem>>, vector<128x128xf32>
      tpu.vector_store %arg7[%c0_11, %c0_12], %12 {strides = array<i32>} : memref<128x128xf32, #tpu.memory_space<vmem>>, vector<128x128xf32>,
    } else {
    }
    %c0 = arith.constant 0 : index
    %c0_1 = arith.constant 0 : index
    %3 = vector.load %arg7[%c0, %c0_1] : memref<128x128xf32, #tpu.memory_space<vmem>>, vector<128x128xf32>
    %c0_2 = arith.constant 0 : index
    %c0_3 = arith.constant 0 : index
    %4 = vector.load %arg3[%c0_2, %c0_3] : memref<128x48xbf16, #tpu.memory_space<vmem>>, vector<128x48xbf16>
    %c0_4 = arith.constant 0 : index
    %c0_5 = arith.constant 0 : index
    %5 = vector.load %arg4[%c0_4, %c0_5] : memref<48x128xbf16, #tpu.memory_space<vmem>>, vector<48x128xbf16>
    %cst = arith.constant dense<0.000000e+00> : vector<128x128xf32>
    %6 = tpu.matmul %4, %5, %cst {dimension_numbers = #tpu.dot_dimension_numbers<[1], [0], [0], [1], [0, 0, 1, 1], [], []>} : vector<128x48xbf16>, vector<48x128xbf16>, vector<128x128xf32> -> vector<128x128xf32>
    %7 = arith.addf %3, %6 : vector<128x128xf32>
    %c0_6 = arith.constant 0 : index
    %c0_7 = arith.constant 0 : index
    %8 = vector.load %arg7[%c0_6, %c0_7] : memref<128x128xf32, #tpu.memory_space<vmem>>, vector<128x128xf32>
    tpu.vector_store %arg7[%c0_6, %c0_7], %7 {strides = array<i32>} : memref<128x128xf32, #tpu.memory_space<vmem>>, vector<128x128xf32>,
    %c0_i32_8 = arith.constant 0 : i32
    %9 = arith.cmpi eq, %arg2, %c0_i32_8 : i32
    %10 = arith.extui %9 : i1 to i32
    %c0_i32_9 = arith.constant 0 : i32
    %11 = arith.cmpi ne, %10, %c0_i32_9 : i32
    scf.if %11 {
      %c0_10 = arith.constant 0 : index
      %c0_11 = arith.constant 0 : index
      %12 = vector.load %arg7[%c0_10, %c0_11] : memref<128x128xf32, #tpu.memory_space<vmem>>, vector<128x128xf32>
      %c0_12 = arith.constant 0 : index
      %c0_13 = arith.constant 0 : index
      %13 = vector.load %arg5[%c0_12, %c0_13] : memref<1x128xf32, #tpu.memory_space<vmem>>, vector<1x128xf32>
      %14 = vector.broadcast %13 : vector<1x128xf32> to vector<128x128xf32>
      %15 = arith.addf %12, %14 : vector<128x128xf32>
      %c0_14 = arith.constant 0 : index
      %c0_15 = arith.constant 0 : index
      %16 = vector.load %arg6[%c0_14, %c0_15] : memref<128x128xf32, #tpu.memory_space<vmem>>, vector<128x128xf32>
      tpu.vector_store %arg6[%c0_14, %c0_15], %15 {strides = array<i32>} : memref<128x128xf32, #tpu.memory_space<vmem>>, vector<128x128xf32>,
    } else {
    }
    return
  }
  func.func @transform_0(%arg0: i32, %arg1: i32, %arg2: i32) -> (i32, i32) {
    %c0_i32 = arith.constant 0 : i32
    return %arg0, %arg2 : i32, i32
  }
  func.func @transform_1(%arg0: i32, %arg1: i32, %arg2: i32) -> (i32, i32) {
    %c0_i32 = arith.constant 0 : i32
    return %arg2, %arg1 : i32, i32
  }
  func.func @transform_2(%arg0: i32, %arg1: i32, %arg2: i32) -> (i32, i32) {
    %c0_i32 = arith.constant 0 : i32
    %c0_i32_0 = arith.constant 0 : i32
    return %c0_i32, %arg1 : i32, i32
  }
  func.func @transform_3(%arg0: i32, %arg1: i32, %arg2: i32) -> (i32, i32) {
    %c0_i32 = arith.constant 0 : i32
    return %arg0, %arg1 : i32, i32
  }
}

module attributes {stable_mosaic.version = 11 : i64} {
  func.func @_ln_mlp_kernel(%arg0: i32, %arg1: memref<136x128xf32, #tpu.memory_space<vmem>>, %arg2: memref<1x128xf32, #tpu.memory_space<vmem>>, %arg3: memref<1x128xf32, #tpu.memory_space<vmem>>, %arg4: memref<128x256xbf16, #tpu.memory_space<vmem>>, %arg5: memref<1x256xf32, #tpu.memory_space<vmem>>, %arg6: memref<256x128xbf16, #tpu.memory_space<vmem>>, %arg7: memref<1x128xf32, #tpu.memory_space<vmem>>, %arg8: memref<136x128xf32, #tpu.memory_space<vmem>>) attributes {dimension_semantics = [#tpu.dimension_semantics<parallel>], iteration_bounds = array<i64: 1>, scalar_prefetch = 0 : i64, scratch_operands = 0 : i64, tpu.core_type = #tpu.core_type<tc>, window_params = [{transform_indices = @transform_0, window_bounds = array<i64: 136, 128>}, {pipeline_mode = #tpu.pipeline_mode<synchronous>, transform_indices = @transform_1, window_bounds = array<i64: 1, 128>}, {pipeline_mode = #tpu.pipeline_mode<synchronous>, transform_indices = @transform_2, window_bounds = array<i64: 1, 128>}, {pipeline_mode = #tpu.pipeline_mode<synchronous>, transform_indices = @transform_3, window_bounds = array<i64: 128, 256>}, {pipeline_mode = #tpu.pipeline_mode<synchronous>, transform_indices = @transform_4, window_bounds = array<i64: 1, 256>}, {pipeline_mode = #tpu.pipeline_mode<synchronous>, transform_indices = @transform_5, window_bounds = array<i64: 256, 128>}, {pipeline_mode = #tpu.pipeline_mode<synchronous>, transform_indices = @transform_6, window_bounds = array<i64: 1, 128>}, {transform_indices = @transform_7, window_bounds = array<i64: 136, 128>}]} {
    %c0 = arith.constant 0 : index
    %c0_0 = arith.constant 0 : index
    %0 = vector.load %arg1[%c0, %c0_0] : memref<136x128xf32, #tpu.memory_space<vmem>>, vector<136x128xf32>
    %cst = arith.constant dense<0.000000e+00> : vector<136xf32>
    %1 = vector.multi_reduction <add>, %0, %cst [1] : vector<136x128xf32> to vector<136xf32>
    %2 = vector.shape_cast %1 : vector<136xf32> to vector<136x1xf32>
    %cst_1 = arith.constant 1.280000e+02 : f32
    %3 = vector.broadcast %cst_1 : f32 to vector<136x1xf32>
    %4 = arith.divf %2, %3 : vector<136x1xf32>
    %5 = vector.broadcast %4 : vector<136x1xf32> to vector<136x128xf32>
    %6 = arith.subf %0, %5 : vector<136x128xf32>
    %7 = arith.mulf %6, %6 : vector<136x128xf32>
    %cst_2 = arith.constant dense<0.000000e+00> : vector<136xf32>
    %8 = vector.multi_reduction <add>, %7, %cst_2 [1] : vector<136x128xf32> to vector<136xf32>
    %9 = vector.shape_cast %8 : vector<136xf32> to vector<136x1xf32>
    %cst_3 = arith.constant 1.280000e+02 : f32
    %10 = vector.broadcast %cst_3 : f32 to vector<136x1xf32>
    %11 = arith.divf %9, %10 : vector<136x1xf32>
    %12 = vector.broadcast %4 : vector<136x1xf32> to vector<136x128xf32>
    %13 = arith.subf %0, %12 : vector<136x128xf32>
    %cst_4 = arith.constant 9.99999996E-13 : f32
    %14 = vector.broadcast %cst_4 : f32 to vector<136x1xf32>
    %15 = arith.addf %11, %14 : vector<136x1xf32>
    %16 = math.rsqrt %15 : vector<136x1xf32>
    %17 = vector.broadcast %16 : vector<136x1xf32> to vector<136x128xf32>
    %18 = arith.mulf %13, %17 : vector<136x128xf32>
    %c0_5 = arith.constant 0 : index
    %c0_6 = arith.constant 0 : index
    %19 = vector.load %arg2[%c0_5, %c0_6] : memref<1x128xf32, #tpu.memory_space<vmem>>, vector<1x128xf32>
    %20 = vector.broadcast %19 : vector<1x128xf32> to vector<136x128xf32>
    %21 = arith.mulf %18, %20 : vector<136x128xf32>
    %c0_7 = arith.constant 0 : index
    %c0_8 = arith.constant 0 : index
    %22 = vector.load %arg3[%c0_7, %c0_8] : memref<1x128xf32, #tpu.memory_space<vmem>>, vector<1x128xf32>
    %23 = vector.broadcast %22 : vector<1x128xf32> to vector<136x128xf32>
    %24 = arith.addf %21, %23 : vector<136x128xf32>
    %25 = arith.truncf %24 : vector<136x128xf32> to vector<136x128xbf16>
    %c0_9 = arith.constant 0 : index
    %c0_10 = arith.constant 0 : index
    %26 = vector.load %arg4[%c0_9, %c0_10] : memref<128x256xbf16, #tpu.memory_space<vmem>>, vector<128x256xbf16>
    %cst_11 = arith.constant dense<0.000000e+00> : vector<136x256xf32>
    %27 = tpu.matmul %25, %26, %cst_11 {dimension_numbers = #tpu.dot_dimension_numbers<[1], [0], [0], [1], [0, 0, 1, 1], [], []>} : vector<136x128xbf16>, vector<128x256xbf16>, vector<136x256xf32> -> vector<136x256xf32>
    %c0_12 = arith.constant 0 : index
    %c0_13 = arith.constant 0 : index
    %28 = vector.load %arg5[%c0_12, %c0_13] : memref<1x256xf32, #tpu.memory_space<vmem>>, vector<1x256xf32>
    %29 = vector.broadcast %28 : vector<1x256xf32> to vector<136x256xf32>
    %30 = arith.addf %27, %29 : vector<136x256xf32>
    %31 = arith.mulf %30, %30 : vector<136x256xf32>
    %32 = arith.mulf %30, %31 : vector<136x256xf32>
    %cst_14 = arith.constant 4.471500e-02 : f32
    %33 = vector.broadcast %cst_14 : f32 to vector<136x256xf32>
    %34 = arith.mulf %33, %32 : vector<136x256xf32>
    %35 = arith.addf %30, %34 : vector<136x256xf32>
    %cst_15 = arith.constant 0.797884583 : f32
    %36 = vector.broadcast %cst_15 : f32 to vector<136x256xf32>
    %37 = arith.mulf %36, %35 : vector<136x256xf32>
    %38 = math.tanh %37 : vector<136x256xf32>
    %cst_16 = arith.constant 1.000000e+00 : f32
    %39 = vector.broadcast %cst_16 : f32 to vector<136x256xf32>
    %40 = arith.addf %39, %38 : vector<136x256xf32>
    %cst_17 = arith.constant 5.000000e-01 : f32
    %41 = vector.broadcast %cst_17 : f32 to vector<136x256xf32>
    %42 = arith.mulf %41, %40 : vector<136x256xf32>
    %43 = arith.mulf %30, %42 : vector<136x256xf32>
    %44 = arith.truncf %43 : vector<136x256xf32> to vector<136x256xbf16>
    %c0_18 = arith.constant 0 : index
    %c0_19 = arith.constant 0 : index
    %45 = vector.load %arg6[%c0_18, %c0_19] : memref<256x128xbf16, #tpu.memory_space<vmem>>, vector<256x128xbf16>
    %cst_20 = arith.constant dense<0.000000e+00> : vector<136x128xf32>
    %46 = tpu.matmul %44, %45, %cst_20 {dimension_numbers = #tpu.dot_dimension_numbers<[1], [0], [0], [1], [0, 0, 1, 1], [], []>} : vector<136x256xbf16>, vector<256x128xbf16>, vector<136x128xf32> -> vector<136x128xf32>
    %c0_21 = arith.constant 0 : index
    %c0_22 = arith.constant 0 : index
    %47 = vector.load %arg7[%c0_21, %c0_22] : memref<1x128xf32, #tpu.memory_space<vmem>>, vector<1x128xf32>
    %48 = vector.broadcast %47 : vector<1x128xf32> to vector<136x128xf32>
    %49 = arith.addf %46, %48 : vector<136x128xf32>
    %50 = arith.addf %49, %0 : vector<136x128xf32>
    %c0_23 = arith.constant 0 : index
    %c0_24 = arith.constant 0 : index
    %51 = vector.load %arg8[%c0_23, %c0_24] : memref<136x128xf32, #tpu.memory_space<vmem>>, vector<136x128xf32>
    tpu.vector_store %arg8[%c0_23, %c0_24], %50 {strides = array<i32>} : memref<136x128xf32, #tpu.memory_space<vmem>>, vector<136x128xf32>,
    return
  }
  func.func @transform_0(%arg0: i32) -> (i32, i32) {
    %c0_i32 = arith.constant 0 : i32
    %c0_i32_0 = arith.constant 0 : i32
    return %arg0, %c0_i32 : i32, i32
  }
  func.func @transform_1(%arg0: i32) -> (i32, i32) {
    %c0_i32 = arith.constant 0 : i32
    %c0_i32_0 = arith.constant 0 : i32
    %c0_i32_1 = arith.constant 0 : i32
    return %c0_i32, %c0_i32_0 : i32, i32
  }
  func.func @transform_2(%arg0: i32) -> (i32, i32) {
    %c0_i32 = arith.constant 0 : i32
    %c0_i32_0 = arith.constant 0 : i32
    %c0_i32_1 = arith.constant 0 : i32
    return %c0_i32, %c0_i32_0 : i32, i32
  }
  func.func @transform_3(%arg0: i32) -> (i32, i32) {
    %c0_i32 = arith.constant 0 : i32
    %c0_i32_0 = arith.constant 0 : i32
    %c0_i32_1 = arith.constant 0 : i32
    return %c0_i32, %c0_i32_0 : i32, i32
  }
  func.func @transform_4(%arg0: i32) -> (i32, i32) {
    %c0_i32 = arith.constant 0 : i32
    %c0_i32_0 = arith.constant 0 : i32
    %c0_i32_1 = arith.constant 0 : i32
    return %c0_i32, %c0_i32_0 : i32, i32
  }
  func.func @transform_5(%arg0: i32) -> (i32, i32) {
    %c0_i32 = arith.constant 0 : i32
    %c0_i32_0 = arith.constant 0 : i32
    %c0_i32_1 = arith.constant 0 : i32
    return %c0_i32, %c0_i32_0 : i32, i32
  }
  func.func @transform_6(%arg0: i32) -> (i32, i32) {
    %c0_i32 = arith.constant 0 : i32
    %c0_i32_0 = arith.constant 0 : i32
    %c0_i32_1 = arith.constant 0 : i32
    return %c0_i32, %c0_i32_0 : i32, i32
  }
  func.func @transform_7(%arg0: i32) -> (i32, i32) {
    %c0_i32 = arith.constant 0 : i32
    %c0_i32_0 = arith.constant 0 : i32
    return %arg0, %c0_i32 : i32, i32
  }
}

module attributes {stable_mosaic.version = 11 : i64} {
  func.func @_ln_linear_kernel(%arg0: i32, %arg1: i32, %arg2: memref<136x128xf32, #tpu.memory_space<vmem>>, %arg3: memref<1x128xf32, #tpu.memory_space<vmem>>, %arg4: memref<1x128xf32, #tpu.memory_space<vmem>>, %arg5: memref<128x128xbf16, #tpu.memory_space<vmem>>, %arg6: memref<1x128xf32, #tpu.memory_space<vmem>>, %arg7: memref<136x128xbf16, #tpu.memory_space<vmem>>) attributes {dimension_semantics = [#tpu.dimension_semantics<parallel>, #tpu.dimension_semantics<parallel>], iteration_bounds = array<i64: 1, 3>, scalar_prefetch = 0 : i64, scratch_operands = 0 : i64, tpu.core_type = #tpu.core_type<tc>, window_params = [{transform_indices = @transform_0, window_bounds = array<i64: 136, 128>}, {pipeline_mode = #tpu.pipeline_mode<synchronous>, transform_indices = @transform_1, window_bounds = array<i64: 1, 128>}, {pipeline_mode = #tpu.pipeline_mode<synchronous>, transform_indices = @transform_2, window_bounds = array<i64: 1, 128>}, {transform_indices = @transform_3, window_bounds = array<i64: 128, 128>}, {transform_indices = @transform_4, window_bounds = array<i64: 1, 128>}, {transform_indices = @transform_5, window_bounds = array<i64: 136, 128>}]} {
    %c0 = arith.constant 0 : index
    %c0_0 = arith.constant 0 : index
    %0 = vector.load %arg2[%c0, %c0_0] : memref<136x128xf32, #tpu.memory_space<vmem>>, vector<136x128xf32>
    %cst = arith.constant dense<0.000000e+00> : vector<136xf32>
    %1 = vector.multi_reduction <add>, %0, %cst [1] : vector<136x128xf32> to vector<136xf32>
    %2 = vector.shape_cast %1 : vector<136xf32> to vector<136x1xf32>
    %cst_1 = arith.constant 1.280000e+02 : f32
    %3 = vector.broadcast %cst_1 : f32 to vector<136x1xf32>
    %4 = arith.divf %2, %3 : vector<136x1xf32>
    %5 = vector.broadcast %4 : vector<136x1xf32> to vector<136x128xf32>
    %6 = arith.subf %0, %5 : vector<136x128xf32>
    %7 = arith.mulf %6, %6 : vector<136x128xf32>
    %cst_2 = arith.constant dense<0.000000e+00> : vector<136xf32>
    %8 = vector.multi_reduction <add>, %7, %cst_2 [1] : vector<136x128xf32> to vector<136xf32>
    %9 = vector.shape_cast %8 : vector<136xf32> to vector<136x1xf32>
    %cst_3 = arith.constant 1.280000e+02 : f32
    %10 = vector.broadcast %cst_3 : f32 to vector<136x1xf32>
    %11 = arith.divf %9, %10 : vector<136x1xf32>
    %12 = vector.broadcast %4 : vector<136x1xf32> to vector<136x128xf32>
    %13 = arith.subf %0, %12 : vector<136x128xf32>
    %cst_4 = arith.constant 9.99999996E-13 : f32
    %14 = vector.broadcast %cst_4 : f32 to vector<136x1xf32>
    %15 = arith.addf %11, %14 : vector<136x1xf32>
    %16 = math.rsqrt %15 : vector<136x1xf32>
    %17 = vector.broadcast %16 : vector<136x1xf32> to vector<136x128xf32>
    %18 = arith.mulf %13, %17 : vector<136x128xf32>
    %c0_5 = arith.constant 0 : index
    %c0_6 = arith.constant 0 : index
    %19 = vector.load %arg3[%c0_5, %c0_6] : memref<1x128xf32, #tpu.memory_space<vmem>>, vector<1x128xf32>
    %20 = vector.broadcast %19 : vector<1x128xf32> to vector<136x128xf32>
    %21 = arith.mulf %18, %20 : vector<136x128xf32>
    %c0_7 = arith.constant 0 : index
    %c0_8 = arith.constant 0 : index
    %22 = vector.load %arg4[%c0_7, %c0_8] : memref<1x128xf32, #tpu.memory_space<vmem>>, vector<1x128xf32>
    %23 = vector.broadcast %22 : vector<1x128xf32> to vector<136x128xf32>
    %24 = arith.addf %21, %23 : vector<136x128xf32>
    %25 = arith.truncf %24 : vector<136x128xf32> to vector<136x128xbf16>
    %c0_9 = arith.constant 0 : index
    %c0_10 = arith.constant 0 : index
    %26 = vector.load %arg5[%c0_9, %c0_10] : memref<128x128xbf16, #tpu.memory_space<vmem>>, vector<128x128xbf16>
    %cst_11 = arith.constant dense<0.000000e+00> : vector<136x128xf32>
    %27 = tpu.matmul %25, %26, %cst_11 {dimension_numbers = #tpu.dot_dimension_numbers<[1], [0], [0], [1], [0, 0, 1, 1], [], []>} : vector<136x128xbf16>, vector<128x128xbf16>, vector<136x128xf32> -> vector<136x128xf32>
    %c0_12 = arith.constant 0 : index
    %c0_13 = arith.constant 0 : index
    %28 = vector.load %arg6[%c0_12, %c0_13] : memref<1x128xf32, #tpu.memory_space<vmem>>, vector<1x128xf32>
    %29 = vector.broadcast %28 : vector<1x128xf32> to vector<136x128xf32>
    %30 = arith.addf %27, %29 : vector<136x128xf32>
    %31 = arith.truncf %30 : vector<136x128xf32> to vector<136x128xbf16>
    %c0_14 = arith.constant 0 : index
    %c0_15 = arith.constant 0 : index
    %32 = vector.load %arg7[%c0_14, %c0_15] : memref<136x128xbf16, #tpu.memory_space<vmem>>, vector<136x128xbf16>
    tpu.vector_store %arg7[%c0_14, %c0_15], %31 {strides = array<i32>} : memref<136x128xbf16, #tpu.memory_space<vmem>>, vector<136x128xbf16>,
    return
  }
  func.func @transform_0(%arg0: i32, %arg1: i32) -> (i32, i32) {
    %c0_i32 = arith.constant 0 : i32
    %c0_i32_0 = arith.constant 0 : i32
    return %arg0, %c0_i32 : i32, i32
  }
  func.func @transform_1(%arg0: i32, %arg1: i32) -> (i32, i32) {
    %c0_i32 = arith.constant 0 : i32
    %c0_i32_0 = arith.constant 0 : i32
    %c0_i32_1 = arith.constant 0 : i32
    return %c0_i32, %c0_i32_0 : i32, i32
  }
  func.func @transform_2(%arg0: i32, %arg1: i32) -> (i32, i32) {
    %c0_i32 = arith.constant 0 : i32
    %c0_i32_0 = arith.constant 0 : i32
    %c0_i32_1 = arith.constant 0 : i32
    return %c0_i32, %c0_i32_0 : i32, i32
  }
  func.func @transform_3(%arg0: i32, %arg1: i32) -> (i32, i32) {
    %c0_i32 = arith.constant 0 : i32
    %c0_i32_0 = arith.constant 0 : i32
    return %c0_i32, %arg1 : i32, i32
  }
  func.func @transform_4(%arg0: i32, %arg1: i32) -> (i32, i32) {
    %c0_i32 = arith.constant 0 : i32
    %c0_i32_0 = arith.constant 0 : i32
    return %c0_i32, %arg1 : i32, i32
  }
  func.func @transform_5(%arg0: i32, %arg1: i32) -> (i32, i32) {
    %c0_i32 = arith.constant 0 : i32
    return %arg0, %arg1 : i32, i32
  }
}

module attributes {stable_mosaic.version = 11 : i64} {
  func.func @_mhsa_proj_kernel(%arg0: i32, %arg1: memref<1x17x384xbf16, #tpu.memory_space<vmem>>, %arg2: memref<128x128xbf16, #tpu.memory_space<vmem>>, %arg3: memref<1x128xf32, #tpu.memory_space<vmem>>, %arg4: memref<1x17x128xf32, #tpu.memory_space<vmem>>, %arg5: memref<1x17x128xf32, #tpu.memory_space<vmem>>) attributes {dimension_semantics = [#tpu.dimension_semantics<parallel>], iteration_bounds = array<i64: 8>, scalar_prefetch = 0 : i64, scratch_operands = 0 : i64, tpu.core_type = #tpu.core_type<tc>, window_params = [{transform_indices = @transform_0, window_bounds = array<i64: 1, 17, 384>}, {pipeline_mode = #tpu.pipeline_mode<synchronous>, transform_indices = @transform_1, window_bounds = array<i64: 128, 128>}, {pipeline_mode = #tpu.pipeline_mode<synchronous>, transform_indices = @transform_2, window_bounds = array<i64: 1, 128>}, {transform_indices = @transform_3, window_bounds = array<i64: 1, 17, 128>}, {transform_indices = @transform_4, window_bounds = array<i64: 1, 17, 128>}]} {
    %c0 = arith.constant 0 : index
    %c0_0 = arith.constant 0 : index
    %c0_1 = arith.constant 0 : index
    %0 = vector.load %arg1[%c0, %c0_0, %c0_1] : memref<1x17x384xbf16, #tpu.memory_space<vmem>>, vector<1x17x384xbf16>
    %1 = vector.shape_cast %0 : vector<1x17x384xbf16> to vector<17x384xbf16>
    %2 = vector.extract_strided_slice %1 {offsets = [0, 0], sizes = [17, 64], strides = [1, 1]} : vector<17x384xbf16> to vector<17x64xbf16>
    %3 = vector.extract_strided_slice %1 {offsets = [0, 128], sizes = [17, 64], strides = [1, 1]} : vector<17x384xbf16> to vector<17x64xbf16>
    %4 = vector.extract_strided_slice %1 {offsets = [0, 256], sizes = [17, 64], strides = [1, 1]} : vector<17x384xbf16> to vector<17x64xbf16>
    %cst = arith.constant dense<0.000000e+00> : vector<17x17xf32>
    %5 = tpu.matmul %2, %3, %cst {dimension_numbers = #tpu.dot_dimension_numbers<[1], [1], [0], [0], [0, 0, 1, 0], [], []>} : vector<17x64xbf16>, vector<17x64xbf16>, vector<17x17xf32> -> vector<17x17xf32>
    %cst_2 = arith.constant 1.250000e-01 : f32
    %6 = vector.broadcast %cst_2 : f32 to vector<17x17xf32>
    %7 = arith.mulf %5, %6 : vector<17x17xf32>
    %cst_3 = arith.constant dense<0xFF800000> : vector<17xf32>
    %8 = vector.multi_reduction <maximumf>, %7, %cst_3 [1] : vector<17x17xf32> to vector<17xf32>
    %9 = vector.shape_cast %8 : vector<17xf32> to vector<17x1xf32>
    %10 = vector.broadcast %9 : vector<17x1xf32> to vector<17x17xf32>
    %11 = arith.subf %7, %10 : vector<17x17xf32>
    %12 = math.exp %11 : vector<17x17xf32>
    %cst_4 = arith.constant dense<0.000000e+00> : vector<17xf32>
    %13 = vector.multi_reduction <add>, %12, %cst_4 [1] : vector<17x17xf32> to vector<17xf32>
    %14 = vector.shape_cast %13 : vector<17xf32> to vector<17x1xf32>
    %15 = tpu.reciprocal %14 {approx = true} : vector<17x1xf32> -> vector<17x1xf32>
    %16 = vector.broadcast %15 : vector<17x1xf32> to vector<17x17xf32>
    %17 = arith.mulf %12, %16 : vector<17x17xf32>
    %18 = arith.truncf %17 : vector<17x17xf32> to vector<17x17xbf16>
    %cst_5 = arith.constant dense<0.000000e+00> : vector<17x64xf32>
    %19 = tpu.matmul %18, %4, %cst_5 {dimension_numbers = #tpu.dot_dimension_numbers<[1], [0], [0], [1], [0, 0, 1, 1], [], []>} : vector<17x17xbf16>, vector<17x64xbf16>, vector<17x64xf32> -> vector<17x64xf32>
    %20 = vector.extract_strided_slice %1 {offsets = [0, 64], sizes = [17, 64], strides = [1, 1]} : vector<17x384xbf16> to vector<17x64xbf16>
    %21 = vector.extract_strided_slice %1 {offsets = [0, 192], sizes = [17, 64], strides = [1, 1]} : vector<17x384xbf16> to vector<17x64xbf16>
    %22 = vector.extract_strided_slice %1 {offsets = [0, 320], sizes = [17, 64], strides = [1, 1]} : vector<17x384xbf16> to vector<17x64xbf16>
    %cst_6 = arith.constant dense<0.000000e+00> : vector<17x17xf32>
    %23 = tpu.matmul %20, %21, %cst_6 {dimension_numbers = #tpu.dot_dimension_numbers<[1], [1], [0], [0], [0, 0, 1, 0], [], []>} : vector<17x64xbf16>, vector<17x64xbf16>, vector<17x17xf32> -> vector<17x17xf32>
    %cst_7 = arith.constant 1.250000e-01 : f32
    %24 = vector.broadcast %cst_7 : f32 to vector<17x17xf32>
    %25 = arith.mulf %23, %24 : vector<17x17xf32>
    %cst_8 = arith.constant dense<0xFF800000> : vector<17xf32>
    %26 = vector.multi_reduction <maximumf>, %25, %cst_8 [1] : vector<17x17xf32> to vector<17xf32>
    %27 = vector.shape_cast %26 : vector<17xf32> to vector<17x1xf32>
    %28 = vector.broadcast %27 : vector<17x1xf32> to vector<17x17xf32>
    %29 = arith.subf %25, %28 : vector<17x17xf32>
    %30 = math.exp %29 : vector<17x17xf32>
    %cst_9 = arith.constant dense<0.000000e+00> : vector<17xf32>
    %31 = vector.multi_reduction <add>, %30, %cst_9 [1] : vector<17x17xf32> to vector<17xf32>
    %32 = vector.shape_cast %31 : vector<17xf32> to vector<17x1xf32>
    %33 = tpu.reciprocal %32 {approx = true} : vector<17x1xf32> -> vector<17x1xf32>
    %34 = vector.broadcast %33 : vector<17x1xf32> to vector<17x17xf32>
    %35 = arith.mulf %30, %34 : vector<17x17xf32>
    %36 = arith.truncf %35 : vector<17x17xf32> to vector<17x17xbf16>
    %cst_10 = arith.constant dense<0.000000e+00> : vector<17x64xf32>
    %37 = tpu.matmul %36, %22, %cst_10 {dimension_numbers = #tpu.dot_dimension_numbers<[1], [0], [0], [1], [0, 0, 1, 1], [], []>} : vector<17x17xbf16>, vector<17x64xbf16>, vector<17x64xf32> -> vector<17x64xf32>
    %38 = tpu.concatenate %19, %37 in 1 : vector<17x64xf32>, vector<17x64xf32> -> vector<17x128xf32>
    %39 = arith.truncf %38 : vector<17x128xf32> to vector<17x128xbf16>
    %c0_11 = arith.constant 0 : index
    %c0_12 = arith.constant 0 : index
    %40 = vector.load %arg2[%c0_11, %c0_12] : memref<128x128xbf16, #tpu.memory_space<vmem>>, vector<128x128xbf16>
    %cst_13 = arith.constant dense<0.000000e+00> : vector<17x128xf32>
    %41 = tpu.matmul %39, %40, %cst_13 {dimension_numbers = #tpu.dot_dimension_numbers<[1], [0], [0], [1], [0, 0, 1, 1], [], []>} : vector<17x128xbf16>, vector<128x128xbf16>, vector<17x128xf32> -> vector<17x128xf32>
    %c0_14 = arith.constant 0 : index
    %c0_15 = arith.constant 0 : index
    %42 = vector.load %arg3[%c0_14, %c0_15] : memref<1x128xf32, #tpu.memory_space<vmem>>, vector<1x128xf32>
    %43 = vector.broadcast %42 : vector<1x128xf32> to vector<17x128xf32>
    %44 = arith.addf %41, %43 : vector<17x128xf32>
    %c0_16 = arith.constant 0 : index
    %c0_17 = arith.constant 0 : index
    %c0_18 = arith.constant 0 : index
    %45 = vector.load %arg4[%c0_16, %c0_17, %c0_18] : memref<1x17x128xf32, #tpu.memory_space<vmem>>, vector<1x17x128xf32>
    %46 = vector.shape_cast %45 : vector<1x17x128xf32> to vector<17x128xf32>
    %47 = arith.addf %44, %46 : vector<17x128xf32>
    %c0_19 = arith.constant 0 : index
    %c0_20 = arith.constant 0 : index
    %c0_21 = arith.constant 0 : index
    %48 = vector.load %arg5[%c0_19, %c0_20, %c0_21] : memref<1x17x128xf32, #tpu.memory_space<vmem>>, vector<1x17x128xf32>
    %49 = vector.shape_cast %48 : vector<1x17x128xf32> to vector<17x128xf32>
    %50 = vector.shape_cast %47 : vector<17x128xf32> to vector<1x17x128xf32>
    tpu.vector_store %arg5[%c0_19, %c0_20, %c0_21], %50 {strides = array<i32>} : memref<1x17x128xf32, #tpu.memory_space<vmem>>, vector<1x17x128xf32>,
    return
  }
  func.func @transform_0(%arg0: i32) -> (i32, i32, i32) {
    %c0_i32 = arith.constant 0 : i32
    %c0_i32_0 = arith.constant 0 : i32
    %c0_i32_1 = arith.constant 0 : i32
    return %arg0, %c0_i32, %c0_i32_0 : i32, i32, i32
  }
  func.func @transform_1(%arg0: i32) -> (i32, i32) {
    %c0_i32 = arith.constant 0 : i32
    %c0_i32_0 = arith.constant 0 : i32
    %c0_i32_1 = arith.constant 0 : i32
    return %c0_i32, %c0_i32_0 : i32, i32
  }
  func.func @transform_2(%arg0: i32) -> (i32, i32) {
    %c0_i32 = arith.constant 0 : i32
    %c0_i32_0 = arith.constant 0 : i32
    %c0_i32_1 = arith.constant 0 : i32
    return %c0_i32, %c0_i32_0 : i32, i32
  }
  func.func @transform_3(%arg0: i32) -> (i32, i32, i32) {
    %c0_i32 = arith.constant 0 : i32
    %c0_i32_0 = arith.constant 0 : i32
    %c0_i32_1 = arith.constant 0 : i32
    return %arg0, %c0_i32, %c0_i32_0 : i32, i32, i32
  }
  func.func @transform_4(%arg0: i32) -> (i32, i32, i32) {
    %c0_i32 = arith.constant 0 : i32
    %c0_i32_0 = arith.constant 0 : i32
    %c0_i32_1 = arith.constant 0 : i32
    return %arg0, %c0_i32, %c0_i32_0 : i32, i32, i32
  }
}

module attributes {stable_mosaic.version = 11 : i64} {
  func.func @_lnf_meanpool_kernel(%arg0: i32, %arg1: memref<8x17x128xf32, #tpu.memory_space<vmem>>, %arg2: memref<1x1x128xf32, #tpu.memory_space<vmem>>, %arg3: memref<1x1x128xf32, #tpu.memory_space<vmem>>, %arg4: memref<8x128xf32, #tpu.memory_space<vmem>>) attributes {dimension_semantics = [#tpu.dimension_semantics<parallel>], iteration_bounds = array<i64: 1>, scalar_prefetch = 0 : i64, scratch_operands = 0 : i64, tpu.core_type = #tpu.core_type<tc>, window_params = [{transform_indices = @transform_0, window_bounds = array<i64: 8, 17, 128>}, {pipeline_mode = #tpu.pipeline_mode<synchronous>, transform_indices = @transform_1, window_bounds = array<i64: 1, 1, 128>}, {pipeline_mode = #tpu.pipeline_mode<synchronous>, transform_indices = @transform_2, window_bounds = array<i64: 1, 1, 128>}, {transform_indices = @transform_3, window_bounds = array<i64: 8, 128>}]} {
    %c0 = arith.constant 0 : index
    %c0_0 = arith.constant 0 : index
    %c0_1 = arith.constant 0 : index
    %0 = vector.load %arg1[%c0, %c0_0, %c0_1] : memref<8x17x128xf32, #tpu.memory_space<vmem>>, vector<8x17x128xf32>
    %cst = arith.constant dense<0.000000e+00> : vector<8x17xf32>
    %1 = vector.multi_reduction <add>, %0, %cst [2] : vector<8x17x128xf32> to vector<8x17xf32>
    %2 = vector.shape_cast %1 : vector<8x17xf32> to vector<8x17x1xf32>
    %cst_2 = arith.constant 1.280000e+02 : f32
    %3 = vector.broadcast %cst_2 : f32 to vector<8x17x1xf32>
    %4 = arith.divf %2, %3 : vector<8x17x1xf32>
    %5 = vector.broadcast %4 : vector<8x17x1xf32> to vector<8x17x128xf32>
    %6 = arith.subf %0, %5 : vector<8x17x128xf32>
    %7 = arith.mulf %6, %6 : vector<8x17x128xf32>
    %cst_3 = arith.constant dense<0.000000e+00> : vector<8x17xf32>
    %8 = vector.multi_reduction <add>, %7, %cst_3 [2] : vector<8x17x128xf32> to vector<8x17xf32>
    %9 = vector.shape_cast %8 : vector<8x17xf32> to vector<8x17x1xf32>
    %cst_4 = arith.constant 1.280000e+02 : f32
    %10 = vector.broadcast %cst_4 : f32 to vector<8x17x1xf32>
    %11 = arith.divf %9, %10 : vector<8x17x1xf32>
    %12 = vector.broadcast %4 : vector<8x17x1xf32> to vector<8x17x128xf32>
    %13 = arith.subf %0, %12 : vector<8x17x128xf32>
    %cst_5 = arith.constant 9.99999996E-13 : f32
    %14 = vector.broadcast %cst_5 : f32 to vector<8x17x1xf32>
    %15 = arith.addf %11, %14 : vector<8x17x1xf32>
    %16 = math.rsqrt %15 : vector<8x17x1xf32>
    %17 = vector.broadcast %16 : vector<8x17x1xf32> to vector<8x17x128xf32>
    %18 = arith.mulf %13, %17 : vector<8x17x128xf32>
    %c0_6 = arith.constant 0 : index
    %c0_7 = arith.constant 0 : index
    %c0_8 = arith.constant 0 : index
    %19 = vector.load %arg2[%c0_6, %c0_7, %c0_8] : memref<1x1x128xf32, #tpu.memory_space<vmem>>, vector<1x1x128xf32>
    %20 = vector.broadcast %19 : vector<1x1x128xf32> to vector<8x17x128xf32>
    %21 = arith.mulf %18, %20 : vector<8x17x128xf32>
    %c0_9 = arith.constant 0 : index
    %c0_10 = arith.constant 0 : index
    %c0_11 = arith.constant 0 : index
    %22 = vector.load %arg3[%c0_9, %c0_10, %c0_11] : memref<1x1x128xf32, #tpu.memory_space<vmem>>, vector<1x1x128xf32>
    %23 = vector.broadcast %22 : vector<1x1x128xf32> to vector<8x17x128xf32>
    %24 = arith.addf %21, %23 : vector<8x17x128xf32>
    %cst_12 = arith.constant dense<0.000000e+00> : vector<8x128xf32>
    %25 = vector.multi_reduction <add>, %24, %cst_12 [1] : vector<8x17x128xf32> to vector<8x128xf32>
    %cst_13 = arith.constant 1.700000e+01 : f32
    %26 = vector.broadcast %cst_13 : f32 to vector<8x128xf32>
    %27 = arith.divf %25, %26 : vector<8x128xf32>
    %c0_14 = arith.constant 0 : index
    %c0_15 = arith.constant 0 : index
    %28 = vector.load %arg4[%c0_14, %c0_15] : memref<8x128xf32, #tpu.memory_space<vmem>>, vector<8x128xf32>
    tpu.vector_store %arg4[%c0_14, %c0_15], %27 {strides = array<i32>} : memref<8x128xf32, #tpu.memory_space<vmem>>, vector<8x128xf32>,
    return
  }
  func.func @transform_0(%arg0: i32) -> (i32, i32, i32) {
    %c0_i32 = arith.constant 0 : i32
    %c0_i32_0 = arith.constant 0 : i32
    %c0_i32_1 = arith.constant 0 : i32
    return %arg0, %c0_i32, %c0_i32_0 : i32, i32, i32
  }
  func.func @transform_1(%arg0: i32) -> (i32, i32, i32) {
    %c0_i32 = arith.constant 0 : i32
    %c0_i32_0 = arith.constant 0 : i32
    %c0_i32_1 = arith.constant 0 : i32
    %c0_i32_2 = arith.constant 0 : i32
    return %c0_i32, %c0_i32_0, %c0_i32_1 : i32, i32, i32
  }
  func.func @transform_2(%arg0: i32) -> (i32, i32, i32) {
    %c0_i32 = arith.constant 0 : i32
    %c0_i32_0 = arith.constant 0 : i32
    %c0_i32_1 = arith.constant 0 : i32
    %c0_i32_2 = arith.constant 0 : i32
    return %c0_i32, %c0_i32_0, %c0_i32_1 : i32, i32, i32
  }
  func.func @transform_3(%arg0: i32) -> (i32, i32) {
    %c0_i32 = arith.constant 0 : i32
    %c0_i32_0 = arith.constant 0 : i32
    return %arg0, %c0_i32 : i32, i32
  }
}

module attributes {stable_mosaic.version = 11 : i64} {
  func.func @_matmul_kernel(%arg0: i32, %arg1: i32, %arg2: i32, %arg3: memref<8x132xbf16, #tpu.memory_space<vmem>>, %arg4: memref<132x16xbf16, #tpu.memory_space<vmem>>, %arg5: memref<1x16xf32, #tpu.memory_space<vmem>>, %arg6: memref<8x16xf32, #tpu.memory_space<vmem>>, %arg7: memref<8x16xf32, #tpu.memory_space<vmem>>) attributes {dimension_semantics = [#tpu.dimension_semantics<parallel>, #tpu.dimension_semantics<parallel>, #tpu.dimension_semantics<arbitrary>], iteration_bounds = array<i64: 1, 1, 1>, scalar_prefetch = 0 : i64, scratch_operands = 1 : i64, tpu.core_type = #tpu.core_type<tc>, window_params = [{transform_indices = @transform_0, window_bounds = array<i64: 8, 132>}, {transform_indices = @transform_1, window_bounds = array<i64: 132, 16>}, {transform_indices = @transform_2, window_bounds = array<i64: 1, 16>}, {transform_indices = @transform_3, window_bounds = array<i64: 8, 16>}]} {
    %c0_i32 = arith.constant 0 : i32
    %0 = arith.cmpi eq, %arg2, %c0_i32 : i32
    %1 = arith.extui %0 : i1 to i32
    %c0_i32_0 = arith.constant 0 : i32
    %2 = arith.cmpi ne, %1, %c0_i32_0 : i32
    scf.if %2 {
      %cst_10 = arith.constant 0.000000e+00 : f32
      %12 = vector.broadcast %cst_10 : f32 to vector<8x16xf32>
      %c0_11 = arith.constant 0 : index
      %c0_12 = arith.constant 0 : index
      %13 = vector.load %arg7[%c0_11, %c0_12] : memref<8x16xf32, #tpu.memory_space<vmem>>, vector<8x16xf32>
      tpu.vector_store %arg7[%c0_11, %c0_12], %12 {strides = array<i32>} : memref<8x16xf32, #tpu.memory_space<vmem>>, vector<8x16xf32>,
    } else {
    }
    %c0 = arith.constant 0 : index
    %c0_1 = arith.constant 0 : index
    %3 = vector.load %arg7[%c0, %c0_1] : memref<8x16xf32, #tpu.memory_space<vmem>>, vector<8x16xf32>
    %c0_2 = arith.constant 0 : index
    %c0_3 = arith.constant 0 : index
    %4 = vector.load %arg3[%c0_2, %c0_3] : memref<8x132xbf16, #tpu.memory_space<vmem>>, vector<8x132xbf16>
    %c0_4 = arith.constant 0 : index
    %c0_5 = arith.constant 0 : index
    %5 = vector.load %arg4[%c0_4, %c0_5] : memref<132x16xbf16, #tpu.memory_space<vmem>>, vector<132x16xbf16>
    %cst = arith.constant dense<0.000000e+00> : vector<8x16xf32>
    %6 = tpu.matmul %4, %5, %cst {dimension_numbers = #tpu.dot_dimension_numbers<[1], [0], [0], [1], [0, 0, 1, 1], [], []>} : vector<8x132xbf16>, vector<132x16xbf16>, vector<8x16xf32> -> vector<8x16xf32>
    %7 = arith.addf %3, %6 : vector<8x16xf32>
    %c0_6 = arith.constant 0 : index
    %c0_7 = arith.constant 0 : index
    %8 = vector.load %arg7[%c0_6, %c0_7] : memref<8x16xf32, #tpu.memory_space<vmem>>, vector<8x16xf32>
    tpu.vector_store %arg7[%c0_6, %c0_7], %7 {strides = array<i32>} : memref<8x16xf32, #tpu.memory_space<vmem>>, vector<8x16xf32>,
    %c0_i32_8 = arith.constant 0 : i32
    %9 = arith.cmpi eq, %arg2, %c0_i32_8 : i32
    %10 = arith.extui %9 : i1 to i32
    %c0_i32_9 = arith.constant 0 : i32
    %11 = arith.cmpi ne, %10, %c0_i32_9 : i32
    scf.if %11 {
      %c0_10 = arith.constant 0 : index
      %c0_11 = arith.constant 0 : index
      %12 = vector.load %arg7[%c0_10, %c0_11] : memref<8x16xf32, #tpu.memory_space<vmem>>, vector<8x16xf32>
      %c0_12 = arith.constant 0 : index
      %c0_13 = arith.constant 0 : index
      %13 = vector.load %arg5[%c0_12, %c0_13] : memref<1x16xf32, #tpu.memory_space<vmem>>, vector<1x16xf32>
      %14 = vector.broadcast %13 : vector<1x16xf32> to vector<8x16xf32>
      %15 = arith.addf %12, %14 : vector<8x16xf32>
      %cst_14 = arith.constant 0.000000e+00 : f32
      %16 = vector.broadcast %cst_14 : f32 to vector<8x16xf32>
      %17 = arith.maximumf %15, %16 : vector<8x16xf32>
      %c0_15 = arith.constant 0 : index
      %c0_16 = arith.constant 0 : index
      %18 = vector.load %arg6[%c0_15, %c0_16] : memref<8x16xf32, #tpu.memory_space<vmem>>, vector<8x16xf32>
      tpu.vector_store %arg6[%c0_15, %c0_16], %17 {strides = array<i32>} : memref<8x16xf32, #tpu.memory_space<vmem>>, vector<8x16xf32>,
    } else {
    }
    return
  }
  func.func @transform_0(%arg0: i32, %arg1: i32, %arg2: i32) -> (i32, i32) {
    %c0_i32 = arith.constant 0 : i32
    return %arg0, %arg2 : i32, i32
  }
  func.func @transform_1(%arg0: i32, %arg1: i32, %arg2: i32) -> (i32, i32) {
    %c0_i32 = arith.constant 0 : i32
    return %arg2, %arg1 : i32, i32
  }
  func.func @transform_2(%arg0: i32, %arg1: i32, %arg2: i32) -> (i32, i32) {
    %c0_i32 = arith.constant 0 : i32
    %c0_i32_0 = arith.constant 0 : i32
    return %c0_i32, %arg1 : i32, i32
  }
  func.func @transform_3(%arg0: i32, %arg1: i32, %arg2: i32) -> (i32, i32) {
    %c0_i32 = arith.constant 0 : i32
    return %arg0, %arg1 : i32, i32
  }
}

module attributes {stable_mosaic.version = 11 : i64} {
  func.func @_matmul_kernel(%arg0: i32, %arg1: i32, %arg2: i32, %arg3: memref<8x16xbf16, #tpu.memory_space<vmem>>, %arg4: memref<16x16xbf16, #tpu.memory_space<vmem>>, %arg5: memref<1x16xf32, #tpu.memory_space<vmem>>, %arg6: memref<8x16xf32, #tpu.memory_space<vmem>>, %arg7: memref<8x16xf32, #tpu.memory_space<vmem>>) attributes {dimension_semantics = [#tpu.dimension_semantics<parallel>, #tpu.dimension_semantics<parallel>, #tpu.dimension_semantics<arbitrary>], iteration_bounds = array<i64: 1, 1, 1>, scalar_prefetch = 0 : i64, scratch_operands = 1 : i64, tpu.core_type = #tpu.core_type<tc>, window_params = [{transform_indices = @transform_0, window_bounds = array<i64: 8, 16>}, {transform_indices = @transform_1, window_bounds = array<i64: 16, 16>}, {transform_indices = @transform_2, window_bounds = array<i64: 1, 16>}, {transform_indices = @transform_3, window_bounds = array<i64: 8, 16>}]} {
    %c0_i32 = arith.constant 0 : i32
    %0 = arith.cmpi eq, %arg2, %c0_i32 : i32
    %1 = arith.extui %0 : i1 to i32
    %c0_i32_0 = arith.constant 0 : i32
    %2 = arith.cmpi ne, %1, %c0_i32_0 : i32
    scf.if %2 {
      %cst_10 = arith.constant 0.000000e+00 : f32
      %12 = vector.broadcast %cst_10 : f32 to vector<8x16xf32>
      %c0_11 = arith.constant 0 : index
      %c0_12 = arith.constant 0 : index
      %13 = vector.load %arg7[%c0_11, %c0_12] : memref<8x16xf32, #tpu.memory_space<vmem>>, vector<8x16xf32>
      tpu.vector_store %arg7[%c0_11, %c0_12], %12 {strides = array<i32>} : memref<8x16xf32, #tpu.memory_space<vmem>>, vector<8x16xf32>,
    } else {
    }
    %c0 = arith.constant 0 : index
    %c0_1 = arith.constant 0 : index
    %3 = vector.load %arg7[%c0, %c0_1] : memref<8x16xf32, #tpu.memory_space<vmem>>, vector<8x16xf32>
    %c0_2 = arith.constant 0 : index
    %c0_3 = arith.constant 0 : index
    %4 = vector.load %arg3[%c0_2, %c0_3] : memref<8x16xbf16, #tpu.memory_space<vmem>>, vector<8x16xbf16>
    %c0_4 = arith.constant 0 : index
    %c0_5 = arith.constant 0 : index
    %5 = vector.load %arg4[%c0_4, %c0_5] : memref<16x16xbf16, #tpu.memory_space<vmem>>, vector<16x16xbf16>
    %cst = arith.constant dense<0.000000e+00> : vector<8x16xf32>
    %6 = tpu.matmul %4, %5, %cst {dimension_numbers = #tpu.dot_dimension_numbers<[1], [0], [0], [1], [0, 0, 1, 1], [], []>} : vector<8x16xbf16>, vector<16x16xbf16>, vector<8x16xf32> -> vector<8x16xf32>
    %7 = arith.addf %3, %6 : vector<8x16xf32>
    %c0_6 = arith.constant 0 : index
    %c0_7 = arith.constant 0 : index
    %8 = vector.load %arg7[%c0_6, %c0_7] : memref<8x16xf32, #tpu.memory_space<vmem>>, vector<8x16xf32>
    tpu.vector_store %arg7[%c0_6, %c0_7], %7 {strides = array<i32>} : memref<8x16xf32, #tpu.memory_space<vmem>>, vector<8x16xf32>,
    %c0_i32_8 = arith.constant 0 : i32
    %9 = arith.cmpi eq, %arg2, %c0_i32_8 : i32
    %10 = arith.extui %9 : i1 to i32
    %c0_i32_9 = arith.constant 0 : i32
    %11 = arith.cmpi ne, %10, %c0_i32_9 : i32
    scf.if %11 {
      %c0_10 = arith.constant 0 : index
      %c0_11 = arith.constant 0 : index
      %12 = vector.load %arg7[%c0_10, %c0_11] : memref<8x16xf32, #tpu.memory_space<vmem>>, vector<8x16xf32>
      %c0_12 = arith.constant 0 : index
      %c0_13 = arith.constant 0 : index
      %13 = vector.load %arg5[%c0_12, %c0_13] : memref<1x16xf32, #tpu.memory_space<vmem>>, vector<1x16xf32>
      %14 = vector.broadcast %13 : vector<1x16xf32> to vector<8x16xf32>
      %15 = arith.addf %12, %14 : vector<8x16xf32>
      %c0_14 = arith.constant 0 : index
      %c0_15 = arith.constant 0 : index
      %16 = vector.load %arg6[%c0_14, %c0_15] : memref<8x16xf32, #tpu.memory_space<vmem>>, vector<8x16xf32>
      tpu.vector_store %arg6[%c0_14, %c0_15], %15 {strides = array<i32>} : memref<8x16xf32, #tpu.memory_space<vmem>>, vector<8x16xf32>,
    } else {
    }
    return
  }
  func.func @transform_0(%arg0: i32, %arg1: i32, %arg2: i32) -> (i32, i32) {
    %c0_i32 = arith.constant 0 : i32
    return %arg0, %arg2 : i32, i32
  }
  func.func @transform_1(%arg0: i32, %arg1: i32, %arg2: i32) -> (i32, i32) {
    %c0_i32 = arith.constant 0 : i32
    return %arg2, %arg1 : i32, i32
  }
  func.func @transform_2(%arg0: i32, %arg1: i32, %arg2: i32) -> (i32, i32) {
    %c0_i32 = arith.constant 0 : i32
    %c0_i32_0 = arith.constant 0 : i32
    return %c0_i32, %arg1 : i32, i32
  }
  func.func @transform_3(%arg0: i32, %arg1: i32, %arg2: i32) -> (i32, i32) {
    %c0_i32 = arith.constant 0 : i32
    return %arg0, %arg1 : i32, i32
  }
}

module attributes {stable_mosaic.version = 11 : i64} {
  func.func @_cam_fuse_kernel(%arg0: i32, %arg1: memref<2x4x16xf32, #tpu.memory_space<vmem>>, %arg2: memref<4x16xf32, #tpu.memory_space<vmem>>, %arg3: memref<2x16xf32, #tpu.memory_space<vmem>>) attributes {dimension_semantics = [#tpu.dimension_semantics<arbitrary>], iteration_bounds = array<i64: 1>, scalar_prefetch = 0 : i64, scratch_operands = 0 : i64, tpu.core_type = #tpu.core_type<tc>, window_params = [{pipeline_mode = #tpu.pipeline_mode<synchronous>, transform_indices = @transform_0, window_bounds = array<i64: 2, 4, 16>}, {pipeline_mode = #tpu.pipeline_mode<synchronous>, transform_indices = @transform_1, window_bounds = array<i64: 4, 16>}, {pipeline_mode = #tpu.pipeline_mode<synchronous>, transform_indices = @transform_2, window_bounds = array<i64: 2, 16>}]} {
    %c0 = arith.constant 0 : index
    %c0_0 = arith.constant 0 : index
    %c0_1 = arith.constant 0 : index
    %0 = vector.load %arg1[%c0, %c0_0, %c0_1] : memref<2x4x16xf32, #tpu.memory_space<vmem>>, vector<2x4x16xf32>
    %c0_2 = arith.constant 0 : index
    %c0_3 = arith.constant 0 : index
    %1 = vector.load %arg2[%c0_2, %c0_3] : memref<4x16xf32, #tpu.memory_space<vmem>>, vector<4x16xf32>
    %2 = vector.shape_cast %1 : vector<4x16xf32> to vector<1x4x16xf32>
    %3 = vector.broadcast %2 : vector<1x4x16xf32> to vector<2x4x16xf32>
    %4 = arith.mulf %0, %3 : vector<2x4x16xf32>
    %cst = arith.constant dense<0.000000e+00> : vector<2x4xf32>
    %5 = vector.multi_reduction <add>, %4, %cst [2] : vector<2x4x16xf32> to vector<2x4xf32>
    %6 = vector.shape_cast %5 : vector<2x4xf32> to vector<2x4x1xf32>
    %7 = vector.broadcast %6 : vector<2x4x1xf32> to vector<2x4x16xf32>
    %8 = arith.mulf %7, %0 : vector<2x4x16xf32>
    %cst_4 = arith.constant dense<0.000000e+00> : vector<2x16xf32>
    %9 = vector.multi_reduction <add>, %8, %cst_4 [1] : vector<2x4x16xf32> to vector<2x16xf32>
    %c0_5 = arith.constant 0 : index
    %c0_6 = arith.constant 0 : index
    %10 = vector.load %arg3[%c0_5, %c0_6] : memref<2x16xf32, #tpu.memory_space<vmem>>, vector<2x16xf32>
    tpu.vector_store %arg3[%c0_5, %c0_6], %9 {strides = array<i32>} : memref<2x16xf32, #tpu.memory_space<vmem>>, vector<2x16xf32>,
    return
  }
  func.func @transform_0(%arg0: i32) -> (i32, i32, i32) {
    %c0_i32 = arith.constant 0 : i32
    %c0_i32_0 = arith.constant 0 : i32
    %c0_i32_1 = arith.constant 0 : i32
    %c0_i32_2 = arith.constant 0 : i32
    return %c0_i32, %c0_i32_0, %c0_i32_1 : i32, i32, i32
  }
  func.func @transform_1(%arg0: i32) -> (i32, i32) {
    %c0_i32 = arith.constant 0 : i32
    %c0_i32_0 = arith.constant 0 : i32
    %c0_i32_1 = arith.constant 0 : i32
    return %c0_i32, %c0_i32_0 : i32, i32
  }
  func.func @transform_2(%arg0: i32) -> (i32, i32) {
    %c0_i32 = arith.constant 0 : i32
    %c0_i32_0 = arith.constant 0 : i32
    %c0_i32_1 = arith.constant 0 : i32
    return %c0_i32, %c0_i32_0 : i32, i32
  }
}

module attributes {stable_mosaic.version = 11 : i64} {
  func.func @_matmul_kernel(%arg0: i32, %arg1: i32, %arg2: i32, %arg3: memref<2x34xbf16, #tpu.memory_space<vmem>>, %arg4: memref<34x16xbf16, #tpu.memory_space<vmem>>, %arg5: memref<1x16xf32, #tpu.memory_space<vmem>>, %arg6: memref<2x16xf32, #tpu.memory_space<vmem>>, %arg7: memref<2x16xf32, #tpu.memory_space<vmem>>) attributes {dimension_semantics = [#tpu.dimension_semantics<parallel>, #tpu.dimension_semantics<parallel>, #tpu.dimension_semantics<arbitrary>], iteration_bounds = array<i64: 1, 1, 1>, scalar_prefetch = 0 : i64, scratch_operands = 1 : i64, tpu.core_type = #tpu.core_type<tc>, window_params = [{transform_indices = @transform_0, window_bounds = array<i64: 2, 34>}, {transform_indices = @transform_1, window_bounds = array<i64: 34, 16>}, {transform_indices = @transform_2, window_bounds = array<i64: 1, 16>}, {transform_indices = @transform_3, window_bounds = array<i64: 2, 16>}]} {
    %c0_i32 = arith.constant 0 : i32
    %0 = arith.cmpi eq, %arg2, %c0_i32 : i32
    %1 = arith.extui %0 : i1 to i32
    %c0_i32_0 = arith.constant 0 : i32
    %2 = arith.cmpi ne, %1, %c0_i32_0 : i32
    scf.if %2 {
      %cst_10 = arith.constant 0.000000e+00 : f32
      %12 = vector.broadcast %cst_10 : f32 to vector<2x16xf32>
      %c0_11 = arith.constant 0 : index
      %c0_12 = arith.constant 0 : index
      %13 = vector.load %arg7[%c0_11, %c0_12] : memref<2x16xf32, #tpu.memory_space<vmem>>, vector<2x16xf32>
      tpu.vector_store %arg7[%c0_11, %c0_12], %12 {strides = array<i32>} : memref<2x16xf32, #tpu.memory_space<vmem>>, vector<2x16xf32>,
    } else {
    }
    %c0 = arith.constant 0 : index
    %c0_1 = arith.constant 0 : index
    %3 = vector.load %arg7[%c0, %c0_1] : memref<2x16xf32, #tpu.memory_space<vmem>>, vector<2x16xf32>
    %c0_2 = arith.constant 0 : index
    %c0_3 = arith.constant 0 : index
    %4 = vector.load %arg3[%c0_2, %c0_3] : memref<2x34xbf16, #tpu.memory_space<vmem>>, vector<2x34xbf16>
    %c0_4 = arith.constant 0 : index
    %c0_5 = arith.constant 0 : index
    %5 = vector.load %arg4[%c0_4, %c0_5] : memref<34x16xbf16, #tpu.memory_space<vmem>>, vector<34x16xbf16>
    %cst = arith.constant dense<0.000000e+00> : vector<2x16xf32>
    %6 = tpu.matmul %4, %5, %cst {dimension_numbers = #tpu.dot_dimension_numbers<[1], [0], [0], [1], [0, 0, 1, 1], [], []>} : vector<2x34xbf16>, vector<34x16xbf16>, vector<2x16xf32> -> vector<2x16xf32>
    %7 = arith.addf %3, %6 : vector<2x16xf32>
    %c0_6 = arith.constant 0 : index
    %c0_7 = arith.constant 0 : index
    %8 = vector.load %arg7[%c0_6, %c0_7] : memref<2x16xf32, #tpu.memory_space<vmem>>, vector<2x16xf32>
    tpu.vector_store %arg7[%c0_6, %c0_7], %7 {strides = array<i32>} : memref<2x16xf32, #tpu.memory_space<vmem>>, vector<2x16xf32>,
    %c0_i32_8 = arith.constant 0 : i32
    %9 = arith.cmpi eq, %arg2, %c0_i32_8 : i32
    %10 = arith.extui %9 : i1 to i32
    %c0_i32_9 = arith.constant 0 : i32
    %11 = arith.cmpi ne, %10, %c0_i32_9 : i32
    scf.if %11 {
      %c0_10 = arith.constant 0 : index
      %c0_11 = arith.constant 0 : index
      %12 = vector.load %arg7[%c0_10, %c0_11] : memref<2x16xf32, #tpu.memory_space<vmem>>, vector<2x16xf32>
      %c0_12 = arith.constant 0 : index
      %c0_13 = arith.constant 0 : index
      %13 = vector.load %arg5[%c0_12, %c0_13] : memref<1x16xf32, #tpu.memory_space<vmem>>, vector<1x16xf32>
      %14 = vector.broadcast %13 : vector<1x16xf32> to vector<2x16xf32>
      %15 = arith.addf %12, %14 : vector<2x16xf32>
      %c0_14 = arith.constant 0 : index
      %c0_15 = arith.constant 0 : index
      %16 = vector.load %arg6[%c0_14, %c0_15] : memref<2x16xf32, #tpu.memory_space<vmem>>, vector<2x16xf32>
      tpu.vector_store %arg6[%c0_14, %c0_15], %15 {strides = array<i32>} : memref<2x16xf32, #tpu.memory_space<vmem>>, vector<2x16xf32>,
    } else {
    }
    return
  }
  func.func @transform_0(%arg0: i32, %arg1: i32, %arg2: i32) -> (i32, i32) {
    %c0_i32 = arith.constant 0 : i32
    return %arg0, %arg2 : i32, i32
  }
  func.func @transform_1(%arg0: i32, %arg1: i32, %arg2: i32) -> (i32, i32) {
    %c0_i32 = arith.constant 0 : i32
    return %arg2, %arg1 : i32, i32
  }
  func.func @transform_2(%arg0: i32, %arg1: i32, %arg2: i32) -> (i32, i32) {
    %c0_i32 = arith.constant 0 : i32
    %c0_i32_0 = arith.constant 0 : i32
    return %c0_i32, %arg1 : i32, i32
  }
  func.func @transform_3(%arg0: i32, %arg1: i32, %arg2: i32) -> (i32, i32) {
    %c0_i32 = arith.constant 0 : i32
    return %arg0, %arg1 : i32, i32
  }
}

</mosaic_0001>

<llo_original>
// kernel: vit_encoder_forward.12
$region0: #{vit_encoder_forward.12}
  #allocation0 [shape = 'u32[]', space=smem, size = 0x4, offset = 0x4, fixed_abs, tag = 'smem constant byte address 0x4 - core index']
  #allocation1 [shape = 'u32[144,128]{1,0:T(1,128)}', space=vmem, size = 0x12000, scoped, tag = 'internal scratch']
  #allocation2 [shape = 'f32[128,128]{1,0:T(8,128)}', space=vmem, size = 0x10000, scoped, tag = 'scratch operand']
  %s0 = inlined_call_operand.vmem [shape: bf16[128,48], index: 0, kind: input, shape index: {}]
  %s1 = inlined_call_operand.vmem [shape: bf16[48,128], index: 1, kind: input, shape index: {}]
  %s2 = inlined_call_operand.vmem [shape: f32[1,128], index: 2, kind: input, shape index: {}]
  %s3 = inlined_call_operand.vmem [shape: f32[128,128], index: 3, kind: output, shape index: {}]
  %s4 = sld [smem:[#allocation0]]
  $region30: #{vit_encoder_forward.12} parent=0
    _
  %s6 = ssub.s32 1, %s4
  %s7 = scalar_select 0, %s6, %s4
  // Predicated region
  $region2: #{vit_encoder_forward.12} parent=0 // pred_check
    _
  $region3: #{vit_encoder_forward.12} parent=0 // pred_check_branch
    %9 = sbr.rel (0) target = $region5
  $region4: #{vit_encoder_forward.12} parent=0 // pred_region
    _
  $region5: #{vit_encoder_forward.12} parent=0 // pred_fallthru
    _
  // Predicated region
  $region6: #{vit_encoder_forward.12} parent=0 // pred_check
    _
  $region7: #{vit_encoder_forward.12} parent=0 // pred_check_branch
    %11 = sbr.rel (0) target = $region9
  $region8: #{vit_encoder_forward.12} parent=0 // pred_region
    _
  $region9: #{vit_encoder_forward.12} parent=0 // pred_fallthru
    _
  // Predicated region
  $region10: #{vit_encoder_forward.12} parent=0 // pred_check
    _
  $region11: #{vit_encoder_forward.12} parent=0 // pred_check_branch
    %13 = sbr.rel (0) target = $region13
  $region12: #{vit_encoder_forward.12} parent=0 // pred_region
    _
  $region13: #{vit_encoder_forward.12} parent=0 // pred_fallthru
    _
  %p15 = scmp.eq.s32.totalorder 0, 0
  // Predicated region
  $region14: #{vit_encoder_forward.12} parent=0 // pred_check
    %p16 = pneg %p15
  $region15: #{vit_encoder_forward.12} parent=0 // pred_check_branch
    %18 = sbr.rel (%p16) target = $region17
  $region16: #{vit_encoder_forward.12} parent=0 // pred_region
    %19 = vst [vmem:[#allocation2] sm:$0xff] 0.0
    %20 = vst [vmem:[#allocation2 + $0x8] sm:$0xff] 0.0
    %21 = vst [vmem:[#allocation2 + $0x10] sm:$0xff] 0.0
    %22 = vst [vmem:[#allocation2 + $0x18] sm:$0xff] 0.0
    %23 = vst [vmem:[#allocation2 + $0x20] sm:$0xff] 0.0
    %24 = vst [vmem:[#allocation2 + $0x28] sm:$0xff] 0.0
    %25 = vst [vmem:[#allocation2 + $0x30] sm:$0xff] 0.0
    %26 = vst [vmem:[#allocation2 + $0x38] sm:$0xff] 0.0
    %27 = vst [vmem:[#allocation2 + $0x40] sm:$0xff] 0.0
    %28 = vst [vmem:[#allocation2 + $0x48] sm:$0xff] 0.0
    %29 = vst [vmem:[#allocation2 + $0x50] sm:$0xff] 0.0
    %30 = vst [vmem:[#allocation2 + $0x58] sm:$0xff] 0.0
    %31 = vst [vmem:[#allocation2 + $0x60] sm:$0xff] 0.0
    %32 = vst [vmem:[#allocation2 + $0x68] sm:$0xff] 0.0
    %33 = vst [vmem:[#allocation2 + $0x70] sm:$0xff] 0.0
    %34 = vst [vmem:[#allocation2 + $0x78] sm:$0xff] 0.0
  $region17: #{vit_encoder_forward.12} parent=0 // pred_fallthru
    _
  %v35 = vld [vmem:[#allocation2] sm:$0xff]
  %v36 = vld [vmem:[#allocation2 + $0x8] sm:$0xff]
  %v37 = vld [vmem:[#allocation2 + $0x10] sm:$0xff]
  %v38 = vld [vmem:[#allocation2 + $0x18] sm:$0xff]
  %v39 = vld [vmem:[#allocation2 + $0x20] sm:$0xff]
  %v40 = vld [vmem:[#allocation2 + $0x28] sm:$0xff]
  %v41 = vld [vmem:[#allocation2 + $0x30] sm:$0xff]
  %v42 = vld [vmem:[#allocation2 + $0x38] sm:$0xff]
  %v43 = vld [vmem:[#allocation2 + $0x40] sm:$0xff]
  %v44 = vld [vmem:[#allocation2 + $0x48] sm:$0xff]
  %v45 = vld [vmem:[#allocation2 + $0x50] sm:$0xff]
  %v46 = vld [vmem:[#allocation2 + $0x58] sm:$0xff]
  %v47 = vld [vmem:[#allocation2 + $0x60] sm:$0xff]
  %v48 = vld [vmem:[#allocation2 + $0x68] sm:$0xff]
  %v49 = vld [vmem:[#allocation2 + $0x70] sm:$0xff]
  %v50 = vld [vmem:[#allocation2 + $0x78] sm:$0xff]
  %v51 = vld [vmem:[%s0] sm:$0xf]
  %v52 = vld [vmem:[%s0 + $0x4] sm:$0xf]
  %v53 = vld [vmem:[%s0 + $0x8] sm:$0xf]
  %v54 = vld [vmem:[%s0 + $0xc] sm:$0xf]
  %v55 = vld [vmem:[%s0 + $0x10] sm:$0xf]
  %v56 = vld [vmem:[%s0 + $0x14] sm:$0xf]
  %v57 = vld [vmem:[%s0 + $0x18] sm:$0xf]
  %v58 = vld [vmem:[%s0 + $0x1c] sm:$0xf]
  %v59 = vld [vmem:[%s0 + $0x20] sm:$0xf]
  %v60 = vld [vmem:[%s0 + $0x24] sm:$0xf]
  %v61 = vld [vmem:[%s0 + $0x28] sm:$0xf]
  %v62 = vld [vmem:[%s0 + $0x2c] sm:$0xf]
  %v63 = vld [vmem:[%s0 + $0x30] sm:$0xf]
  %v64 = vld [vmem:[%s0 + $0x34] sm:$0xf]
  %v65 = vld [vmem:[%s0 + $0x38] sm:$0xf]
  %v66 = vld [vmem:[%s0 + $0x3c] sm:$0xf]
  %v67 = vld [vmem:[%s1] sm:$0xf]
  %v68 = vld [vmem:[%s1 + $0x4] sm:$0xf]
  %v69 = vld [vmem:[%s1 + $0x8] sm:$0xf]
  %v70 = vld [vmem:[%s1 + $0xc] sm:$0xf]
  %v71 = vld [vmem:[%s1 + $0x10] sm:$0xf]
  %v72 = vld [vmem:[%s1 + $0x14] sm:$0xf]
  %v89 = vunpack.c.l.b16 %v51
  %v90 = vunpack.c.l.b16 %v52
  %v91 = vunpack.c.l.b16 %v53
  %v92 = vunpack.c.l.b16 %v54
  %v93 = vunpack.c.l.b16 %v55
  %v94 = vunpack.c.l.b16 %v56
  %v95 = vunpack.c.l.b16 %v57
  %v96 = vunpack.c.l.b16 %v58
  %v97 = vunpack.c.l.b16 %v59
  %v98 = vunpack.c.l.b16 %v60
  %v99 = vunpack.c.l.b16 %v61
  %v100 = vunpack.c.l.b16 %v62
  %v101 = vunpack.c.l.b16 %v63
  %v102 = vunpack.c.l.b16 %v64
  %v103 = vunpack.c.l.b16 %v65
  %v104 = vunpack.c.l.b16 %v66
  %v105 = vpack.c.b16 %v90, %v89
  %v106 = vpack.c.b16 %v92, %v91
  %v107 = vpack.c.b16 %v94, %v93
  %v108 = vpack.c.b16 %v96, %v95
  %v109 = vpack.c.b16 %v98, %v97
  %v110 = vpack.c.b16 %v100, %v99
  %v111 = vpack.c.b16 %v102, %v101
  %v112 = vpack.c.b16 %v104, %v103
  %v119 = vunpack.c.l.b16 %v67
  %v120 = vunpack.c.l.b16 %v68
  %v121 = vunpack.c.l.b16 %v69
  %v122 = vunpack.c.l.b16 %v70
  %v123 = vunpack.c.l.b16 %v71
  %v124 = vunpack.c.l.b16 %v72
  %v125 = vpack.c.b16 %v120, %v119
  %v126 = vpack.c.b16 %v122, %v121
  %v127 = vpack.c.b16 %v124, %v123
  %vm131 = vcmask 392192
  %v133 = vsel %vm131, %v105, 0
  %v136 = vsel %vm131, %v106, 0
  %v139 = vsel %vm131, %v107, 0
  %v142 = vsel %vm131, %v108, 0
  %v145 = vsel %vm131, %v109, 0
  %v148 = vsel %vm131, %v110, 0
  %v151 = vsel %vm131, %v111, 0
  %v154 = vsel %vm131, %v112, 0
  %156 = vmatprep.subr.bf16.mxu0 0
  %157 = vmatpush1.bf16.msra.mxu0 0
  %158 = vmatprep.subr.bf16.mxu0 0
  %159 = vmatpush1.bf16.msra.mxu0 0
  %160 = vmatprep.subr.bf16.mxu0 0
  %161 = vmatpush1.bf16.msra.mxu0 0
  %162 = vmatprep.subr.bf16.mxu0 0
  %163 = vmatpush1.bf16.msra.mxu0 0
  %164 = vmatprep.subr.bf16.mxu0 0
  %165 = vmatpush1.bf16.msra.mxu0 0
  %166 = vmatprep.subr.bf16.mxu0 0
  %167 = vmatpush1.bf16.msra.mxu0 %v127
  %168 = vmatprep.subr.bf16.mxu0 0
  %169 = vmatpush1.bf16.msra.mxu0 %v126
  %170 = vmatprep.subr.bf16.mxu0 0
  %171 = vmatpush1.bf16.msra.mxu0 %v125
  %172 = vmatprep.subr.bf16.mxu0 0
  %173 = vmatpush2.bf16.msra.mxu0 0
  %174 = vmatprep.subr.bf16.mxu0 0
  %175 = vmatpush2.bf16.msra.mxu0 0
  %176 = vmatprep.subr.bf16.mxu0 0
  %177 = vmatpush2.bf16.msra.mxu0 0
  %178 = vmatprep.subr.bf16.mxu0 0
  %179 = vmatpush2.bf16.msra.mxu0 0
  %180 = vmatprep.subr.bf16.mxu0 0
  %181 = vmatpush2.bf16.msra.mxu0 0
  %182 = vmatprep.subr.bf16.mxu0 0
  %183 = vmatpush2.bf16.msra.mxu0 0
  %184 = vmatprep.subr.bf16.mxu0 0
  %185 = vmatpush2.bf16.msra.mxu0 0
  %186 = vmatprep.subr.bf16.mxu0 0
  %187 = vmatpush2.bf16.msra.mxu0 0
  %188 = vmatprep.mubr.bf16.mxu0 0
  %189 = vmatmul.mubr.bf16.gmra.mxu0 %v133
  %v190 = vpop.f32.mrf.mxu0
  %v191 = vadd.f32 0.0, %v190
  %v192 = vpop.f32.mrf.mxu0
  %v193 = vpop.f32.mrf.mxu0
  %v194 = vadd.f32 0.0, %v193
  %v195 = vpop.f32.mrf.mxu0
  %196 = vmatprep.mubr.bf16.mxu0 0
  %197 = vmatmul.mubr.bf16.gmra.mxu0 %v136
  %v198 = vpop.f32.mrf.mxu0
  %v199 = vadd.f32 0.0, %v198
  %v200 = vpop.f32.mrf.mxu0
  %v201 = vpop.f32.mrf.mxu0
  %v202 = vadd.f32 0.0, %v201
  %v203 = vpop.f32.mrf.mxu0
  %204 = vmatprep.mubr.bf16.mxu0 0
  %205 = vmatmul.mubr.bf16.gmra.mxu0 %v139
  %v206 = vpop.f32.mrf.mxu0
  %v207 = vadd.f32 0.0, %v206
  %v208 = vpop.f32.mrf.mxu0
  %v209 = vpop.f32.mrf.mxu0
  %v210 = vadd.f32 0.0, %v209
  %v211 = vpop.f32.mrf.mxu0
  %212 = vmatprep.mubr.bf16.mxu0 0
  %213 = vmatmul.mubr.bf16.gmra.mxu0 %v142
  %v214 = vpop.f32.mrf.mxu0
  %v215 = vadd.f32 0.0, %v214
  %v216 = vpop.f32.mrf.mxu0
  %v217 = vpop.f32.mrf.mxu0
  %v218 = vadd.f32 0.0, %v217
  %v219 = vpop.f32.mrf.mxu0
  %220 = vmatprep.mubr.bf16.mxu0 0
  %221 = vmatmul.mubr.bf16.gmra.mxu0 %v145
  %v222 = vpop.f32.mrf.mxu0
  %v223 = vadd.f32 0.0, %v222
  %v224 = vpop.f32.mrf.mxu0
  %v225 = vpop.f32.mrf.mxu0
  %v226 = vadd.f32 0.0, %v225
  %v227 = vpop.f32.mrf.mxu0
  %228 = vmatprep.mubr.bf16.mxu0 0
  %229 = vmatmul.mubr.bf16.gmra.mxu0 %v148
  %v230 = vpop.f32.mrf.mxu0
  %v231 = vadd.f32 0.0, %v230
  %v232 = vpop.f32.mrf.mxu0
  %v233 = vpop.f32.mrf.mxu0
  %v234 = vadd.f32 0.0, %v233
  %v235 = vpop.f32.mrf.mxu0
  %236 = vmatprep.mubr.bf16.mxu0 0
  %237 = vmatmul.mubr.bf16.gmra.mxu0 %v151
  %v238 = vpop.f32.mrf.mxu0
  %v239 = vadd.f32 0.0, %v238
  %v240 = vpop.f32.mrf.mxu0
  %v241 = vpop.f32.mrf.mxu0
  %v242 = vadd.f32 0.0, %v241
  %v243 = vpop.f32.mrf.mxu0
  %244 = vmatprep.mubr.bf16.mxu0 0
  %245 = vmatmul.mubr.bf16.gmra.mxu0 %v154
  %v246 = vpop.f32.mrf.mxu0
  %v247 = vadd.f32 0.0, %v246
  %v248 = vpop.f32.mrf.mxu0
  %v249 = vpop.f32.mrf.mxu0
  %v250 = vadd.f32 0.0, %v249
  %v251 = vpop.f32.mrf.mxu0
  %252 = vdwg.mxu0
  %v253 = vadd.f32 %v35, %v191
  %v254 = vadd.f32 %v36, %v194
  %v255 = vadd.f32 %v37, %v199
  %v256 = vadd.f32 %v38, %v202
  %v257 = vadd.f32 %v39, %v207
  %v258 = vadd.f32 %v40, %v210
  %v259 = vadd.f32 %v41, %v215
  %v260 = vadd.f32 %v42, %v218
  %v261 = vadd.f32 %v43, %v223
  %v262 = vadd.f32 %v44, %v226
  %v263 = vadd.f32 %v45, %v231
  %v264 = vadd.f32 %v46, %v234
  %v265 = vadd.f32 %v47, %v239
  %v266 = vadd.f32 %v48, %v242
  %v267 = vadd.f32 %v49, %v247
  %v268 = vadd.f32 %v50, %v250
  %269 = vst [vmem:[#allocation2] sm:$0xff] %v253
  %270 = vst [vmem:[#allocation2 + $0x8] sm:$0xff] %v254
  %271 = vst [vmem:[#allocation2 + $0x10] sm:$0xff] %v255
  %272 = vst [vmem:[#allocation2 + $0x18] sm:$0xff] %v256
  %273 = vst [vmem:[#allocation2 + $0x20] sm:$0xff] %v257
  %274 = vst [vmem:[#allocation2 + $0x28] sm:$0xff] %v258
  %275 = vst [vmem:[#allocation2 + $0x30] sm:$0xff] %v259
  %276 = vst [vmem:[#allocation2 + $0x38] sm:$0xff] %v260
  %277 = vst [vmem:[#allocation2 + $0x40] sm:$0xff] %v261
  %278 = vst [vmem:[#allocation2 + $0x48] sm:$0xff] %v262
  %279 = vst [vmem:[#allocation2 + $0x50] sm:$0xff] %v263
  %280 = vst [vmem:[#allocation2 + $0x58] sm:$0xff] %v264
  %281 = vst [vmem:[#allocation2 + $0x60] sm:$0xff] %v265
  %282 = vst [vmem:[#allocation2 + $0x68] sm:$0xff] %v266
  %283 = vst [vmem:[#allocation2 + $0x70] sm:$0xff] %v267
  %284 = vst [vmem:[#allocation2 + $0x78] sm:$0xff] %v268
  // Predicated region
  $region18: #{vit_encoder_forward.12} parent=0 // pred_check
    %p285 = pneg %p15
  $region19: #{vit_encoder_forward.12} parent=0 // pred_check_branch
    %287 = sbr.rel (%p285) target = $region21
  $region20: #{vit_encoder_forward.12} parent=0 // pred_region
    %v288 = vld [vmem:[#allocation2] sm:$0xff]
    %v289 = vld [vmem:[#allocation2 + $0x8] sm:$0xff]
    %v290 = vld [vmem:[#allocation2 + $0x10] sm:$0xff]
    %v291 = vld [vmem:[#allocation2 + $0x18] sm:$0xff]
    %v292 = vld [vmem:[#allocation2 + $0x20] sm:$0xff]
    %v293 = vld [vmem:[#allocation2 + $0x28] sm:$0xff]
    %v294 = vld [vmem:[#allocation2 + $0x30] sm:$0xff]
    %v295 = vld [vmem:[#allocation2 + $0x38] sm:$0xff]
    %v296 = vld [vmem:[#allocation2 + $0x40] sm:$0xff]
    %v297 = vld [vmem:[#allocation2 + $0x48] sm:$0xff]
    %v298 = vld [vmem:[#allocation2 + $0x50] sm:$0xff]
    %v299 = vld [vmem:[#allocation2 + $0x58] sm:$0xff]
    %v300 = vld [vmem:[#allocation2 + $0x60] sm:$0xff]
    %v301 = vld [vmem:[#allocation2 + $0x68] sm:$0xff]
    %v302 = vld [vmem:[#allocation2 + $0x70] sm:$0xff]
    %v303 = vld [vmem:[#allocation2 + $0x78] sm:$0xff]
    %v304 = vld [vmem:[%s2] sm:$0x1]
    %v306 = vlaneseq
    %v307 = vshrl.u32 %v306, 7
    %v308 = vsub.s32 0, %v307
    %v309 = vrot.slane %v304, %v308
    %v311 = vadd.f32 %v288, %v309
    %v312 = vadd.f32 %v289, %v309
    %v313 = vadd.f32 %v290, %v309
    %v314 = vadd.f32 %v291, %v309
    %v315 = vadd.f32 %v292, %v309
    %v316 = vadd.f32 %v293, %v309
    %v317 = vadd.f32 %v294, %v309
    %v318 = vadd.f32 %v295, %v309
    %v319 = vadd.f32 %v296, %v309
    %v320 = vadd.f32 %v297, %v309
    %v321 = vadd.f32 %v298, %v309
    %v322 = vadd.f32 %v299, %v309
    %v323 = vadd.f32 %v300, %v309
    %v324 = vadd.f32 %v301, %v309
    %v325 = vadd.f32 %v302, %v309
    %v326 = vadd.f32 %v303, %v309
    %327 = vst [vmem:[%s3] sm:$0xff] %v311
    %328 = vst [vmem:[%s3 + $0x8] sm:$0xff] %v312
    %329 = vst [vmem:[%s3 + $0x10] sm:$0xff] %v313
    %330 = vst [vmem:[%s3 + $0x18] sm:$0xff] %v314
    %331 = vst [vmem:[%s3 + $0x20] sm:$0xff] %v315
    %332 = vst [vmem:[%s3 + $0x28] sm:$0xff] %v316
    %333 = vst [vmem:[%s3 + $0x30] sm:$0xff] %v317
    %334 = vst [vmem:[%s3 + $0x38] sm:$0xff] %v318
    %335 = vst [vmem:[%s3 + $0x40] sm:$0xff] %v319
    %336 = vst [vmem:[%s3 + $0x48] sm:$0xff] %v320
    %337 = vst [vmem:[%s3 + $0x50] sm:$0xff] %v321
    %338 = vst [vmem:[%s3 + $0x58] sm:$0xff] %v322
    %339 = vst [vmem:[%s3 + $0x60] sm:$0xff] %v323
    %340 = vst [vmem:[%s3 + $0x68] sm:$0xff] %v324
    %341 = vst [vmem:[%s3 + $0x70] sm:$0xff] %v325
    %342 = vst [vmem:[%s3 + $0x78] sm:$0xff] %v326
  $region21: #{vit_encoder_forward.12} parent=0 // pred_fallthru
    _
  // Predicated region
  $region22: #{vit_encoder_forward.12} parent=0 // pred_check
    _
  $region23: #{vit_encoder_forward.12} parent=0 // pred_check_branch
    %344 = sbr.rel (0) target = $region25
  $region24: #{vit_encoder_forward.12} parent=0 // pred_region
    _
  $region25: #{vit_encoder_forward.12} parent=0 // pred_fallthru
    _
  // Predicated region
  $region26: #{vit_encoder_forward.12} parent=0 // pred_check
    _
  $region27: #{vit_encoder_forward.12} parent=0 // pred_check_branch
    %346 = sbr.rel (0) target = $region29
  $region28: #{vit_encoder_forward.12} parent=0 // pred_region
    _
  $region29: #{vit_encoder_forward.12} parent=0 // pred_fallthru
    _

// kernel: vit_encoder_forward.13
$region0: #{vit_encoder_forward.13}
  #allocation0 [shape = 'u32[]', space=smem, size = 0x4, offset = 0x4, fixed_abs, tag = 'smem constant byte address 0x4 - core index']
  #allocation1 [shape = 'u32[144,128]{1,0:T(1,128)}', space=vmem, size = 0x12000, scoped, tag = 'internal scratch']
  %s0 = inlined_call_operand.vmem [shape: f32[136,128], index: 0, kind: input, shape index: {}]
  %s1 = inlined_call_operand.vmem [shape: f32[1,128], index: 1, kind: input, shape index: {}]
  %s2 = inlined_call_operand.vmem [shape: f32[1,128], index: 2, kind: input, shape index: {}]
  %s3 = inlined_call_operand.vmem [shape: bf16[128,384], index: 3, kind: input, shape index: {}]
  %s4 = inlined_call_operand.vmem [shape: f32[1,384], index: 4, kind: input, shape index: {}]
  %s5 = inlined_call_operand.vmem [shape: bf16[136,384], index: 5, kind: output, shape index: {}]
  %s6 = sld [smem:[#allocation0]]
  $region131: #{vit_encoder_forward.13} parent=0
    _
  %s8 = ssub.s32 1, %s6
  %s9 = scalar_select 0, %s8, %s6
  $region1: #{vit_encoder_forward.13} parent=0
    #allocation2 [shape = 'u8[65536]{0}', space=vmem, size = 0x10000, scoped, tag = 'input window, operand 3']
    #allocation3 [shape = 'u8[69632]{0}', space=vmem, size = 0x11000, scoped, tag = 'output window, operand 0']
    loop: start=0, step=1, limit=5
    $region2: #{vit_encoder_forward.13} parent=1 // loop_pre_header
      _
    $region3: #{vit_encoder_forward.13} parent=1 // loop_header
      %s11 = sphi 0, %s15
      %p12 = scmp.ge.s32.totalorder %s11, 5
      %s18 = sphi 0, %s30
      %s19 = sphi 0, %s26
      %s20 = sphi 0, %s18
      %s21 = sphi 0, %s19
      %s22 = sphi 0, %s20
      %s23 = sphi 0, %s21
      %s33 = sphi 0, %s35
      %s36 = sphi 0, %s33
      %s37 = sphi 0, %s36
      %s53 = sphi 0, %s37
      %s57 = sphi 0, %s57
      %s59 = sphi 0, %s57
      %s60 = sphi 0, %s59
      %s74 = sphi 0, %s60
      %s78 = sphi 0, %s78
      %s80 = sphi 0, %s78
      %s81 = sphi 0, %s80
      %s95 = sphi 0, %s81
      %s101 = sphi 0, %s103
      %s104 = sphi 0, %s101
      %s105 = sphi 0, %s104
      %s121 = sphi 0, %s105
      %s127 = sphi 0, %s129
      %s130 = sphi 0, %s127
      %s131 = sphi 0, %s130
      %s147 = sphi 0, %s131
      %s155 = sphi 0, %s157
      %s158 = sphi 0, %s155
      %s159 = sphi 0, %s158
      %s175 = sphi 0, %s159
    $region4: #{vit_encoder_forward.13} parent=1 // loop_header_branch
      %14 = sbr.rel (%p12) target = $region8
    $region5: #{vit_encoder_forward.13} parent=1 // loop_body
      %s16 = ssub.s32 %s11, 1
      %s17 = ssub.s32 %s11, 2
      %s24 = sadd.s32 1, %s19
      %p25 = scmp.ge.s32.totalorder %s24, 3
      %s26 = scalar_select %p25, 0, %s24
      %s27 = sadd.s32 1, %s18
      %s28 = scalar_select %p25, %s27, %s18
      %p29 = scmp.ge.s32.totalorder %s28, 1
      %s30 = scalar_select %p29, 0, %s28
      %s31 = ssub.s32 %s18, %s30
      %p32 = scmp.eq.s32.totalorder %s31, 0
      %s34 = sadd.s32 %s33, 1
      %s35 = scalar_select %p32, %s33, %s34
      %p38 = pneg %p32
      %p39 = scmp.eq.s32.totalorder %s11, 2
      %p40 = por %p38, %p39
      %p41 = scmp.ne.s32.totalorder %s33, %s36
      %p42 = scmp.eq.s32.totalorder %s11, 0
      %p43 = por %p41, %p42
      %p44 = scmp.ne.s32.totalorder %s33, %s36
      %p45 = scmp.eq.s32.totalorder %s16, 2
      %p46 = por %p44, %p45
      %p47 = scmp.ne.s32.totalorder %s36, %s37
      %p48 = scmp.eq.s32.totalorder %s16, 0
      %p49 = por %p47, %p48
      %p50 = scmp.ne.s32.totalorder %s36, %s37
      %p51 = scmp.eq.s32.totalorder %s17, 2
      %p52 = por %p50, %p51
      %p54 = scmp.ne.s32.totalorder %s37, %s53
      %p55 = scmp.eq.s32.totalorder %s17, 0
      %p56 = por %p54, %p55
      %s58 = sadd.s32 %s57, 1
      %p61 = scmp.eq.s32.totalorder %s11, 2
      %p62 = scmp.ne.s32.totalorder %s57, %s59
      %p63 = scmp.eq.s32.totalorder %s11, 0
      %p64 = por %p62, %p63
      %p65 = scmp.ne.s32.totalorder %s57, %s59
      %p66 = scmp.eq.s32.totalorder %s16, 2
      %p67 = por %p65, %p66
      %p68 = scmp.ne.s32.totalorder %s59, %s60
      %p69 = scmp.eq.s32.totalorder %s16, 0
      %p70 = por %p68, %p69
      %p71 = scmp.ne.s32.totalorder %s59, %s60
      %p72 = scmp.eq.s32.totalorder %s17, 2
      %p73 = por %p71, %p72
      %p75 = scmp.ne.s32.totalorder %s60, %s74
      %p76 = scmp.eq.s32.totalorder %s17, 0
      %p77 = por %p75, %p76
      %s79 = sadd.s32 %s78, 1
      %p82 = scmp.eq.s32.totalorder %s11, 2
      %p83 = scmp.ne.s32.totalorder %s78, %s80
      %p84 = scmp.eq.s32.totalorder %s11, 0
      %p85 = por %p83, %p84
      %p86 = scmp.ne.s32.totalorder %s78, %s80
      %p87 = scmp.eq.s32.totalorder %s16, 2
      %p88 = por %p86, %p87
      %p89 = scmp.ne.s32.totalorder %s80, %s81
      %p90 = scmp.eq.s32.totalorder %s16, 0
      %p91 = por %p89, %p90
      %p92 = scmp.ne.s32.totalorder %s80, %s81
      %p93 = scmp.eq.s32.totalorder %s17, 2
      %p94 = por %p92, %p93
      %p96 = scmp.ne.s32.totalorder %s81, %s95
      %p97 = scmp.eq.s32.totalorder %s17, 0
      %p98 = por %p96, %p97
      %s99 = ssub.s32 %s19, %s26
      %p100 = scmp.eq.s32.totalorder %s99, 0
      %s102 = sadd.s32 %s101, 1
      %s103 = scalar_select %p100, %s101, %s102
      %p106 = pneg %p100
      %p107 = scmp.eq.s32.totalorder %s11, 2
      %p108 = por %p106, %p107
      %p109 = scmp.ne.s32.totalorder %s101, %s104
      %p110 = scmp.eq.s32.totalorder %s11, 0
      %p111 = por %p109, %p110
      %p112 = scmp.ne.s32.totalorder %s101, %s104
      %p113 = scmp.eq.s32.totalorder %s16, 2
      %p114 = por %p112, %p113
      %p115 = scmp.ne.s32.totalorder %s104, %s105
      %p116 = scmp.eq.s32.totalorder %s16, 0
      %p117 = por %p115, %p116
      %p118 = scmp.ne.s32.totalorder %s104, %s105
      %p119 = scmp.eq.s32.totalorder %s17, 2
      %p120 = por %p118, %p119
      %p122 = scmp.ne.s32.totalorder %s105, %s121
      %p123 = scmp.eq.s32.totalorder %s17, 0
      %p124 = por %p122, %p123
      %s125 = ssub.s32 %s19, %s26
      %p126 = scmp.eq.s32.totalorder %s125, 0
      %s128 = sadd.s32 %s127, 1
      %s129 = scalar_select %p126, %s127, %s128
      %p132 = pneg %p126
      %p133 = scmp.eq.s32.totalorder %s11, 2
      %p134 = por %p132, %p133
      %p135 = scmp.ne.s32.totalorder %s127, %s130
      %p136 = scmp.eq.s32.totalorder %s11, 0
      %p137 = por %p135, %p136
      %p138 = scmp.ne.s32.totalorder %s127, %s130
      %p139 = scmp.eq.s32.totalorder %s16, 2
      %p140 = por %p138, %p139
      %p141 = scmp.ne.s32.totalorder %s130, %s131
      %p142 = scmp.eq.s32.totalorder %s16, 0
      %p143 = por %p141, %p142
      %p144 = scmp.ne.s32.totalorder %s130, %s131
      %p145 = scmp.eq.s32.totalorder %s17, 2
      %p146 = por %p144, %p145
      %p148 = scmp.ne.s32.totalorder %s131, %s147
      %p149 = scmp.eq.s32.totalorder %s17, 0
      %p150 = por %p148, %p149
      %s151 = ssub.s32 %s18, %s30
      %s152 = ssub.s32 %s19, %s26
      %s153 = sor.u32 %s151, %s152
      %p154 = scmp.eq.s32.totalorder %s153, 0
      %s156 = sadd.s32 %s155, 1
      %s157 = scalar_select %p154, %s155, %s156
      %p160 = pneg %p154
      %p161 = scmp.eq.s32.totalorder %s11, 2
      %p162 = por %p160, %p161
      %p163 = scmp.ne.s32.totalorder %s155, %s158
      %p164 = scmp.eq.s32.totalorder %s11, 0
      %p165 = por %p163, %p164
      %p166 = scmp.ne.s32.totalorder %s155, %s158
      %p167 = scmp.eq.s32.totalorder %s16, 2
      %p168 = por %p166, %p167
      %p169 = scmp.ne.s32.totalorder %s158, %s159
      %p170 = scmp.eq.s32.totalorder %s16, 0
      %p171 = por %p169, %p170
      %p172 = scmp.ne.s32.totalorder %s158, %s159
      %p173 = scmp.eq.s32.totalorder %s17, 2
      %p174 = por %p172, %p173
      %p176 = scmp.ne.s32.totalorder %s159, %s175
      %p177 = scmp.eq.s32.totalorder %s17, 0
      %p178 = por %p176, %p177
      %p179 = scmp.le.s32.totalorder 1, %s11
      %p180 = scmp.lt.s32.totalorder %s11, 4
      %p181 = pnand %p179, %p180
      %p182 = pneg %p181
      // Predicated region
      $region9: #{vit_encoder_forward.13} parent=5 // pred_check
        _
      $region10: #{vit_encoder_forward.13} parent=5 // pred_check_branch
        %184 = sbr.rel (%p181) target = $region12
      $region11: #{vit_encoder_forward.13} parent=5 // pred_region
        %s185 = ssub.s32 %s11, 1
        // Predicated region
        $region13: #{vit_encoder_forward.13} parent=11 // pred_check
          %p186 = pneg %p49
        $region14: #{vit_encoder_forward.13} parent=11 // pred_check_branch
          %188 = sbr.rel (%p186) target = $region16
        $region15: #{vit_encoder_forward.13} parent=11 // pred_region
          %s189 = smul.u32 17, %s20
          %p190 = scmp.lt.s32.totalorder %s189, 16
          %s191 = scalar_select %p190, %s189, 16
          %s192 = smul.addr %s191, 8
          %s193 = scalar_lea.vmem %s0, %s192
          %s194 = smul.u32 17, %s20
        $region16: #{vit_encoder_forward.13} parent=11 // pred_fallthru
          _
        // Predicated region
        $region17: #{vit_encoder_forward.13} parent=11 // pred_check
          %p195 = pneg %p70
        $region18: #{vit_encoder_forward.13} parent=11 // pred_check_branch
          %197 = sbr.rel (%p195) target = $region20
        $region19: #{vit_encoder_forward.13} parent=11 // pred_region
          _
        $region20: #{vit_encoder_forward.13} parent=11 // pred_fallthru
          _
        // Predicated region
        $region21: #{vit_encoder_forward.13} parent=11 // pred_check
          %p198 = pneg %p91
        $region22: #{vit_encoder_forward.13} parent=11 // pred_check_branch
          %200 = sbr.rel (%p198) target = $region24
        $region23: #{vit_encoder_forward.13} parent=11 // pred_region
          _
        $region24: #{vit_encoder_forward.13} parent=11 // pred_fallthru
          _
      $region12: #{vit_encoder_forward.13} parent=5 // pred_fallthru
        _
      %p201 = scmp.lt.s32.totalorder %s11, 3
      // Predicated region
      $region25: #{vit_encoder_forward.13} parent=5 // pred_check
        %p202 = pneg %p201
      $region26: #{vit_encoder_forward.13} parent=5 // pred_check_branch
        %204 = sbr.rel (%p202) target = $region28
      $region27: #{vit_encoder_forward.13} parent=5 // pred_region
        // Predicated region
        $region29: #{vit_encoder_forward.13} parent=27 // pred_check
          %p205 = pneg %p111
        $region30: #{vit_encoder_forward.13} parent=27 // pred_check_branch
          %207 = sbr.rel (%p205) target = $region32
        $region31: #{vit_encoder_forward.13} parent=27 // pred_region
          %s208 = sand.u32 %s101, 1
          %s209 = sand.u32 %s101, 1
          %s210 = smul.addr %s209, 64
          %s211 = scalar_lea.vmem [#allocation2], %s210
          %s212 = smul.addr %s19, 4
          %s213 = scalar_lea.vmem %s3, %s212
          // Predicated region
          $region33: #{vit_encoder_forward.13} parent=31 // pred_check
            _
          $region34: #{vit_encoder_forward.13} parent=31 // pred_check_branch
            %215 = sbr.rel (0) target = $region36
          $region35: #{vit_encoder_forward.13} parent=31 // pred_region
            // Predicated region
            $region37: #{vit_encoder_forward.13} parent=35 // pred_check
              _
            $region38: #{vit_encoder_forward.13} parent=35 // pred_check_branch
              %217 = sbr.rel target = $region40
            $region39: #{vit_encoder_forward.13} parent=35 // pred_region
              // Predicated region
              $region52: #{vit_encoder_forward.13} parent=39 // pred_check
                _
              $region53: #{vit_encoder_forward.13} parent=39 // pred_check_branch
                %263 = sbr.rel (0) target = $region55
              $region54: #{vit_encoder_forward.13} parent=39 // pred_region
                loop: start=0, step=1, limit=1
                $region56: #{vit_encoder_forward.13} parent=54 // loop_pre_header
                  _
                $region57: #{vit_encoder_forward.13} parent=54 // loop_header
                  %s265 = sphi 0, %s269
                  %p266 = scmp.ge.s32.totalorder %s265, 1
                  %s270 = sphi %s213, %s213
                  %s271 = sphi %s211, %s211
                $region58: #{vit_encoder_forward.13} parent=54 // loop_header_branch
                  %268 = sbr.rel (%p266) target = $region62
                $region59: #{vit_encoder_forward.13} parent=54 // loop_body
                  _
                $region60: #{vit_encoder_forward.13} parent=54 // loop_footer
                  %s269 = sadd.s32 1, %s265
                $region61: #{vit_encoder_forward.13} parent=54 // loop_footer_branch
                  %264 = sbr.rel target = $region57
                $region62: #{vit_encoder_forward.13} parent=54 // loop_exit
                  _
                %s273 = ssub.s32 16, 1
                loop: start=0, step=1, limit=1
                $region63: #{vit_encoder_forward.13} parent=54 // loop_pre_header
                  _
                $region64: #{vit_encoder_forward.13} parent=54 // loop_header
                  %s275 = sphi 0, %s279
                  %p276 = scmp.ge.s32.totalorder %s275, 1
                  %s280 = sphi %s213, %s213
                  %s281 = sphi %s211, %s211
                $region65: #{vit_encoder_forward.13} parent=54 // loop_header_branch
                  %278 = sbr.rel (%p276) target = $region69
                $region66: #{vit_encoder_forward.13} parent=54 // loop_body
                  %v282 = vld [vmem:[%s280] sm:%s273]
                  %283 = vst [vmem:[%s281] sm:%s273] %v282
                  %v284 = vld [vmem:[%s280 + $0xc] sm:%s273]
                  %285 = vst [vmem:[%s281 + $0x4] sm:%s273] %v284
                  %v286 = vld [vmem:[%s280 + $0x18] sm:%s273]
                  %287 = vst [vmem:[%s281 + $0x8] sm:%s273] %v286
                  %v288 = vld [vmem:[%s280 + $0x24] sm:%s273]
                  %289 = vst [vmem:[%s281 + $0xc] sm:%s273] %v288
                  %v290 = vld [vmem:[%s280 + $0x30] sm:%s273]
                  %291 = vst [vmem:[%s281 + $0x10] sm:%s273] %v290
                  %v292 = vld [vmem:[%s280 + $0x3c] sm:%s273]
                  %293 = vst [vmem:[%s281 + $0x14] sm:%s273] %v292
                  %v294 = vld [vmem:[%s280 + $0x48] sm:%s273]
                  %295 = vst [vmem:[%s281 + $0x18] sm:%s273] %v294
                  %v296 = vld [vmem:[%s280 + $0x54] sm:%s273]
                  %297 = vst [vmem:[%s281 + $0x1c] sm:%s273] %v296
                  %v298 = vld [vmem:[%s280 + $0x60] sm:%s273]
                  %299 = vst [vmem:[%s281 + $0x20] sm:%s273] %v298
                  %v300 = vld [vmem:[%s280 + $0x6c] sm:%s273]
                  %301 = vst [vmem:[%s281 + $0x24] sm:%s273] %v300
                  %v302 = vld [vmem:[%s280 + $0x78] sm:%s273]
                  %303 = vst [vmem:[%s281 + $0x28] sm:%s273] %v302
                  %v304 = vld [vmem:[%s280 + $0x84] sm:%s273]
                  %305 = vst [vmem:[%s281 + $0x2c] sm:%s273] %v304
                  %v306 = vld [vmem:[%s280 + $0x90] sm:%s273]
                  %307 = vst [vmem:[%s281 + $0x30] sm:%s273] %v306
                  %v308 = vld [vmem:[%s280 + $0x9c] sm:%s273]
                  %309 = vst [vmem:[%s281 + $0x34] sm:%s273] %v308
                  %v310 = vld [vmem:[%s280 + $0xa8] sm:%s273]
                  %311 = vst [vmem:[%s281 + $0x38] sm:%s273] %v310
                  %v312 = vld [vmem:[%s280 + $0xb4] sm:%s273]
                  %313 = vst [vmem:[%s281 + $0x3c] sm:%s273] %v312
                $region67: #{vit_encoder_forward.13} parent=54 // loop_footer
                  %s279 = sadd.s32 1, %s275
                $region68: #{vit_encoder_forward.13} parent=54 // loop_footer_branch
                  %274 = sbr.rel target = $region64
                $region69: #{vit_encoder_forward.13} parent=54 // loop_exit
                  _
              $region55: #{vit_encoder_forward.13} parent=39 // pred_fallthru
                _
            $region40: #{vit_encoder_forward.13} parent=35 // pred_fallthru
              _
            // Predicated region
            $region41: #{vit_encoder_forward.13} parent=35 // pred_check
              _
            $region42: #{vit_encoder_forward.13} parent=35 // pred_check_branch
              %219 = sbr.rel (0) target = $region44
            $region43: #{vit_encoder_forward.13} parent=35 // pred_region
              %s221 = ssub.s32 16, 1
              loop: start=0, step=1, limit=1
              $region45: #{vit_encoder_forward.13} parent=43 // loop_pre_header
                _
              $region46: #{vit_encoder_forward.13} parent=43 // loop_header
                %s223 = sphi 0, %s227
                %p224 = scmp.ge.s32.totalorder %s223, 1
                %s228 = sphi %s213, %s213
                %s229 = sphi %s211, %s211
              $region47: #{vit_encoder_forward.13} parent=43 // loop_header_branch
                %226 = sbr.rel (%p224) target = $region51
              $region48: #{vit_encoder_forward.13} parent=43 // loop_body
                %v230 = vld [vmem:[%s228] sm:%s221]
                %231 = vst [vmem:[%s229] sm:%s221] %v230
                %v232 = vld [vmem:[%s228 + $0xc] sm:%s221]
                %233 = vst [vmem:[%s229 + $0x4] sm:%s221] %v232
                %v234 = vld [vmem:[%s228 + $0x18] sm:%s221]
                %235 = vst [vmem:[%s229 + $0x8] sm:%s221] %v234
                %v236 = vld [vmem:[%s228 + $0x24] sm:%s221]
                %237 = vst [vmem:[%s229 + $0xc] sm:%s221] %v236
                %v238 = vld [vmem:[%s228 + $0x30] sm:%s221]
                %239 = vst [vmem:[%s229 + $0x10] sm:%s221] %v238
                %v240 = vld [vmem:[%s228 + $0x3c] sm:%s221]
                %241 = vst [vmem:[%s229 + $0x14] sm:%s221] %v240
                %v242 = vld [vmem:[%s228 + $0x48] sm:%s221]
                %243 = vst [vmem:[%s229 + $0x18] sm:%s221] %v242
                %v244 = vld [vmem:[%s228 + $0x54] sm:%s221]
                %245 = vst [vmem:[%s229 + $0x1c] sm:%s221] %v244
                %v246 = vld [vmem:[%s228 + $0x60] sm:%s221]
                %247 = vst [vmem:[%s229 + $0x20] sm:%s221] %v246
                %v248 = vld [vmem:[%s228 + $0x6c] sm:%s221]
                %249 = vst [vmem:[%s229 + $0x24] sm:%s221] %v248
                %v250 = vld [vmem:[%s228 + $0x78] sm:%s221]
                %251 = vst [vmem:[%s229 + $0x28] sm:%s221] %v250
                %v252 = vld [vmem:[%s228 + $0x84] sm:%s221]
                %253 = vst [vmem:[%s229 + $0x2c] sm:%s221] %v252
                %v254 = vld [vmem:[%s228 + $0x90] sm:%s221]
                %255 = vst [vmem:[%s229 + $0x30] sm:%s221] %v254
                %v256 = vld [vmem:[%s228 + $0x9c] sm:%s221]
                %257 = vst [vmem:[%s229 + $0x34] sm:%s221] %v256
                %v258 = vld [vmem:[%s228 + $0xa8] sm:%s221]
                %259 = vst [vmem:[%s229 + $0x38] sm:%s221] %v258
                %v260 = vld [vmem:[%s228 + $0xb4] sm:%s221]
                %261 = vst [vmem:[%s229 + $0x3c] sm:%s221] %v260
              $region49: #{vit_encoder_forward.13} parent=43 // loop_footer
                %s227 = sadd.s32 1, %s223
              $region50: #{vit_encoder_forward.13} parent=43 // loop_footer_branch
                %222 = sbr.rel target = $region46
              $region51: #{vit_encoder_forward.13} parent=43 // loop_exit
                _
            $region44: #{vit_encoder_forward.13} parent=35 // pred_fallthru
              _
          $region36: #{vit_encoder_forward.13} parent=31 // pred_fallthru
            _
          %314 = vnop
        $region32: #{vit_encoder_forward.13} parent=27 // pred_fallthru
          _
        // Predicated region
        $region70: #{vit_encoder_forward.13} parent=27 // pred_check
          %p315 = pneg %p137
        $region71: #{vit_encoder_forward.13} parent=27 // pred_check_branch
          %317 = sbr.rel (%p315) target = $region73
        $region72: #{vit_encoder_forward.13} parent=27 // pred_region
          %p318 = scmp.lt.s32.totalorder %s19, 2
          %s319 = scalar_select %p318, %s19, 2
          %s320 = scalar_lea.vmem %s4, %s319
        $region73: #{vit_encoder_forward.13} parent=27 // pred_fallthru
          _
      $region28: #{vit_encoder_forward.13} parent=5 // pred_fallthru
        _
      %p321 = scmp.le.s32.totalorder 1, %s11
      %p322 = scmp.lt.s32.totalorder %s11, 4
      %p323 = pnand %p321, %p322
      %p324 = pneg %p323
      // Predicated region
      $region74: #{vit_encoder_forward.13} parent=5 // pred_check
        _
      $region75: #{vit_encoder_forward.13} parent=5 // pred_check_branch
        %326 = sbr.rel (%p323) target = $region77
      $region76: #{vit_encoder_forward.13} parent=5 // pred_region
        %s327 = ssub.s32 %s11, 1
        %s328 = sand.u32 %s104, 1
        %s329 = sand.u32 %s104, 1
        %s330 = smul.addr %s329, 64
        %s331 = scalar_lea.vmem [#allocation2], %s330
        // Predicated region
        $region78: #{vit_encoder_forward.13} parent=76 // pred_check
          %p332 = pneg %p117
        $region79: #{vit_encoder_forward.13} parent=76 // pred_check_branch
          %334 = sbr.rel (%p332) target = $region81
        $region80: #{vit_encoder_forward.13} parent=76 // pred_region
          _
        $region81: #{vit_encoder_forward.13} parent=76 // pred_fallthru
          _
        %s335 = smul.u32 17, %s20
        %p336 = scmp.lt.s32.totalorder %s335, 16
        %s337 = scalar_select %p336, %s335, 16
        %s338 = smul.addr %s337, 8
        %s339 = scalar_lea.vmem %s0, %s338
        %p340 = pneg %p49
        %p341 = pneg %p46
        %p342 = pneg %p70
        %p343 = pneg %p67
        %p344 = pneg %p91
        %p345 = pneg %p88
        %s346 = sand.u32 %s104, 1
        %s347 = sand.u32 %s104, 1
        %s348 = smul.addr %s347, 64
        %s349 = scalar_lea.vmem [#allocation2], %s348
        %p350 = pneg %p117
        %p351 = pneg %p114
        %p352 = scmp.lt.s32.totalorder %s21, 2
        %s353 = scalar_select %p352, %s21, 2
        %s354 = scalar_lea.vmem %s4, %s353
        %p355 = pneg %p143
        %p356 = pneg %p140
        %p357 = pneg %p171
        %p358 = pneg %p168
        %s359 = sand.u32 %s158, 1
        %s360 = sand.u32 %s158, 1
        %s361 = smul.addr %s360, 68
        %s362 = scalar_lea.vmem [#allocation3], %s361
        %s363 = smul.u32 17, %s20
        %p364 = scmp.lt.s32.totalorder %s363, 16
        %s365 = scalar_select %p364, %s363, 16
        %s366 = smul.addr %s365, 8
        %s367 = scalar_lea.vmem %s0, %s366
        %s368 = smul.u32 17, %s20
        %p369 = scmp.lt.s32.totalorder %s21, 2
        %s370 = scalar_select %p369, %s21, 2
        %s371 = scalar_lea.vmem %s4, %s370
        %s372 = smul.u32 17, %s20
        %v374 = vld [vmem:[%s367] sm:$0xff]
        %v375 = vld [vmem:[%s367 + $0x8] sm:$0xff]
        %v376 = vld [vmem:[%s367 + $0x10] sm:$0xff]
        %v377 = vld [vmem:[%s367 + $0x18] sm:$0xff]
        %v378 = vld [vmem:[%s367 + $0x20] sm:$0xff]
        %v379 = vld [vmem:[%s367 + $0x28] sm:$0xff]
        %v380 = vld [vmem:[%s367 + $0x30] sm:$0xff]
        %v381 = vld [vmem:[%s367 + $0x38] sm:$0xff]
        %v382 = vld [vmem:[%s367 + $0x40] sm:$0xff]
        %v383 = vld [vmem:[%s367 + $0x48] sm:$0xff]
        %v384 = vld [vmem:[%s367 + $0x50] sm:$0xff]
        %v385 = vld [vmem:[%s367 + $0x58] sm:$0xff]
        %v386 = vld [vmem:[%s367 + $0x60] sm:$0xff]
        %v387 = vld [vmem:[%s367 + $0x68] sm:$0xff]
        %v388 = vld [vmem:[%s367 + $0x70] sm:$0xff]
        %v389 = vld [vmem:[%s367 + $0x78] sm:$0xff]
        %v390 = vld [vmem:[%s367 + $0x80] sm:$0xff]
        %391 = vadd.xlane.f32.xlu0 %v374
        %v392 = vpop.xlane.xlu0 %391
        %393 = vadd.xlane.f32.xlu0 %v375
        %v394 = vpop.xlane.xlu0 %393
        %395 = vadd.xlane.f32.xlu0 %v376
        %v396 = vpop.xlane.xlu0 %395
        %397 = vadd.xlane.f32.xlu0 %v377
        %v398 = vpop.xlane.xlu0 %397
        %399 = vadd.xlane.f32.xlu0 %v378
        %v400 = vpop.xlane.xlu0 %399
        %401 = vadd.xlane.f32.xlu0 %v379
        %v402 = vpop.xlane.xlu0 %401
        %403 = vadd.xlane.f32.xlu0 %v380
        %v404 = vpop.xlane.xlu0 %403
        %405 = vadd.xlane.f32.xlu0 %v381
        %v406 = vpop.xlane.xlu0 %405
        %407 = vadd.xlane.f32.xlu0 %v382
        %v408 = vpop.xlane.xlu0 %407
        %409 = vadd.xlane.f32.xlu0 %v383
        %v410 = vpop.xlane.xlu0 %409
        %411 = vadd.xlane.f32.xlu0 %v384
        %v412 = vpop.xlane.xlu0 %411
        %413 = vadd.xlane.f32.xlu0 %v385
        %v414 = vpop.xlane.xlu0 %413
        %415 = vadd.xlane.f32.xlu0 %v386
        %v416 = vpop.xlane.xlu0 %415
        %417 = vadd.xlane.f32.xlu0 %v387
        %v418 = vpop.xlane.xlu0 %417
        %419 = vadd.xlane.f32.xlu0 %v388
        %v420 = vpop.xlane.xlu0 %419
        %421 = vadd.xlane.f32.xlu0 %v389
        %v422 = vpop.xlane.xlu0 %421
        %423 = vadd.xlane.f32.xlu0 %v390
        %v424 = vpop.xlane.xlu0 %423
        %v425 = vrcp.pop 128.0
        %v426 = vmul.f32 %v392, %v425
        %v427 = vmul.f32 %v394, %v425
        %v428 = vmul.f32 %v396, %v425
        %v429 = vmul.f32 %v398, %v425
        %v430 = vmul.f32 %v400, %v425
        %v431 = vmul.f32 %v402, %v425
        %v432 = vmul.f32 %v404, %v425
        %v433 = vmul.f32 %v406, %v425
        %v434 = vmul.f32 %v408, %v425
        %v435 = vmul.f32 %v410, %v425
        %v436 = vmul.f32 %v412, %v425
        %v437 = vmul.f32 %v414, %v425
        %v438 = vmul.f32 %v416, %v425
        %v439 = vmul.f32 %v418, %v425
        %v440 = vmul.f32 %v420, %v425
        %v441 = vmul.f32 %v422, %v425
        %v442 = vmul.f32 %v424, %v425
        %v443 = vsub.f32 %v374, %v426
        %v444 = vsub.f32 %v375, %v427
        %v445 = vsub.f32 %v376, %v428
        %v446 = vsub.f32 %v377, %v429
        %v447 = vsub.f32 %v378, %v430
        %v448 = vsub.f32 %v379, %v431
        %v449 = vsub.f32 %v380, %v432
        %v450 = vsub.f32 %v381, %v433
        %v451 = vsub.f32 %v382, %v434
        %v452 = vsub.f32 %v383, %v435
        %v453 = vsub.f32 %v384, %v436
        %v454 = vsub.f32 %v385, %v437
        %v455 = vsub.f32 %v386, %v438
        %v456 = vsub.f32 %v387, %v439
        %v457 = vsub.f32 %v388, %v440
        %v458 = vsub.f32 %v389, %v441
        %v459 = vsub.f32 %v390, %v442
        %v460 = vmul.f32 %v443, %v443
        %v461 = vmul.f32 %v444, %v444
        %v462 = vmul.f32 %v445, %v445
        %v463 = vmul.f32 %v446, %v446
        %v464 = vmul.f32 %v447, %v447
        %v465 = vmul.f32 %v448, %v448
        %v466 = vmul.f32 %v449, %v449
        %v467 = vmul.f32 %v450, %v450
        %v468 = vmul.f32 %v451, %v451
        %v469 = vmul.f32 %v452, %v452
        %v470 = vmul.f32 %v453, %v453
        %v471 = vmul.f32 %v454, %v454
        %v472 = vmul.f32 %v455, %v455
        %v473 = vmul.f32 %v456, %v456
        %v474 = vmul.f32 %v457, %v457
        %v475 = vmul.f32 %v458, %v458
        %v476 = vmul.f32 %v459, %v459
        %477 = vadd.xlane.f32.xlu0 %v460
        %v478 = vpop.xlane.xlu0 %477
        %479 = vadd.xlane.f32.xlu0 %v461
        %v480 = vpop.xlane.xlu0 %479
        %481 = vadd.xlane.f32.xlu0 %v462
        %v482 = vpop.xlane.xlu0 %481
        %483 = vadd.xlane.f32.xlu0 %v463
        %v484 = vpop.xlane.xlu0 %483
        %485 = vadd.xlane.f32.xlu0 %v464
        %v486 = vpop.xlane.xlu0 %485
        %487 = vadd.xlane.f32.xlu0 %v465
        %v488 = vpop.xlane.xlu0 %487
        %489 = vadd.xlane.f32.xlu0 %v466
        %v490 = vpop.xlane.xlu0 %489
        %491 = vadd.xlane.f32.xlu0 %v467
        %v492 = vpop.xlane.xlu0 %491
        %493 = vadd.xlane.f32.xlu0 %v468
        %v494 = vpop.xlane.xlu0 %493
        %495 = vadd.xlane.f32.xlu0 %v469
        %v496 = vpop.xlane.xlu0 %495
        %497 = vadd.xlane.f32.xlu0 %v470
        %v498 = vpop.xlane.xlu0 %497
        %499 = vadd.xlane.f32.xlu0 %v471
        %v500 = vpop.xlane.xlu0 %499
        %501 = vadd.xlane.f32.xlu0 %v472
        %v502 = vpop.xlane.xlu0 %501
        %503 = vadd.xlane.f32.xlu0 %v473
        %v504 = vpop.xlane.xlu0 %503
        %505 = vadd.xlane.f32.xlu0 %v474
        %v506 = vpop.xlane.xlu0 %505
        %507 = vadd.xlane.f32.xlu0 %v475
        %v508 = vpop.xlane.xlu0 %507
        %509 = vadd.xlane.f32.xlu0 %v476
        %v510 = vpop.xlane.xlu0 %509
        %v511 = vmul.f32 %v478, %v425
        %v512 = vmul.f32 %v480, %v425
        %v513 = vmul.f32 %v482, %v425
        %v514 = vmul.f32 %v484, %v425
        %v515 = vmul.f32 %v486, %v425
        %v516 = vmul.f32 %v488, %v425
        %v517 = vmul.f32 %v490, %v425
        %v518 = vmul.f32 %v492, %v425
        %v519 = vmul.f32 %v494, %v425
        %v520 = vmul.f32 %v496, %v425
        %v521 = vmul.f32 %v498, %v425
        %v522 = vmul.f32 %v500, %v425
        %v523 = vmul.f32 %v502, %v425
        %v524 = vmul.f32 %v504, %v425
        %v525 = vmul.f32 %v506, %v425
        %v526 = vmul.f32 %v508, %v425
        %v527 = vmul.f32 %v510, %v425
        %v528 = vadd.f32 %v511, 1e-12
        %v529 = vadd.f32 %v512, 1e-12
        %v530 = vadd.f32 %v513, 1e-12
        %v531 = vadd.f32 %v514, 1e-12
        %v532 = vadd.f32 %v515, 1e-12
        %v533 = vadd.f32 %v516, 1e-12
        %v534 = vadd.f32 %v517, 1e-12
        %v535 = vadd.f32 %v518, 1e-12
        %v536 = vadd.f32 %v519, 1e-12
        %v537 = vadd.f32 %v520, 1e-12
        %v538 = vadd.f32 %v521, 1e-12
        %v539 = vadd.f32 %v522, 1e-12
        %v540 = vadd.f32 %v523, 1e-12
        %v541 = vadd.f32 %v524, 1e-12
        %v542 = vadd.f32 %v525, 1e-12
        %v543 = vadd.f32 %v526, 1e-12
        %v544 = vadd.f32 %v527, 1e-12
        %v545 = vrsqrt.pop %v528
        %v546 = vrsqrt.pop %v529
        %v547 = vrsqrt.pop %v530
        %v548 = vrsqrt.pop %v531
        %v549 = vrsqrt.pop %v532
        %v550 = vrsqrt.pop %v533
        %v551 = vrsqrt.pop %v534
        %v552 = vrsqrt.pop %v535
        %v553 = vrsqrt.pop %v536
        %v554 = vrsqrt.pop %v537
        %v555 = vrsqrt.pop %v538
        %v556 = vrsqrt.pop %v539
        %v557 = vrsqrt.pop %v540
        %v558 = vrsqrt.pop %v541
        %v559 = vrsqrt.pop %v542
        %v560 = vrsqrt.pop %v543
        %v561 = vrsqrt.pop %v544
        %v562 = vmul.f32 %v443, %v545
        %v563 = vmul.f32 %v444, %v546
        %v564 = vmul.f32 %v445, %v547
        %v565 = vmul.f32 %v446, %v548
        %v566 = vmul.f32 %v447, %v549
        %v567 = vmul.f32 %v448, %v550
        %v568 = vmul.f32 %v449, %v551
        %v569 = vmul.f32 %v450, %v552
        %v570 = vmul.f32 %v451, %v553
        %v571 = vmul.f32 %v452, %v554
        %v572 = vmul.f32 %v453, %v555
        %v573 = vmul.f32 %v454, %v556
        %v574 = vmul.f32 %v455, %v557
        %v575 = vmul.f32 %v456, %v558
        %v576 = vmul.f32 %v457, %v559
        %v577 = vmul.f32 %v458, %v560
        %v578 = vmul.f32 %v459, %v561
        %v579 = vld [vmem:[%s1] sm:$0x1]
        %v581 = vlaneseq
        %v582 = vshrl.u32 %v581, 7
        %v583 = vsub.s32 0, %v582
        %v584 = vrot.slane %v579, %v583
        %v586 = vmul.f32 %v562, %v584
        %v587 = vmul.f32 %v563, %v584
        %v588 = vmul.f32 %v564, %v584
        %v589 = vmul.f32 %v565, %v584
        %v590 = vmul.f32 %v566, %v584
        %v591 = vmul.f32 %v567, %v584
        %v592 = vmul.f32 %v568, %v584
        %v593 = vmul.f32 %v569, %v584
        %v594 = vmul.f32 %v570, %v584
        %v595 = vmul.f32 %v571, %v584
        %v596 = vmul.f32 %v572, %v584
        %v597 = vmul.f32 %v573, %v584
        %v598 = vmul.f32 %v574, %v584
        %v599 = vmul.f32 %v575, %v584
        %v600 = vmul.f32 %v576, %v584
        %v601 = vmul.f32 %v577, %v584
        %v602 = vmul.f32 %v578, %v584
        %v603 = vld [vmem:[%s2] sm:$0x1]
        %v605 = vlaneseq
        %v606 = vshrl.u32 %v605, 7
        %v607 = vsub.s32 0, %v606
        %v608 = vrot.slane %v603, %v607
        %v610 = vadd.f32 %v586, %v608
        %v611 = vadd.f32 %v587, %v608
        %v612 = vadd.f32 %v588, %v608
        %v613 = vadd.f32 %v589, %v608
        %v614 = vadd.f32 %v590, %v608
        %v615 = vadd.f32 %v591, %v608
        %v616 = vadd.f32 %v592, %v608
        %v617 = vadd.f32 %v593, %v608
        %v618 = vadd.f32 %v594, %v608
        %v619 = vadd.f32 %v595, %v608
        %v620 = vadd.f32 %v596, %v608
        %v621 = vadd.f32 %v597, %v608
        %v622 = vadd.f32 %v598, %v608
        %v623 = vadd.f32 %v599, %v608
        %v624 = vadd.f32 %v600, %v608
        %v625 = vadd.f32 %v601, %v608
        %v626 = vadd.f32 %v602, %v608
        %v627 = vpack.c.bf16 %v611, %v610
        %v628 = vpack.c.bf16 %v613, %v612
        %v629 = vpack.c.bf16 %v615, %v614
        %v630 = vpack.c.bf16 %v617, %v616
        %v631 = vpack.c.bf16 %v619, %v618
        %v632 = vpack.c.bf16 %v621, %v620
        %v633 = vpack.c.bf16 %v623, %v622
        %v634 = vpack.c.bf16 %v625, %v624
        %v635 = vpack.c.bf16 %v626, %v626
        %v636 = vld [vmem:[%s331] sm:$0xf]
        %v637 = vld [vmem:[%s331 + $0x4] sm:$0xf]
        %v638 = vld [vmem:[%s331 + $0x8] sm:$0xf]
        %v639 = vld [vmem:[%s331 + $0xc] sm:$0xf]
        %v640 = vld [vmem:[%s331 + $0x10] sm:$0xf]
        %v641 = vld [vmem:[%s331 + $0x14] sm:$0xf]
        %v642 = vld [vmem:[%s331 + $0x18] sm:$0xf]
        %v643 = vld [vmem:[%s331 + $0x1c] sm:$0xf]
        %v644 = vld [vmem:[%s331 + $0x20] sm:$0xf]
        %v645 = vld [vmem:[%s331 + $0x24] sm:$0xf]
        %v646 = vld [vmem:[%s331 + $0x28] sm:$0xf]
        %v647 = vld [vmem:[%s331 + $0x2c] sm:$0xf]
        %v648 = vld [vmem:[%s331 + $0x30] sm:$0xf]
        %v649 = vld [vmem:[%s331 + $0x34] sm:$0xf]
        %v650 = vld [vmem:[%s331 + $0x38] sm:$0xf]
        %v651 = vld [vmem:[%s331 + $0x3c] sm:$0xf]
        %v652 = vld [vmem:[%s371] sm:$0x1]
        %v654 = vlaneseq
        %v655 = vshrl.u32 %v654, 7
        %v656 = vsub.s32 0, %v655
        %v657 = vrot.slane %v652, %v656
        %v675 = vunpack.c.l.b16 %v636
        %v676 = vunpack.c.l.b16 %v637
        %v677 = vunpack.c.l.b16 %v638
        %v678 = vunpack.c.l.b16 %v639
        %v679 = vunpack.c.l.b16 %v640
        %v680 = vunpack.c.l.b16 %v641
        %v681 = vunpack.c.l.b16 %v642
        %v682 = vunpack.c.l.b16 %v643
        %v683 = vunpack.c.l.b16 %v644
        %v684 = vunpack.c.l.b16 %v645
        %v685 = vunpack.c.l.b16 %v646
        %v686 = vunpack.c.l.b16 %v647
        %v687 = vunpack.c.l.b16 %v648
        %v688 = vunpack.c.l.b16 %v649
        %v689 = vunpack.c.l.b16 %v650
        %v690 = vunpack.c.l.b16 %v651
        %v691 = vpack.c.b16 %v676, %v675
        %v692 = vpack.c.b16 %v678, %v677
        %v693 = vpack.c.b16 %v680, %v679
        %v694 = vpack.c.b16 %v682, %v681
        %v695 = vpack.c.b16 %v684, %v683
        %v696 = vpack.c.b16 %v686, %v685
        %v697 = vpack.c.b16 %v688, %v687
        %v698 = vpack.c.b16 %v690, %v689
        %707 = vmatprep.subr.bf16.mxu0 0
        %708 = vmatpush1.bf16.msra.mxu0 %v698
        %709 = vmatprep.subr.bf16.mxu0 0
        %710 = vmatpush1.bf16.msra.mxu0 %v697
        %711 = vmatprep.subr.bf16.mxu0 0
        %712 = vmatpush1.bf16.msra.mxu0 %v696
        %713 = vmatprep.subr.bf16.mxu0 0
        %714 = vmatpush1.bf16.msra.mxu0 %v695
        %715 = vmatprep.subr.bf16.mxu0 0
        %716 = vmatpush1.bf16.msra.mxu0 %v694
        %717 = vmatprep.subr.bf16.mxu0 0
        %718 = vmatpush1.bf16.msra.mxu0 %v693
        %719 = vmatprep.subr.bf16.mxu0 0
        %720 = vmatpush1.bf16.msra.mxu0 %v692
        %721 = vmatprep.subr.bf16.mxu0 0
        %722 = vmatpush1.bf16.msra.mxu0 %v691
        %723 = vmatprep.subr.bf16.mxu0 0
        %724 = vmatpush2.bf16.msra.mxu0 0
        %725 = vmatprep.subr.bf16.mxu0 0
        %726 = vmatpush2.bf16.msra.mxu0 0
        %727 = vmatprep.subr.bf16.mxu0 0
        %728 = vmatpush2.bf16.msra.mxu0 0
        %729 = vmatprep.subr.bf16.mxu0 0
        %730 = vmatpush2.bf16.msra.mxu0 0
        %731 = vmatprep.subr.bf16.mxu0 0
        %732 = vmatpush2.bf16.msra.mxu0 0
        %733 = vmatprep.subr.bf16.mxu0 0
        %734 = vmatpush2.bf16.msra.mxu0 0
        %735 = vmatprep.subr.bf16.mxu0 0
        %736 = vmatpush2.bf16.msra.mxu0 0
        %737 = vmatprep.subr.bf16.mxu0 0
        %738 = vmatpush2.bf16.msra.mxu0 0
        %739 = vmatprep.mubr.bf16.mxu0 0
        %740 = vmatmul.mubr.bf16.gmra.mxu0 %v627
        %v741 = vpop.f32.mrf.mxu0
        %v742 = vadd.f32 %v657, %v741
        %v743 = vpop.f32.mrf.mxu0
        %v744 = vpop.f32.mrf.mxu0
        %v745 = vadd.f32 %v657, %v744
        %v746 = vpop.f32.mrf.mxu0
        %747 = vmatprep.mubr.bf16.mxu0 0
        %748 = vmatmul.mubr.bf16.gmra.mxu0 %v628
        %v749 = vpop.f32.mrf.mxu0
        %v750 = vadd.f32 %v657, %v749
        %v751 = vpop.f32.mrf.mxu0
        %v752 = vpop.f32.mrf.mxu0
        %v753 = vadd.f32 %v657, %v752
        %v754 = vpop.f32.mrf.mxu0
        %755 = vmatprep.mubr.bf16.mxu0 0
        %756 = vmatmul.mubr.bf16.gmra.mxu0 %v629
        %v757 = vpop.f32.mrf.mxu0
        %v758 = vadd.f32 %v657, %v757
        %v759 = vpop.f32.mrf.mxu0
        %v760 = vpop.f32.mrf.mxu0
        %v761 = vadd.f32 %v657, %v760
        %v762 = vpop.f32.mrf.mxu0
        %763 = vmatprep.mubr.bf16.mxu0 0
        %764 = vmatmul.mubr.bf16.gmra.mxu0 %v630
        %v765 = vpop.f32.mrf.mxu0
        %v766 = vadd.f32 %v657, %v765
        %v767 = vpop.f32.mrf.mxu0
        %v768 = vpop.f32.mrf.mxu0
        %v769 = vadd.f32 %v657, %v768
        %v770 = vpop.f32.mrf.mxu0
        %771 = vmatprep.mubr.bf16.mxu0 0
        %772 = vmatmul.mubr.bf16.gmra.mxu0 %v631
        %v773 = vpop.f32.mrf.mxu0
        %v774 = vadd.f32 %v657, %v773
        %v775 = vpop.f32.mrf.mxu0
        %v776 = vpop.f32.mrf.mxu0
        %v777 = vadd.f32 %v657, %v776
        %v778 = vpop.f32.mrf.mxu0
        %779 = vmatprep.mubr.bf16.mxu0 0
        %780 = vmatmul.mubr.bf16.gmra.mxu0 %v632
        %v781 = vpop.f32.mrf.mxu0
        %v782 = vadd.f32 %v657, %v781
        %v783 = vpop.f32.mrf.mxu0
        %v784 = vpop.f32.mrf.mxu0
        %v785 = vadd.f32 %v657, %v784
        %v786 = vpop.f32.mrf.mxu0
        %787 = vmatprep.mubr.bf16.mxu0 0
        %788 = vmatmul.mubr.bf16.gmra.mxu0 %v633
        %v789 = vpop.f32.mrf.mxu0
        %v790 = vadd.f32 %v657, %v789
        %v791 = vpop.f32.mrf.mxu0
        %v792 = vpop.f32.mrf.mxu0
        %v793 = vadd.f32 %v657, %v792
        %v794 = vpop.f32.mrf.mxu0
        %795 = vmatprep.mubr.bf16.mxu0 0
        %796 = vmatmul.mubr.bf16.gmra.mxu0 %v634
        %v797 = vpop.f32.mrf.mxu0
        %v798 = vadd.f32 %v657, %v797
        %v799 = vpop.f32.mrf.mxu0
        %v800 = vpop.f32.mrf.mxu0
        %v801 = vadd.f32 %v657, %v800
        %v802 = vpop.f32.mrf.mxu0
        %803 = vmatprep.mubr.bf16.mxu0 0
        %804 = vmatmul.mubr.bf16.gmra.mxu0 %v635
        %v805 = vpop.f32.mrf.mxu0
        %v806 = vadd.f32 %v657, %v805
        %v807 = vpop.f32.mrf.mxu0
        %v808 = vpop.f32.mrf.mxu0
        %v809 = vpop.f32.mrf.mxu0
        %810 = vdwg.mxu0
        %v811 = vpack.c.bf16 %v745, %v742
        %v812 = vpack.c.bf16 %v753, %v750
        %v813 = vpack.c.bf16 %v761, %v758
        %v814 = vpack.c.bf16 %v769, %v766
        %v815 = vpack.c.bf16 %v777, %v774
        %v816 = vpack.c.bf16 %v785, %v782
        %v817 = vpack.c.bf16 %v793, %v790
        %v818 = vpack.c.bf16 %v801, %v798
        %v819 = vpack.c.bf16 %v806, %v806
        %v829 = vunpack.c.l.b16 %v811
        %v830 = vunpack.c.h.b16 %v811
        %v831 = vunpack.c.l.b16 %v812
        %v832 = vunpack.c.h.b16 %v812
        %v833 = vunpack.c.l.b16 %v813
        %v834 = vunpack.c.h.b16 %v813
        %v835 = vunpack.c.l.b16 %v814
        %v836 = vunpack.c.h.b16 %v814
        %v837 = vunpack.c.l.b16 %v815
        %v838 = vunpack.c.h.b16 %v815
        %v839 = vunpack.c.l.b16 %v816
        %v840 = vunpack.c.h.b16 %v816
        %v841 = vunpack.c.l.b16 %v817
        %v842 = vunpack.c.h.b16 %v817
        %v843 = vunpack.c.l.b16 %v818
        %v844 = vunpack.c.h.b16 %v818
        %v845 = vunpack.c.l.b16 %v819
        %v846 = vpack.c.b16 %v829, %v829
        %v847 = vpack.c.b16 %v830, %v830
        %v848 = vpack.c.b16 %v831, %v831
        %v849 = vpack.c.b16 %v832, %v832
        %v850 = vpack.c.b16 %v833, %v833
        %v851 = vpack.c.b16 %v834, %v834
        %v852 = vpack.c.b16 %v835, %v835
        %v853 = vpack.c.b16 %v836, %v836
        %v854 = vpack.c.b16 %v837, %v837
        %v855 = vpack.c.b16 %v838, %v838
        %v856 = vpack.c.b16 %v839, %v839
        %v857 = vpack.c.b16 %v840, %v840
        %v858 = vpack.c.b16 %v841, %v841
        %v859 = vpack.c.b16 %v842, %v842
        %v860 = vpack.c.b16 %v843, %v843
        %v861 = vpack.c.b16 %v844, %v844
        %v862 = vpack.c.b16 %v845, %v845
        %880 = vst [vmem:[%s362] sm:$0xf] %v846
        %881 = vst [vmem:[%s362 + $0x4] sm:$0xf] %v847
        %882 = vst [vmem:[%s362 + $0x8] sm:$0xf] %v848
        %883 = vst [vmem:[%s362 + $0xc] sm:$0xf] %v849
        %884 = vst [vmem:[%s362 + $0x10] sm:$0xf] %v850
        %885 = vst [vmem:[%s362 + $0x14] sm:$0xf] %v851
        %886 = vst [vmem:[%s362 + $0x18] sm:$0xf] %v852
        %887 = vst [vmem:[%s362 + $0x1c] sm:$0xf] %v853
        %888 = vst [vmem:[%s362 + $0x20] sm:$0xf] %v854
        %889 = vst [vmem:[%s362 + $0x24] sm:$0xf] %v855
        %890 = vst [vmem:[%s362 + $0x28] sm:$0xf] %v856
        %891 = vst [vmem:[%s362 + $0x2c] sm:$0xf] %v857
        %892 = vst [vmem:[%s362 + $0x30] sm:$0xf] %v858
        %893 = vst [vmem:[%s362 + $0x34] sm:$0xf] %v859
        %894 = vst [vmem:[%s362 + $0x38] sm:$0xf] %v860
        %895 = vst [vmem:[%s362 + $0x3c] sm:$0xf] %v861
        %896 = vst [vmem:[%s362 + $0x40] sm:$0xf] %v862
        %s897 = sand.u32 %s158, 1
        %s898 = sand.u32 %s158, 1
        %s899 = smul.addr %s898, 68
        %s900 = scalar_lea.vmem [#allocation3], %s899
        // Predicated region
        $region82: #{vit_encoder_forward.13} parent=76 // pred_check
          %p901 = pneg %p168
        $region83: #{vit_encoder_forward.13} parent=76 // pred_check_branch
          %903 = sbr.rel (%p901) target = $region85
        $region84: #{vit_encoder_forward.13} parent=76 // pred_region
          %s904 = smul.u32 17, %s20
          %s905 = smul.addr %s904, 3
          %s906 = sadd.s32 %s21, %s905
          %s907 = smul.addr %s906, 4
          %s908 = scalar_lea.vmem %s5, %s907
          // Predicated region
          $region86: #{vit_encoder_forward.13} parent=84 // pred_check
            _
          $region87: #{vit_encoder_forward.13} parent=84 // pred_check_branch
            %910 = sbr.rel (0) target = $region89
          $region88: #{vit_encoder_forward.13} parent=84 // pred_region
            // Predicated region
            $region90: #{vit_encoder_forward.13} parent=88 // pred_check
              _
            $region91: #{vit_encoder_forward.13} parent=88 // pred_check_branch
              %912 = sbr.rel target = $region93
            $region92: #{vit_encoder_forward.13} parent=88 // pred_region
              // Predicated region
              $region105: #{vit_encoder_forward.13} parent=92 // pred_check
                _
              $region106: #{vit_encoder_forward.13} parent=92 // pred_check_branch
                %960 = sbr.rel (0) target = $region108
              $region107: #{vit_encoder_forward.13} parent=92 // pred_region
                loop: start=0, step=1, limit=1
                $region109: #{vit_encoder_forward.13} parent=107 // loop_pre_header
                  _
                $region110: #{vit_encoder_forward.13} parent=107 // loop_header
                  %s962 = sphi 0, %s966
                  %p963 = scmp.ge.s32.totalorder %s962, 1
                  %s967 = sphi %s900, %s900
                  %s968 = sphi %s908, %s908
                $region111: #{vit_encoder_forward.13} parent=107 // loop_header_branch
                  %965 = sbr.rel (%p963) target = $region115
                $region112: #{vit_encoder_forward.13} parent=107 // loop_body
                  _
                $region113: #{vit_encoder_forward.13} parent=107 // loop_footer
                  %s966 = sadd.s32 1, %s962
                $region114: #{vit_encoder_forward.13} parent=107 // loop_footer_branch
                  %961 = sbr.rel target = $region110
                $region115: #{vit_encoder_forward.13} parent=107 // loop_exit
                  _
                %s970 = ssub.s32 16, 1
                loop: start=0, step=1, limit=1
                $region116: #{vit_encoder_forward.13} parent=107 // loop_pre_header
                  _
                $region117: #{vit_encoder_forward.13} parent=107 // loop_header
                  %s972 = sphi 0, %s976
                  %p973 = scmp.ge.s32.totalorder %s972, 1
                  %s977 = sphi %s900, %s900
                  %s978 = sphi %s908, %s908
                $region118: #{vit_encoder_forward.13} parent=107 // loop_header_branch
                  %975 = sbr.rel (%p973) target = $region122
                $region119: #{vit_encoder_forward.13} parent=107 // loop_body
                  %v979 = vld [vmem:[%s977] sm:%s970]
                  %980 = vst [vmem:[%s978] sm:%s970] %v979
                  %v981 = vld [vmem:[%s977 + $0x4] sm:%s970]
                  %982 = vst [vmem:[%s978 + $0xc] sm:%s970] %v981
                  %v983 = vld [vmem:[%s977 + $0x8] sm:%s970]
                  %984 = vst [vmem:[%s978 + $0x18] sm:%s970] %v983
                  %v985 = vld [vmem:[%s977 + $0xc] sm:%s970]
                  %986 = vst [vmem:[%s978 + $0x24] sm:%s970] %v985
                  %v987 = vld [vmem:[%s977 + $0x10] sm:%s970]
                  %988 = vst [vmem:[%s978 + $0x30] sm:%s970] %v987
                  %v989 = vld [vmem:[%s977 + $0x14] sm:%s970]
                  %990 = vst [vmem:[%s978 + $0x3c] sm:%s970] %v989
                  %v991 = vld [vmem:[%s977 + $0x18] sm:%s970]
                  %992 = vst [vmem:[%s978 + $0x48] sm:%s970] %v991
                  %v993 = vld [vmem:[%s977 + $0x1c] sm:%s970]
                  %994 = vst [vmem:[%s978 + $0x54] sm:%s970] %v993
                  %v995 = vld [vmem:[%s977 + $0x20] sm:%s970]
                  %996 = vst [vmem:[%s978 + $0x60] sm:%s970] %v995
                  %v997 = vld [vmem:[%s977 + $0x24] sm:%s970]
                  %998 = vst [vmem:[%s978 + $0x6c] sm:%s970] %v997
                  %v999 = vld [vmem:[%s977 + $0x28] sm:%s970]
                  %1000 = vst [vmem:[%s978 + $0x78] sm:%s970] %v999
                  %v1001 = vld [vmem:[%s977 + $0x2c] sm:%s970]
                  %1002 = vst [vmem:[%s978 + $0x84] sm:%s970] %v1001
                  %v1003 = vld [vmem:[%s977 + $0x30] sm:%s970]
                  %1004 = vst [vmem:[%s978 + $0x90] sm:%s970] %v1003
                  %v1005 = vld [vmem:[%s977 + $0x34] sm:%s970]
                  %1006 = vst [vmem:[%s978 + $0x9c] sm:%s970] %v1005
                  %v1007 = vld [vmem:[%s977 + $0x38] sm:%s970]
                  %1008 = vst [vmem:[%s978 + $0xa8] sm:%s970] %v1007
                  %v1009 = vld [vmem:[%s977 + $0x3c] sm:%s970]
                  %1010 = vst [vmem:[%s978 + $0xb4] sm:%s970] %v1009
                  %v1011 = vld [vmem:[%s977 + $0x40] sm:%s970]
                  %1012 = vst [vmem:[%s978 + $0xc0] sm:%s970] %v1011
                $region120: #{vit_encoder_forward.13} parent=107 // loop_footer
                  %s976 = sadd.s32 1, %s972
                $region121: #{vit_encoder_forward.13} parent=107 // loop_footer_branch
                  %971 = sbr.rel target = $region117
                $region122: #{vit_encoder_forward.13} parent=107 // loop_exit
                  _
              $region108: #{vit_encoder_forward.13} parent=92 // pred_fallthru
                _
            $region93: #{vit_encoder_forward.13} parent=88 // pred_fallthru
              _
            // Predicated region
            $region94: #{vit_encoder_forward.13} parent=88 // pred_check
              _
            $region95: #{vit_encoder_forward.13} parent=88 // pred_check_branch
              %914 = sbr.rel (0) target = $region97
            $region96: #{vit_encoder_forward.13} parent=88 // pred_region
              %s916 = ssub.s32 16, 1
              loop: start=0, step=1, limit=1
              $region98: #{vit_encoder_forward.13} parent=96 // loop_pre_header
                _
              $region99: #{vit_encoder_forward.13} parent=96 // loop_header
                %s918 = sphi 0, %s922
                %p919 = scmp.ge.s32.totalorder %s918, 1
                %s923 = sphi %s900, %s900
                %s924 = sphi %s908, %s908
              $region100: #{vit_encoder_forward.13} parent=96 // loop_header_branch
                %921 = sbr.rel (%p919) target = $region104
              $region101: #{vit_encoder_forward.13} parent=96 // loop_body
                %v925 = vld [vmem:[%s923] sm:%s916]
                %926 = vst [vmem:[%s924] sm:%s916] %v925
                %v927 = vld [vmem:[%s923 + $0x4] sm:%s916]
                %928 = vst [vmem:[%s924 + $0xc] sm:%s916] %v927
                %v929 = vld [vmem:[%s923 + $0x8] sm:%s916]
                %930 = vst [vmem:[%s924 + $0x18] sm:%s916] %v929
                %v931 = vld [vmem:[%s923 + $0xc] sm:%s916]
                %932 = vst [vmem:[%s924 + $0x24] sm:%s916] %v931
                %v933 = vld [vmem:[%s923 + $0x10] sm:%s916]
                %934 = vst [vmem:[%s924 + $0x30] sm:%s916] %v933
                %v935 = vld [vmem:[%s923 + $0x14] sm:%s916]
                %936 = vst [vmem:[%s924 + $0x3c] sm:%s916] %v935
                %v937 = vld [vmem:[%s923 + $0x18] sm:%s916]
                %938 = vst [vmem:[%s924 + $0x48] sm:%s916] %v937
                %v939 = vld [vmem:[%s923 + $0x1c] sm:%s916]
                %940 = vst [vmem:[%s924 + $0x54] sm:%s916] %v939
                %v941 = vld [vmem:[%s923 + $0x20] sm:%s916]
                %942 = vst [vmem:[%s924 + $0x60] sm:%s916] %v941
                %v943 = vld [vmem:[%s923 + $0x24] sm:%s916]
                %944 = vst [vmem:[%s924 + $0x6c] sm:%s916] %v943
                %v945 = vld [vmem:[%s923 + $0x28] sm:%s916]
                %946 = vst [vmem:[%s924 + $0x78] sm:%s916] %v945
                %v947 = vld [vmem:[%s923 + $0x2c] sm:%s916]
                %948 = vst [vmem:[%s924 + $0x84] sm:%s916] %v947
                %v949 = vld [vmem:[%s923 + $0x30] sm:%s916]
                %950 = vst [vmem:[%s924 + $0x90] sm:%s916] %v949
                %v951 = vld [vmem:[%s923 + $0x34] sm:%s916]
                %952 = vst [vmem:[%s924 + $0x9c] sm:%s916] %v951
                %v953 = vld [vmem:[%s923 + $0x38] sm:%s916]
                %954 = vst [vmem:[%s924 + $0xa8] sm:%s916] %v953
                %v955 = vld [vmem:[%s923 + $0x3c] sm:%s916]
                %956 = vst [vmem:[%s924 + $0xb4] sm:%s916] %v955
                %v957 = vld [vmem:[%s923 + $0x40] sm:%s916]
                %958 = vst [vmem:[%s924 + $0xc0] sm:%s916] %v957
              $region102: #{vit_encoder_forward.13} parent=96 // loop_footer
                %s922 = sadd.s32 1, %s918
              $region103: #{vit_encoder_forward.13} parent=96 // loop_footer_branch
                %917 = sbr.rel target = $region99
              $region104: #{vit_encoder_forward.13} parent=96 // loop_exit
                _
            $region97: #{vit_encoder_forward.13} parent=88 // pred_fallthru
              _
          $region89: #{vit_encoder_forward.13} parent=84 // pred_fallthru
            _
          %1013 = vnop
        $region85: #{vit_encoder_forward.13} parent=76 // pred_fallthru
          _
      $region77: #{vit_encoder_forward.13} parent=5 // pred_fallthru
        _
      %p1014 = scmp.le.s32.totalorder 2, %s11
      // Predicated region
      $region123: #{vit_encoder_forward.13} parent=5 // pred_check
        %p1015 = pneg %p1014
      $region124: #{vit_encoder_forward.13} parent=5 // pred_check_branch
        %1017 = sbr.rel (%p1015) target = $region126
      $region125: #{vit_encoder_forward.13} parent=5 // pred_region
        %s1018 = ssub.s32 %s11, 2
        // Predicated region
        $region127: #{vit_encoder_forward.13} parent=125 // pred_check
          %p1019 = pneg %p174
        $region128: #{vit_encoder_forward.13} parent=125 // pred_check_branch
          %1021 = sbr.rel (%p1019) target = $region130
        $region129: #{vit_encoder_forward.13} parent=125 // pred_region
          %s1022 = sand.u32 %s159, 1
          %s1023 = sand.u32 %s159, 1
          %s1024 = smul.addr %s1023, 68
          %s1025 = scalar_lea.vmem [#allocation3], %s1024
        $region130: #{vit_encoder_forward.13} parent=125 // pred_fallthru
          _
      $region126: #{vit_encoder_forward.13} parent=5 // pred_fallthru
        _
    $region6: #{vit_encoder_forward.13} parent=1 // loop_footer
      %s15 = sadd.s32 1, %s11
    $region7: #{vit_encoder_forward.13} parent=1 // loop_footer_branch
      %10 = sbr.rel target = $region3
    $region8: #{vit_encoder_forward.13} parent=1 // loop_exit
      _

// kernel: vit_encoder_forward.14
$region0: #{vit_encoder_forward.14}
  #allocation0 [shape = 'u32[]', space=smem, size = 0x4, offset = 0x4, fixed_abs, tag = 'smem constant byte address 0x4 - core index']
  #allocation1 [shape = 'u32[144,128]{1,0:T(1,128)}', space=vmem, size = 0x12000, scoped, tag = 'internal scratch']
  %s0 = inlined_call_operand.vmem [shape: bf16[8,17,384], index: 0, kind: input, shape index: {}]
  %s1 = inlined_call_operand.vmem [shape: bf16[128,128], index: 1, kind: input, shape index: {}]
  %s2 = inlined_call_operand.vmem [shape: f32[1,128], index: 2, kind: input, shape index: {}]
  %s3 = inlined_call_operand.vmem [shape: f32[8,17,128], index: 3, kind: input, shape index: {}]
  %s4 = inlined_call_operand.vmem [shape: f32[8,17,128], index: 4, kind: output, shape index: {}]
  %s5 = sld [smem:[#allocation0]]
  $region49: #{vit_encoder_forward.14} parent=0
    _
  %s7 = ssub.s32 1, %s5
  %s8 = scalar_select 0, %s7, %s5
  loop: start=0, step=1, limit=10
  $region2: #{vit_encoder_forward.14} parent=0 // loop_pre_header
    _
  $region3: #{vit_encoder_forward.14} parent=0 // loop_header
    %s10 = sphi 0, %s14
    %p11 = scmp.ge.s32.totalorder %s10, 10
    %s20 = sphi 0, %s22
    %s23 = sphi 0, %s20
    %s24 = sphi 0, %s23
    %s40 = sphi 0, %s24
    %s44 = sphi 0, %s44
    %s46 = sphi 0, %s44
    %s47 = sphi 0, %s46
    %s61 = sphi 0, %s47
    %s65 = sphi 0, %s65
    %s67 = sphi 0, %s65
    %s68 = sphi 0, %s67
    %s82 = sphi 0, %s68
    %s88 = sphi 0, %s90
    %s91 = sphi 0, %s88
    %s92 = sphi 0, %s91
    %s108 = sphi 0, %s92
    %s114 = sphi 0, %s116
    %s117 = sphi 0, %s114
    %s118 = sphi 0, %s117
    %s134 = sphi 0, %s118
  $region4: #{vit_encoder_forward.14} parent=0 // loop_header_branch
    %13 = sbr.rel (%p11) target = $region8
  $region5: #{vit_encoder_forward.14} parent=0 // loop_body
    %s15 = ssub.s32 %s10, 1
    %s16 = ssub.s32 %s10, 2
    %s17 = sadd.s32 %s10, 1
    %s18 = ssub.s32 %s10, %s17
    %p19 = scmp.eq.s32.totalorder %s18, 0
    %s21 = sadd.s32 %s20, 1
    %s22 = scalar_select %p19, %s20, %s21
    %p25 = pneg %p19
    %p26 = scmp.eq.s32.totalorder %s10, 7
    %p27 = por %p25, %p26
    %p28 = scmp.ne.s32.totalorder %s20, %s23
    %p29 = scmp.eq.s32.totalorder %s10, 0
    %p30 = por %p28, %p29
    %p31 = scmp.ne.s32.totalorder %s20, %s23
    %p32 = scmp.eq.s32.totalorder %s15, 7
    %p33 = por %p31, %p32
    %p34 = scmp.ne.s32.totalorder %s23, %s24
    %p35 = scmp.eq.s32.totalorder %s15, 0
    %p36 = por %p34, %p35
    %p37 = scmp.ne.s32.totalorder %s23, %s24
    %p38 = scmp.eq.s32.totalorder %s16, 7
    %p39 = por %p37, %p38
    %p41 = scmp.ne.s32.totalorder %s24, %s40
    %p42 = scmp.eq.s32.totalorder %s16, 0
    %p43 = por %p41, %p42
    %s45 = sadd.s32 %s44, 1
    %p48 = scmp.eq.s32.totalorder %s10, 7
    %p49 = scmp.ne.s32.totalorder %s44, %s46
    %p50 = scmp.eq.s32.totalorder %s10, 0
    %p51 = por %p49, %p50
    %p52 = scmp.ne.s32.totalorder %s44, %s46
    %p53 = scmp.eq.s32.totalorder %s15, 7
    %p54 = por %p52, %p53
    %p55 = scmp.ne.s32.totalorder %s46, %s47
    %p56 = scmp.eq.s32.totalorder %s15, 0
    %p57 = por %p55, %p56
    %p58 = scmp.ne.s32.totalorder %s46, %s47
    %p59 = scmp.eq.s32.totalorder %s16, 7
    %p60 = por %p58, %p59
    %p62 = scmp.ne.s32.totalorder %s47, %s61
    %p63 = scmp.eq.s32.totalorder %s16, 0
    %p64 = por %p62, %p63
    %s66 = sadd.s32 %s65, 1
    %p69 = scmp.eq.s32.totalorder %s10, 7
    %p70 = scmp.ne.s32.totalorder %s65, %s67
    %p71 = scmp.eq.s32.totalorder %s10, 0
    %p72 = por %p70, %p71
    %p73 = scmp.ne.s32.totalorder %s65, %s67
    %p74 = scmp.eq.s32.totalorder %s15, 7
    %p75 = por %p73, %p74
    %p76 = scmp.ne.s32.totalorder %s67, %s68
    %p77 = scmp.eq.s32.totalorder %s15, 0
    %p78 = por %p76, %p77
    %p79 = scmp.ne.s32.totalorder %s67, %s68
    %p80 = scmp.eq.s32.totalorder %s16, 7
    %p81 = por %p79, %p80
    %p83 = scmp.ne.s32.totalorder %s68, %s82
    %p84 = scmp.eq.s32.totalorder %s16, 0
    %p85 = por %p83, %p84
    %s86 = ssub.s32 %s10, %s17
    %p87 = scmp.eq.s32.totalorder %s86, 0
    %s89 = sadd.s32 %s88, 1
    %s90 = scalar_select %p87, %s88, %s89
    %p93 = pneg %p87
    %p94 = scmp.eq.s32.totalorder %s10, 7
    %p95 = por %p93, %p94
    %p96 = scmp.ne.s32.totalorder %s88, %s91
    %p97 = scmp.eq.s32.totalorder %s10, 0
    %p98 = por %p96, %p97
    %p99 = scmp.ne.s32.totalorder %s88, %s91
    %p100 = scmp.eq.s32.totalorder %s15, 7
    %p101 = por %p99, %p100
    %p102 = scmp.ne.s32.totalorder %s91, %s92
    %p103 = scmp.eq.s32.totalorder %s15, 0
    %p104 = por %p102, %p103
    %p105 = scmp.ne.s32.totalorder %s91, %s92
    %p106 = scmp.eq.s32.totalorder %s16, 7
    %p107 = por %p105, %p106
    %p109 = scmp.ne.s32.totalorder %s92, %s108
    %p110 = scmp.eq.s32.totalorder %s16, 0
    %p111 = por %p109, %p110
    %s112 = ssub.s32 %s10, %s17
    %p113 = scmp.eq.s32.totalorder %s112, 0
    %s115 = sadd.s32 %s114, 1
    %s116 = scalar_select %p113, %s114, %s115
    %p119 = pneg %p113
    %p120 = scmp.eq.s32.totalorder %s10, 7
    %p121 = por %p119, %p120
    %p122 = scmp.ne.s32.totalorder %s114, %s117
    %p123 = scmp.eq.s32.totalorder %s10, 0
    %p124 = por %p122, %p123
    %p125 = scmp.ne.s32.totalorder %s114, %s117
    %p126 = scmp.eq.s32.totalorder %s15, 7
    %p127 = por %p125, %p126
    %p128 = scmp.ne.s32.totalorder %s117, %s118
    %p129 = scmp.eq.s32.totalorder %s15, 0
    %p130 = por %p128, %p129
    %p131 = scmp.ne.s32.totalorder %s117, %s118
    %p132 = scmp.eq.s32.totalorder %s16, 7
    %p133 = por %p131, %p132
    %p135 = scmp.ne.s32.totalorder %s118, %s134
    %p136 = scmp.eq.s32.totalorder %s16, 0
    %p137 = por %p135, %p136
    %p138 = scmp.le.s32.totalorder 1, %s10
    %p139 = scmp.lt.s32.totalorder %s10, 9
    %p140 = pnand %p138, %p139
    %p141 = pneg %p140
    // Predicated region
    $region9: #{vit_encoder_forward.14} parent=5 // pred_check
      _
    $region10: #{vit_encoder_forward.14} parent=5 // pred_check_branch
      %143 = sbr.rel (%p140) target = $region12
    $region11: #{vit_encoder_forward.14} parent=5 // pred_region
      %s144 = ssub.s32 %s10, 1
      // Predicated region
      $region13: #{vit_encoder_forward.14} parent=11 // pred_check
        %p145 = pneg %p57
      $region14: #{vit_encoder_forward.14} parent=11 // pred_check_branch
        %147 = sbr.rel (%p145) target = $region16
      $region15: #{vit_encoder_forward.14} parent=11 // pred_region
        _
      $region16: #{vit_encoder_forward.14} parent=11 // pred_fallthru
        _
      // Predicated region
      $region17: #{vit_encoder_forward.14} parent=11 // pred_check
        %p148 = pneg %p78
      $region18: #{vit_encoder_forward.14} parent=11 // pred_check_branch
        %150 = sbr.rel (%p148) target = $region20
      $region19: #{vit_encoder_forward.14} parent=11 // pred_region
        _
      $region20: #{vit_encoder_forward.14} parent=11 // pred_fallthru
        _
    $region12: #{vit_encoder_forward.14} parent=5 // pred_fallthru
      _
    %p151 = scmp.lt.s32.totalorder %s10, 8
    // Predicated region
    $region21: #{vit_encoder_forward.14} parent=5 // pred_check
      %p152 = pneg %p151
    $region22: #{vit_encoder_forward.14} parent=5 // pred_check_branch
      %154 = sbr.rel (%p152) target = $region24
    $region23: #{vit_encoder_forward.14} parent=5 // pred_region
      // Predicated region
      $region25: #{vit_encoder_forward.14} parent=23 // pred_check
        %p155 = pneg %p30
      $region26: #{vit_encoder_forward.14} parent=23 // pred_check_branch
        %157 = sbr.rel (%p155) target = $region28
      $region27: #{vit_encoder_forward.14} parent=23 // pred_region
        %p158 = scmp.lt.s32.totalorder %s10, 7
        %s159 = scalar_select %p158, %s10, 7
        %s160 = smul.addr %s159, 9
        %s161 = smul.addr %s160, 4
        %s162 = scalar_lea.vmem %s0, %s161
      $region28: #{vit_encoder_forward.14} parent=23 // pred_fallthru
        _
      // Predicated region
      $region29: #{vit_encoder_forward.14} parent=23 // pred_check
        %p163 = pneg %p98
      $region30: #{vit_encoder_forward.14} parent=23 // pred_check_branch
        %165 = sbr.rel (%p163) target = $region32
      $region31: #{vit_encoder_forward.14} parent=23 // pred_region
        %p166 = scmp.lt.s32.totalorder %s10, 7
        %s167 = scalar_select %p166, %s10, 7
        %s168 = smul.addr %s167, 3
        %s169 = smul.addr %s168, 8
        %s170 = scalar_lea.vmem %s3, %s169
      $region32: #{vit_encoder_forward.14} parent=23 // pred_fallthru
        _
    $region24: #{vit_encoder_forward.14} parent=5 // pred_fallthru
      _
    %p171 = scmp.le.s32.totalorder 1, %s10
    %p172 = scmp.lt.s32.totalorder %s10, 9
    %p173 = pnand %p171, %p172
    %p174 = pneg %p173
    // Predicated region
    $region33: #{vit_encoder_forward.14} parent=5 // pred_check
      _
    $region34: #{vit_encoder_forward.14} parent=5 // pred_check_branch
      %176 = sbr.rel (%p173) target = $region36
    $region35: #{vit_encoder_forward.14} parent=5 // pred_region
      %s177 = ssub.s32 %s10, 1
      %p178 = scmp.lt.s32.totalorder %s15, 7
      %s179 = scalar_select %p178, %s15, 7
      %s180 = smul.addr %s179, 9
      %s181 = smul.addr %s180, 4
      %s182 = scalar_lea.vmem %s0, %s181
      %p183 = pneg %p36
      %p184 = pneg %p33
      %p185 = pneg %p57
      %p186 = pneg %p54
      %p187 = pneg %p78
      %p188 = pneg %p75
      %p189 = scmp.lt.s32.totalorder %s15, 7
      %s190 = scalar_select %p189, %s15, 7
      %s191 = smul.addr %s190, 3
      %s192 = smul.addr %s191, 8
      %s193 = scalar_lea.vmem %s3, %s192
      %p194 = pneg %p104
      %p195 = pneg %p101
      %p196 = pneg %p130
      %p197 = pneg %p127
      %p198 = scmp.lt.s32.totalorder %s15, 7
      %s199 = scalar_select %p198, %s15, 7
      %s200 = smul.addr %s199, 3
      %s201 = smul.addr %s200, 8
      %s202 = scalar_lea.vmem %s4, %s201
      %p203 = scmp.lt.s32.totalorder %s15, 7
      %s204 = scalar_select %p203, %s15, 7
      %s205 = smul.addr %s204, 9
      %s206 = smul.addr %s205, 4
      %s207 = scalar_lea.vmem %s0, %s206
      %p208 = scmp.lt.s32.totalorder %s15, 7
      %s209 = scalar_select %p208, %s15, 7
      %s210 = smul.addr %s209, 3
      %s211 = smul.addr %s210, 8
      %s212 = scalar_lea.vmem %s3, %s211
      %p213 = scmp.lt.s32.totalorder %s15, 7
      %s214 = scalar_select %p213, %s15, 7
      %s215 = smul.addr %s214, 3
      %s216 = smul.addr %s215, 8
      %s217 = scalar_lea.vmem %s4, %s216
      %v219 = vld [vmem:[%s207] sm:$0xff]
      %v220 = vld [vmem:[%s207 + $0x8] sm:$0xf]
      %v221 = vld [vmem:[%s207 + $0xc] sm:$0xff]
      %v222 = vld [vmem:[%s207 + $0x14] sm:$0xf]
      %v223 = vld [vmem:[%s207 + $0x18] sm:$0x11]
      %v224 = vld [vmem:[%s207 + $0x20] sm:$0x1]
      %v228 = vunpack.c.l.b16 %v219
      %v229 = vunpack.c.l.b16 %v221
      %v230 = vunpack.c.l.b16 %v223
      %v231 = vpack.c.b16 %v229, %v228
      %v232 = vpack.c.b16 %v230, %v230
      %v233 = vunpack.c.h.b16 %v219
      %v234 = vunpack.c.h.b16 %v221
      %v235 = vunpack.c.h.b16 %v223
      %v236 = vpack.c.b16 %v234, %v233
      %v237 = vpack.c.b16 %v235, %v235
      %vm238 = vcmask 523264
      %v240 = vsel %vm238, %v231, 0
      %v243 = vsel %vm238, %v232, 0
      %v246 = vsel %vm238, %v236, 0
      %v249 = vsel %vm238, %v237, 0
      %251 = vmatprep.subr.bf16.mxu0 0
      %252 = vmatpush1.bf16.xpose.msra.mxu0 0
      %253 = vmatprep.subr.bf16.mxu0 0
      %254 = vmatpush1.bf16.xpose.msra.mxu0 0
      %255 = vmatprep.subr.bf16.mxu0 0
      %256 = vmatpush1.bf16.xpose.msra.mxu0 0
      %257 = vmatprep.subr.bf16.mxu0 0
      %258 = vmatpush1.bf16.xpose.msra.mxu0 0
      %259 = vmatprep.subr.bf16.mxu0 0
      %260 = vmatpush1.bf16.xpose.msra.mxu0 0
      %261 = vmatprep.subr.bf16.mxu0 0
      %262 = vmatpush1.bf16.xpose.msra.mxu0 0
      %263 = vmatprep.subr.bf16.mxu0 0
      %264 = vmatpush1.bf16.xpose.msra.mxu0 %v249
      %265 = vmatprep.subr.bf16.mxu0 0
      %266 = vmatpush1.bf16.xpose.msra.mxu0 %v246
      %267 = vmatprep.subr.bf16.mxu0 0
      %268 = vmatpush2.bf16.xpose.msra.mxu0 0
      %269 = vmatprep.subr.bf16.mxu0 0
      %270 = vmatpush2.bf16.xpose.msra.mxu0 0
      %271 = vmatprep.subr.bf16.mxu0 0
      %272 = vmatpush2.bf16.xpose.msra.mxu0 0
      %273 = vmatprep.subr.bf16.mxu0 0
      %274 = vmatpush2.bf16.xpose.msra.mxu0 0
      %275 = vmatprep.subr.bf16.mxu0 0
      %276 = vmatpush2.bf16.xpose.msra.mxu0 0
      %277 = vmatprep.subr.bf16.mxu0 0
      %278 = vmatpush2.bf16.xpose.msra.mxu0 0
      %279 = vmatprep.subr.bf16.mxu0 0
      %280 = vmatpush2.bf16.xpose.msra.mxu0 0
      %281 = vmatprep.subr.bf16.mxu0 0
      %282 = vmatpush2.bf16.xpose.msra.mxu0 0
      %283 = vmatprep.mubr.bf16.mxu0 0
      %284 = vmatmul.mubr.bf16.gmra.mxu0 %v240
      %v285 = vpop.f32.mrf.mxu0
      %v286 = vadd.f32 0.0, %v285
      %v287 = vpop.f32.mrf.mxu0
      %v288 = vpop.f32.mrf.mxu0
      %v289 = vadd.f32 0.0, %v288
      %v290 = vpop.f32.mrf.mxu0
      %291 = vmatprep.mubr.bf16.mxu0 0
      %292 = vmatmul.mubr.bf16.gmra.mxu0 %v243
      %v293 = vpop.f32.mrf.mxu0
      %v294 = vadd.f32 0.0, %v293
      %v295 = vpop.f32.mrf.mxu0
      %v296 = vpop.f32.mrf.mxu0
      %v297 = vpop.f32.mrf.mxu0
      %298 = vdwg.mxu0
      %v299 = vmul.f32 %v286, 0.125
      %v300 = vmul.f32 %v289, 0.125
      %v301 = vmul.f32 %v294, 0.125
      %vm302 = vcmask 138240
      %v303 = vsel %vm302, %v299, -inf
      %304 = vmax.xlane.f32.xlu0 %v303
      %v305 = vpop.xlane.xlu0 %304
      %v306 = vsel %vm302, %v300, -inf
      %307 = vmax.xlane.f32.xlu0 %v306
      %v308 = vpop.xlane.xlu0 %307
      %vm309 = vcmask 131072
      %v310 = vsel %vm309, %v301, -inf
      %311 = vmax.xlane.f32.xlu0 %v310
      %v312 = vpop.xlane.xlu0 %311
      %v313 = vsub.f32 %v299, %v305
      %v314 = vsub.f32 %v300, %v308
      %v315 = vsub.f32 %v301, %v312
      %v316 = vmul.f32 %v313, 1.442695
      %v317 = vpow.pop %v316
      %v318 = vmul.f32 %v314, 1.442695
      %v319 = vpow.pop %v318
      %v320 = vmul.f32 %v315, 1.442695
      %v321 = vpow.pop %v320
      %v322 = vsel %vm302, %v317, 0.0
      %323 = vadd.xlane.f32.xlu0 %v322
      %v324 = vpop.xlane.xlu0 %323
      %v325 = vsel %vm302, %v319, 0.0
      %326 = vadd.xlane.f32.xlu0 %v325
      %v327 = vpop.xlane.xlu0 %326
      %v328 = vsel %vm309, %v321, 0.0
      %329 = vadd.xlane.f32.xlu0 %v328
      %v330 = vpop.xlane.xlu0 %329
      %v331 = vrcp.pop %v324
      %v332 = vrcp.pop %v327
      %v333 = vrcp.pop %v330
      %v334 = vmul.f32 %v317, %v331
      %v335 = vmul.f32 %v319, %v332
      %v336 = vmul.f32 %v321, %v333
      %v337 = vpack.c.bf16 %v335, %v334
      %v338 = vpack.c.bf16 %v336, %v336
      %v342 = vunpack.c.l.b16 %v220
      %v343 = vunpack.c.l.b16 %v222
      %v344 = vunpack.c.l.b16 %v224
      %v345 = vpack.c.b16 %v343, %v342
      %v346 = vpack.c.b16 %v344, %v344
      %v349 = vsel %vm302, %v337, 0
      %v352 = vsel %vm302, %v338, 0
      %vm354 = vcmask 1040384
      %v355 = vsel 0, 4294967295, 65535
      %v356 = vsel %vm354, %v355, 0
      %v358 = vand.u32 %v346, %v356
      %360 = vmatprep.subr.bf16.mxu0 0
      %361 = vmatpush1.bf16.msra.mxu0 0
      %362 = vmatprep.subr.bf16.mxu0 0
      %363 = vmatpush1.bf16.msra.mxu0 0
      %364 = vmatprep.subr.bf16.mxu0 0
      %365 = vmatpush1.bf16.msra.mxu0 0
      %366 = vmatprep.subr.bf16.mxu0 0
      %367 = vmatpush1.bf16.msra.mxu0 0
      %368 = vmatprep.subr.bf16.mxu0 0
      %369 = vmatpush1.bf16.msra.mxu0 0
      %370 = vmatprep.subr.bf16.mxu0 0
      %371 = vmatpush1.bf16.msra.mxu0 0
      %372 = vmatprep.subr.bf16.mxu0 0
      %373 = vmatpush1.bf16.msra.mxu0 %v358
      %374 = vmatprep.subr.bf16.mxu0 0
      %375 = vmatpush1.bf16.msra.mxu0 %v345
      %376 = vmatprep.subr.bf16.mxu0 0
      %377 = vmatpush2.bf16.msra.mxu0 0
      %378 = vmatprep.subr.bf16.mxu0 0
      %379 = vmatpush2.bf16.msra.mxu0 0
      %380 = vmatprep.subr.bf16.mxu0 0
      %381 = vmatpush2.bf16.msra.mxu0 0
      %382 = vmatprep.subr.bf16.mxu0 0
      %383 = vmatpush2.bf16.msra.mxu0 0
      %384 = vmatprep.subr.bf16.mxu0 0
      %385 = vmatpush2.bf16.msra.mxu0 0
      %386 = vmatprep.subr.bf16.mxu0 0
      %387 = vmatpush2.bf16.msra.mxu0 0
      %388 = vmatprep.subr.bf16.mxu0 0
      %389 = vmatpush2.bf16.msra.mxu0 0
      %390 = vmatprep.subr.bf16.mxu0 0
      %391 = vmatpush2.bf16.msra.mxu0 0
      %392 = vmatprep.mubr.bf16.mxu0 0
      %393 = vmatmul.mubr.bf16.gmra.mxu0 %v349
      %v394 = vpop.f32.mrf.mxu0
      %v395 = vadd.f32 0.0, %v394
      %v396 = vpop.f32.mrf.mxu0
      %v397 = vpop.f32.mrf.mxu0
      %v398 = vadd.f32 0.0, %v397
      %v399 = vpop.f32.mrf.mxu0
      %400 = vmatprep.mubr.bf16.mxu0 0
      %401 = vmatmul.mubr.bf16.gmra.mxu0 %v352
      %v402 = vpop.f32.mrf.mxu0
      %v403 = vadd.f32 0.0, %v402
      %v404 = vpop.f32.mrf.mxu0
      %v405 = vpop.f32.mrf.mxu0
      %v406 = vpop.f32.mrf.mxu0
      %407 = vdwg.mxu0
      %408 = vrot.lane.b32.xlu0 %v231, 64
      %v409 = vpop.permute.xlu0 %408
      %410 = vrot.lane.b32.xlu0 %v232, 64
      %v411 = vpop.permute.xlu0 %410
      %412 = vrot.lane.b32.xlu0 %v236, 64
      %v413 = vpop.permute.xlu0 %412
      %414 = vrot.lane.b32.xlu0 %v237, 64
      %v415 = vpop.permute.xlu0 %414
      %v417 = vsel %vm238, %v409, 0
      %v420 = vsel %vm238, %v411, 0
      %v423 = vsel %vm238, %v413, 0
      %v426 = vsel %vm238, %v415, 0
      %428 = vmatprep.subr.bf16.mxu0 0
      %429 = vmatpush1.bf16.xpose.msra.mxu0 0
      %430 = vmatprep.subr.bf16.mxu0 0
      %431 = vmatpush1.bf16.xpose.msra.mxu0 0
      %432 = vmatprep.subr.bf16.mxu0 0
      %433 = vmatpush1.bf16.xpose.msra.mxu0 0
      %434 = vmatprep.subr.bf16.mxu0 0
      %435 = vmatpush1.bf16.xpose.msra.mxu0 0
      %436 = vmatprep.subr.bf16.mxu0 0
      %437 = vmatpush1.bf16.xpose.msra.mxu0 0
      %438 = vmatprep.subr.bf16.mxu0 0
      %439 = vmatpush1.bf16.xpose.msra.mxu0 0
      %440 = vmatprep.subr.bf16.mxu0 0
      %441 = vmatpush1.bf16.xpose.msra.mxu0 %v426
      %442 = vmatprep.subr.bf16.mxu0 0
      %443 = vmatpush1.bf16.xpose.msra.mxu0 %v423
      %444 = vmatprep.subr.bf16.mxu0 0
      %445 = vmatpush2.bf16.xpose.msra.mxu0 0
      %446 = vmatprep.subr.bf16.mxu0 0
      %447 = vmatpush2.bf16.xpose.msra.mxu0 0
      %448 = vmatprep.subr.bf16.mxu0 0
      %449 = vmatpush2.bf16.xpose.msra.mxu0 0
      %450 = vmatprep.subr.bf16.mxu0 0
      %451 = vmatpush2.bf16.xpose.msra.mxu0 0
      %452 = vmatprep.subr.bf16.mxu0 0
      %453 = vmatpush2.bf16.xpose.msra.mxu0 0
      %454 = vmatprep.subr.bf16.mxu0 0
      %455 = vmatpush2.bf16.xpose.msra.mxu0 0
      %456 = vmatprep.subr.bf16.mxu0 0
      %457 = vmatpush2.bf16.xpose.msra.mxu0 0
      %458 = vmatprep.subr.bf16.mxu0 0
      %459 = vmatpush2.bf16.xpose.msra.mxu0 0
      %460 = vmatprep.mubr.bf16.mxu0 0
      %461 = vmatmul.mubr.bf16.gmra.mxu0 %v417
      %v462 = vpop.f32.mrf.mxu0
      %v463 = vadd.f32 0.0, %v462
      %v464 = vpop.f32.mrf.mxu0
      %v465 = vpop.f32.mrf.mxu0
      %v466 = vadd.f32 0.0, %v465
      %v467 = vpop.f32.mrf.mxu0
      %468 = vmatprep.mubr.bf16.mxu0 0
      %469 = vmatmul.mubr.bf16.gmra.mxu0 %v420
      %v470 = vpop.f32.mrf.mxu0
      %v471 = vadd.f32 0.0, %v470
      %v472 = vpop.f32.mrf.mxu0
      %v473 = vpop.f32.mrf.mxu0
      %v474 = vpop.f32.mrf.mxu0
      %475 = vdwg.mxu0
      %v476 = vmul.f32 %v463, 0.125
      %v477 = vmul.f32 %v466, 0.125
      %v478 = vmul.f32 %v471, 0.125
      %v479 = vsel %vm302, %v476, -inf
      %480 = vmax.xlane.f32.xlu0 %v479
      %v481 = vpop.xlane.xlu0 %480
      %v482 = vsel %vm302, %v477, -inf
      %483 = vmax.xlane.f32.xlu0 %v482
      %v484 = vpop.xlane.xlu0 %483
      %v485 = vsel %vm309, %v478, -inf
      %486 = vmax.xlane.f32.xlu0 %v485
      %v487 = vpop.xlane.xlu0 %486
      %v488 = vsub.f32 %v476, %v481
      %v489 = vsub.f32 %v477, %v484
      %v490 = vsub.f32 %v478, %v487
      %v491 = vmul.f32 %v488, 1.442695
      %v492 = vpow.pop %v491
      %v493 = vmul.f32 %v489, 1.442695
      %v494 = vpow.pop %v493
      %v495 = vmul.f32 %v490, 1.442695
      %v496 = vpow.pop %v495
      %v497 = vsel %vm302, %v492, 0.0
      %498 = vadd.xlane.f32.xlu0 %v497
      %v499 = vpop.xlane.xlu0 %498
      %v500 = vsel %vm302, %v494, 0.0
      %501 = vadd.xlane.f32.xlu0 %v500
      %v502 = vpop.xlane.xlu0 %501
      %v503 = vsel %vm309, %v496, 0.0
      %504 = vadd.xlane.f32.xlu0 %v503
      %v505 = vpop.xlane.xlu0 %504
      %v506 = vrcp.pop %v499
      %v507 = vrcp.pop %v502
      %v508 = vrcp.pop %v505
      %v509 = vmul.f32 %v492, %v506
      %v510 = vmul.f32 %v494, %v507
      %v511 = vmul.f32 %v496, %v508
      %v512 = vpack.c.bf16 %v510, %v509
      %v513 = vpack.c.bf16 %v511, %v511
      %514 = vrot.lane.b32.xlu0 %v345, 64
      %v515 = vpop.permute.xlu0 %514
      %516 = vrot.lane.b32.xlu0 %v346, 64
      %v517 = vpop.permute.xlu0 %516
      %v520 = vsel %vm302, %v512, 0
      %v523 = vsel %vm302, %v513, 0
      %v526 = vand.u32 %v517, %v356
      %528 = vmatprep.subr.bf16.mxu0 0
      %529 = vmatpush1.bf16.msra.mxu0 0
      %530 = vmatprep.subr.bf16.mxu0 0
      %531 = vmatpush1.bf16.msra.mxu0 0
      %532 = vmatprep.subr.bf16.mxu0 0
      %533 = vmatpush1.bf16.msra.mxu0 0
      %534 = vmatprep.subr.bf16.mxu0 0
      %535 = vmatpush1.bf16.msra.mxu0 0
      %536 = vmatprep.subr.bf16.mxu0 0
      %537 = vmatpush1.bf16.msra.mxu0 0
      %538 = vmatprep.subr.bf16.mxu0 0
      %539 = vmatpush1.bf16.msra.mxu0 0
      %540 = vmatprep.subr.bf16.mxu0 0
      %541 = vmatpush1.bf16.msra.mxu0 %v526
      %542 = vmatprep.subr.bf16.mxu0 0
      %543 = vmatpush1.bf16.msra.mxu0 %v515
      %544 = vmatprep.subr.bf16.mxu0 0
      %545 = vmatpush2.bf16.msra.mxu0 0
      %546 = vmatprep.subr.bf16.mxu0 0
      %547 = vmatpush2.bf16.msra.mxu0 0
      %548 = vmatprep.subr.bf16.mxu0 0
      %549 = vmatpush2.bf16.msra.mxu0 0
      %550 = vmatprep.subr.bf16.mxu0 0
      %551 = vmatpush2.bf16.msra.mxu0 0
      %552 = vmatprep.subr.bf16.mxu0 0
      %553 = vmatpush2.bf16.msra.mxu0 0
      %554 = vmatprep.subr.bf16.mxu0 0
      %555 = vmatpush2.bf16.msra.mxu0 0
      %556 = vmatprep.subr.bf16.mxu0 0
      %557 = vmatpush2.bf16.msra.mxu0 0
      %558 = vmatprep.subr.bf16.mxu0 0
      %559 = vmatpush2.bf16.msra.mxu0 0
      %560 = vmatprep.mubr.bf16.mxu0 0
      %561 = vmatmul.mubr.bf16.gmra.mxu0 %v520
      %v562 = vpop.f32.mrf.mxu0
      %v563 = vadd.f32 0.0, %v562
      %v564 = vpop.f32.mrf.mxu0
      %v565 = vpop.f32.mrf.mxu0
      %v566 = vadd.f32 0.0, %v565
      %v567 = vpop.f32.mrf.mxu0
      %568 = vmatprep.mubr.bf16.mxu0 0
      %569 = vmatmul.mubr.bf16.gmra.mxu0 %v523
      %v570 = vpop.f32.mrf.mxu0
      %v571 = vadd.f32 0.0, %v570
      %v572 = vpop.f32.mrf.mxu0
      %v573 = vpop.f32.mrf.mxu0
      %v574 = vpop.f32.mrf.mxu0
      %575 = vdwg.mxu0
      %579 = vrot.lane.b32.xlu0 %v563, 64
      %v580 = vpop.permute.xlu0 %579
      %581 = vrot.lane.b32.xlu0 %v566, 64
      %v582 = vpop.permute.xlu0 %581
      %583 = vrot.lane.b32.xlu0 %v571, 64
      %v584 = vpop.permute.xlu0 %583
      %v588 = vsel %vm238, %v395, %v580
      %v589 = vsel %vm238, %v398, %v582
      %v590 = vsel %vm238, %v403, %v584
      %v591 = vpack.c.bf16 %v589, %v588
      %v592 = vpack.c.bf16 %v590, %v590
      %v593 = vld [vmem:[%s1] sm:$0xf]
      %v594 = vld [vmem:[%s1 + $0x4] sm:$0xf]
      %v595 = vld [vmem:[%s1 + $0x8] sm:$0xf]
      %v596 = vld [vmem:[%s1 + $0xc] sm:$0xf]
      %v597 = vld [vmem:[%s1 + $0x10] sm:$0xf]
      %v598 = vld [vmem:[%s1 + $0x14] sm:$0xf]
      %v599 = vld [vmem:[%s1 + $0x18] sm:$0xf]
      %v600 = vld [vmem:[%s1 + $0x1c] sm:$0xf]
      %v601 = vld [vmem:[%s1 + $0x20] sm:$0xf]
      %v602 = vld [vmem:[%s1 + $0x24] sm:$0xf]
      %v603 = vld [vmem:[%s1 + $0x28] sm:$0xf]
      %v604 = vld [vmem:[%s1 + $0x2c] sm:$0xf]
      %v605 = vld [vmem:[%s1 + $0x30] sm:$0xf]
      %v606 = vld [vmem:[%s1 + $0x34] sm:$0xf]
      %v607 = vld [vmem:[%s1 + $0x38] sm:$0xf]
      %v608 = vld [vmem:[%s1 + $0x3c] sm:$0xf]
      %v609 = vld [vmem:[%s2] sm:$0x1]
      %v611 = vlaneseq
      %v612 = vshrl.u32 %v611, 7
      %v613 = vsub.s32 0, %v612
      %v614 = vrot.slane %v609, %v613
      %v632 = vunpack.c.l.b16 %v593
      %v633 = vunpack.c.l.b16 %v594
      %v634 = vunpack.c.l.b16 %v595
      %v635 = vunpack.c.l.b16 %v596
      %v636 = vunpack.c.l.b16 %v597
      %v637 = vunpack.c.l.b16 %v598
      %v638 = vunpack.c.l.b16 %v599
      %v639 = vunpack.c.l.b16 %v600
      %v640 = vunpack.c.l.b16 %v601
      %v641 = vunpack.c.l.b16 %v602
      %v642 = vunpack.c.l.b16 %v603
      %v643 = vunpack.c.l.b16 %v604
      %v644 = vunpack.c.l.b16 %v605
      %v645 = vunpack.c.l.b16 %v606
      %v646 = vunpack.c.l.b16 %v607
      %v647 = vunpack.c.l.b16 %v608
      %v648 = vpack.c.b16 %v633, %v632
      %v649 = vpack.c.b16 %v635, %v634
      %v650 = vpack.c.b16 %v637, %v636
      %v651 = vpack.c.b16 %v639, %v638
      %v652 = vpack.c.b16 %v641, %v640
      %v653 = vpack.c.b16 %v643, %v642
      %v654 = vpack.c.b16 %v645, %v644
      %v655 = vpack.c.b16 %v647, %v646
      %664 = vmatprep.subr.bf16.mxu0 0
      %665 = vmatpush1.bf16.msra.mxu0 %v655
      %666 = vmatprep.subr.bf16.mxu0 0
      %667 = vmatpush1.bf16.msra.mxu0 %v654
      %668 = vmatprep.subr.bf16.mxu0 0
      %669 = vmatpush1.bf16.msra.mxu0 %v653
      %670 = vmatprep.subr.bf16.mxu0 0
      %671 = vmatpush1.bf16.msra.mxu0 %v652
      %672 = vmatprep.subr.bf16.mxu0 0
      %673 = vmatpush1.bf16.msra.mxu0 %v651
      %674 = vmatprep.subr.bf16.mxu0 0
      %675 = vmatpush1.bf16.msra.mxu0 %v650
      %676 = vmatprep.subr.bf16.mxu0 0
      %677 = vmatpush1.bf16.msra.mxu0 %v649
      %678 = vmatprep.subr.bf16.mxu0 0
      %679 = vmatpush1.bf16.msra.mxu0 %v648
      %680 = vmatprep.subr.bf16.mxu0 0
      %681 = vmatpush2.bf16.msra.mxu0 0
      %682 = vmatprep.subr.bf16.mxu0 0
      %683 = vmatpush2.bf16.msra.mxu0 0
      %684 = vmatprep.subr.bf16.mxu0 0
      %685 = vmatpush2.bf16.msra.mxu0 0
      %686 = vmatprep.subr.bf16.mxu0 0
      %687 = vmatpush2.bf16.msra.mxu0 0
      %688 = vmatprep.subr.bf16.mxu0 0
      %689 = vmatpush2.bf16.msra.mxu0 0
      %690 = vmatprep.subr.bf16.mxu0 0
      %691 = vmatpush2.bf16.msra.mxu0 0
      %692 = vmatprep.subr.bf16.mxu0 0
      %693 = vmatpush2.bf16.msra.mxu0 0
      %694 = vmatprep.subr.bf16.mxu0 0
      %695 = vmatpush2.bf16.msra.mxu0 0
      %696 = vmatprep.mubr.bf16.mxu0 0
      %697 = vmatmul.mubr.bf16.gmra.mxu0 %v591
      %v698 = vpop.f32.mrf.mxu0
      %v699 = vadd.f32 %v614, %v698
      %v700 = vpop.f32.mrf.mxu0
      %v701 = vpop.f32.mrf.mxu0
      %v702 = vadd.f32 %v614, %v701
      %v703 = vpop.f32.mrf.mxu0
      %704 = vmatprep.mubr.bf16.mxu0 0
      %705 = vmatmul.mubr.bf16.gmra.mxu0 %v592
      %v706 = vpop.f32.mrf.mxu0
      %v707 = vadd.f32 %v614, %v706
      %v708 = vpop.f32.mrf.mxu0
      %v709 = vpop.f32.mrf.mxu0
      %v710 = vpop.f32.mrf.mxu0
      %711 = vdwg.mxu0
      %v712 = vld [vmem:[%s212] sm:$0xff]
      %v713 = vld [vmem:[%s212 + $0x8] sm:$0xff]
      %v714 = vld [vmem:[%s212 + $0x10] sm:$0x1]
      %v715 = vadd.f32 %v699, %v712
      %v716 = vadd.f32 %v702, %v713
      %v717 = vadd.f32 %v707, %v714
      %718 = vst [vmem:[%s217] sm:$0xff] %v715
      %719 = vst [vmem:[%s217 + $0x8] sm:$0xff] %v716
      %720 = vst [vmem:[%s217 + $0x10] sm:$0x1] %v717
      %p721 = scmp.lt.s32.totalorder %s15, 7
      %s722 = scalar_select %p721, %s15, 7
      %s723 = smul.addr %s722, 3
      %s724 = smul.addr %s723, 8
      %s725 = scalar_lea.vmem %s4, %s724
      // Predicated region
      $region37: #{vit_encoder_forward.14} parent=35 // pred_check
        %p726 = pneg %p127
      $region38: #{vit_encoder_forward.14} parent=35 // pred_check_branch
        %728 = sbr.rel (%p726) target = $region40
      $region39: #{vit_encoder_forward.14} parent=35 // pred_region
        _
      $region40: #{vit_encoder_forward.14} parent=35 // pred_fallthru
        _
    $region36: #{vit_encoder_forward.14} parent=5 // pred_fallthru
      _
    %p729 = scmp.le.s32.totalorder 2, %s10
    // Predicated region
    $region41: #{vit_encoder_forward.14} parent=5 // pred_check
      %p730 = pneg %p729
    $region42: #{vit_encoder_forward.14} parent=5 // pred_check_branch
      %732 = sbr.rel (%p730) target = $region44
    $region43: #{vit_encoder_forward.14} parent=5 // pred_region
      %s733 = ssub.s32 %s10, 2
      // Predicated region
      $region45: #{vit_encoder_forward.14} parent=43 // pred_check
        %p734 = pneg %p133
      $region46: #{vit_encoder_forward.14} parent=43 // pred_check_branch
        %736 = sbr.rel (%p734) target = $region48
      $region47: #{vit_encoder_forward.14} parent=43 // pred_region
        %p737 = scmp.lt.s32.totalorder %s16, 7
        %s738 = scalar_select %p737, %s16, 7
        %s739 = smul.addr %s738, 3
        %s740 = smul.addr %s739, 8
        %s741 = scalar_lea.vmem %s4, %s740
      $region48: #{vit_encoder_forward.14} parent=43 // pred_fallthru
        _
    $region44: #{vit_encoder_forward.14} parent=5 // pred_fallthru
      _
  $region6: #{vit_encoder_forward.14} parent=0 // loop_footer
    %s14 = sadd.s32 1, %s10
  $region7: #{vit_encoder_forward.14} parent=0 // loop_footer_branch
    %9 = sbr.rel target = $region3
  $region8: #{vit_encoder_forward.14} parent=0 // loop_exit
    _

// kernel: vit_encoder_forward.19
$region0: #{vit_encoder_forward.19}
  #allocation0 [shape = 'u32[]', space=smem, size = 0x4, offset = 0x4, fixed_abs, tag = 'smem constant byte address 0x4 - core index']
  #allocation1 [shape = 'u32[144,128]{1,0:T(1,128)}', space=vmem, size = 0x12000, scoped, tag = 'internal scratch']
  %s0 = inlined_call_operand.vmem [shape: f32[8,17,128], index: 0, kind: input, shape index: {}]
  %s1 = inlined_call_operand.vmem [shape: f32[1,1,128], index: 1, kind: input, shape index: {}]
  %s2 = inlined_call_operand.vmem [shape: f32[1,1,128], index: 2, kind: input, shape index: {}]
  %s3 = inlined_call_operand.vmem [shape: f32[8,128], index: 3, kind: output, shape index: {}]
  %s4 = sld [smem:[#allocation0]]
  $region22: #{vit_encoder_forward.19} parent=0
    _
  %s6 = ssub.s32 1, %s4
  %s7 = scalar_select 0, %s6, %s4
  // Predicated region
  $region2: #{vit_encoder_forward.19} parent=0 // pred_check
    _
  $region3: #{vit_encoder_forward.19} parent=0 // pred_check_branch
    %9 = sbr.rel (0) target = $region5
  $region4: #{vit_encoder_forward.19} parent=0 // pred_region
    _
  $region5: #{vit_encoder_forward.19} parent=0 // pred_fallthru
    _
  // Predicated region
  $region6: #{vit_encoder_forward.19} parent=0 // pred_check
    _
  $region7: #{vit_encoder_forward.19} parent=0 // pred_check_branch
    %11 = sbr.rel (0) target = $region9
  $region8: #{vit_encoder_forward.19} parent=0 // pred_region
    _
  $region9: #{vit_encoder_forward.19} parent=0 // pred_fallthru
    _
  // Predicated region
  $region10: #{vit_encoder_forward.19} parent=0 // pred_check
    _
  $region11: #{vit_encoder_forward.19} parent=0 // pred_check_branch
    %13 = sbr.rel (0) target = $region13
  $region12: #{vit_encoder_forward.19} parent=0 // pred_region
    _
  $region13: #{vit_encoder_forward.19} parent=0 // pred_fallthru
    _
  %v14 = vld [vmem:[%s0] sm:$0xff]
  %v15 = vld [vmem:[%s0 + $0x8] sm:$0xff]
  %v16 = vld [vmem:[%s0 + $0x10] sm:$0x1]
  %v17 = vld [vmem:[%s0 + $0x18] sm:$0xff]
  %v18 = vld [vmem:[%s0 + $0x20] sm:$0xff]
  %v19 = vld [vmem:[%s0 + $0x28] sm:$0x1]
  %v20 = vld [vmem:[%s0 + $0x30] sm:$0xff]
  %v21 = vld [vmem:[%s0 + $0x38] sm:$0xff]
  %v22 = vld [vmem:[%s0 + $0x40] sm:$0x1]
  %v23 = vld [vmem:[%s0 + $0x48] sm:$0xff]
  %v24 = vld [vmem:[%s0 + $0x50] sm:$0xff]
  %v25 = vld [vmem:[%s0 + $0x58] sm:$0x1]
  %v26 = vld [vmem:[%s0 + $0x60] sm:$0xff]
  %v27 = vld [vmem:[%s0 + $0x68] sm:$0xff]
  %v28 = vld [vmem:[%s0 + $0x70] sm:$0x1]
  %v29 = vld [vmem:[%s0 + $0x78] sm:$0xff]
  %v30 = vld [vmem:[%s0 + $0x80] sm:$0xff]
  %v31 = vld [vmem:[%s0 + $0x88] sm:$0x1]
  %v32 = vld [vmem:[%s0 + $0x90] sm:$0xff]
  %v33 = vld [vmem:[%s0 + $0x98] sm:$0xff]
  %v34 = vld [vmem:[%s0 + $0xa0] sm:$0x1]
  %v35 = vld [vmem:[%s0 + $0xa8] sm:$0xff]
  %v36 = vld [vmem:[%s0 + $0xb0] sm:$0xff]
  %v37 = vld [vmem:[%s0 + $0xb8] sm:$0x1]
  %38 = vadd.xlane.f32.xlu0 %v14
  %v39 = vpop.xlane.xlu0 %38
  %40 = vadd.xlane.f32.xlu0 %v15
  %v41 = vpop.xlane.xlu0 %40
  %vm42 = vcmask 1040384
  %v43 = vsel %vm42, %v16, 0.0
  %44 = vadd.xlane.f32.xlu0 %v43
  %v45 = vpop.xlane.xlu0 %44
  %46 = vadd.xlane.f32.xlu0 %v17
  %v47 = vpop.xlane.xlu0 %46
  %48 = vadd.xlane.f32.xlu0 %v18
  %v49 = vpop.xlane.xlu0 %48
  %v50 = vsel %vm42, %v19, 0.0
  %51 = vadd.xlane.f32.xlu0 %v50
  %v52 = vpop.xlane.xlu0 %51
  %53 = vadd.xlane.f32.xlu0 %v20
  %v54 = vpop.xlane.xlu0 %53
  %55 = vadd.xlane.f32.xlu0 %v21
  %v56 = vpop.xlane.xlu0 %55
  %v57 = vsel %vm42, %v22, 0.0
  %58 = vadd.xlane.f32.xlu0 %v57
  %v59 = vpop.xlane.xlu0 %58
  %60 = vadd.xlane.f32.xlu0 %v23
  %v61 = vpop.xlane.xlu0 %60
  %62 = vadd.xlane.f32.xlu0 %v24
  %v63 = vpop.xlane.xlu0 %62
  %v64 = vsel %vm42, %v25, 0.0
  %65 = vadd.xlane.f32.xlu0 %v64
  %v66 = vpop.xlane.xlu0 %65
  %67 = vadd.xlane.f32.xlu0 %v26
  %v68 = vpop.xlane.xlu0 %67
  %69 = vadd.xlane.f32.xlu0 %v27
  %v70 = vpop.xlane.xlu0 %69
  %v71 = vsel %vm42, %v28, 0.0
  %72 = vadd.xlane.f32.xlu0 %v71
  %v73 = vpop.xlane.xlu0 %72
  %74 = vadd.xlane.f32.xlu0 %v29
  %v75 = vpop.xlane.xlu0 %74
  %76 = vadd.xlane.f32.xlu0 %v30
  %v77 = vpop.xlane.xlu0 %76
  %v78 = vsel %vm42, %v31, 0.0
  %79 = vadd.xlane.f32.xlu0 %v78
  %v80 = vpop.xlane.xlu0 %79
  %81 = vadd.xlane.f32.xlu0 %v32
  %v82 = vpop.xlane.xlu0 %81
  %83 = vadd.xlane.f32.xlu0 %v33
  %v84 = vpop.xlane.xlu0 %83
  %v85 = vsel %vm42, %v34, 0.0
  %86 = vadd.xlane.f32.xlu0 %v85
  %v87 = vpop.xlane.xlu0 %86
  %88 = vadd.xlane.f32.xlu0 %v35
  %v89 = vpop.xlane.xlu0 %88
  %90 = vadd.xlane.f32.xlu0 %v36
  %v91 = vpop.xlane.xlu0 %90
  %v92 = vsel %vm42, %v37, 0.0
  %93 = vadd.xlane.f32.xlu0 %v92
  %v94 = vpop.xlane.xlu0 %93
  %v95 = vrcp.pop 128.0
  %v96 = vmul.f32 %v39, %v95
  %v97 = vmul.f32 %v41, %v95
  %v98 = vmul.f32 %v45, %v95
  %v99 = vmul.f32 %v47, %v95
  %v100 = vmul.f32 %v49, %v95
  %v101 = vmul.f32 %v52, %v95
  %v102 = vmul.f32 %v54, %v95
  %v103 = vmul.f32 %v56, %v95
  %v104 = vmul.f32 %v59, %v95
  %v105 = vmul.f32 %v61, %v95
  %v106 = vmul.f32 %v63, %v95
  %v107 = vmul.f32 %v66, %v95
  %v108 = vmul.f32 %v68, %v95
  %v109 = vmul.f32 %v70, %v95
  %v110 = vmul.f32 %v73, %v95
  %v111 = vmul.f32 %v75, %v95
  %v112 = vmul.f32 %v77, %v95
  %v113 = vmul.f32 %v80, %v95
  %v114 = vmul.f32 %v82, %v95
  %v115 = vmul.f32 %v84, %v95
  %v116 = vmul.f32 %v87, %v95
  %v117 = vmul.f32 %v89, %v95
  %v118 = vmul.f32 %v91, %v95
  %v119 = vmul.f32 %v94, %v95
  %v120 = vsub.f32 %v14, %v96
  %v121 = vsub.f32 %v15, %v97
  %v122 = vsub.f32 %v16, %v98
  %v123 = vsub.f32 %v17, %v99
  %v124 = vsub.f32 %v18, %v100
  %v125 = vsub.f32 %v19, %v101
  %v126 = vsub.f32 %v20, %v102
  %v127 = vsub.f32 %v21, %v103
  %v128 = vsub.f32 %v22, %v104
  %v129 = vsub.f32 %v23, %v105
  %v130 = vsub.f32 %v24, %v106
  %v131 = vsub.f32 %v25, %v107
  %v132 = vsub.f32 %v26, %v108
  %v133 = vsub.f32 %v27, %v109
  %v134 = vsub.f32 %v28, %v110
  %v135 = vsub.f32 %v29, %v111
  %v136 = vsub.f32 %v30, %v112
  %v137 = vsub.f32 %v31, %v113
  %v138 = vsub.f32 %v32, %v114
  %v139 = vsub.f32 %v33, %v115
  %v140 = vsub.f32 %v34, %v116
  %v141 = vsub.f32 %v35, %v117
  %v142 = vsub.f32 %v36, %v118
  %v143 = vsub.f32 %v37, %v119
  %v144 = vmul.f32 %v120, %v120
  %v145 = vmul.f32 %v121, %v121
  %v146 = vmul.f32 %v122, %v122
  %v147 = vmul.f32 %v123, %v123
  %v148 = vmul.f32 %v124, %v124
  %v149 = vmul.f32 %v125, %v125
  %v150 = vmul.f32 %v126, %v126
  %v151 = vmul.f32 %v127, %v127
  %v152 = vmul.f32 %v128, %v128
  %v153 = vmul.f32 %v129, %v129
  %v154 = vmul.f32 %v130, %v130
  %v155 = vmul.f32 %v131, %v131
  %v156 = vmul.f32 %v132, %v132
  %v157 = vmul.f32 %v133, %v133
  %v158 = vmul.f32 %v134, %v134
  %v159 = vmul.f32 %v135, %v135
  %v160 = vmul.f32 %v136, %v136
  %v161 = vmul.f32 %v137, %v137
  %v162 = vmul.f32 %v138, %v138
  %v163 = vmul.f32 %v139, %v139
  %v164 = vmul.f32 %v140, %v140
  %v165 = vmul.f32 %v141, %v141
  %v166 = vmul.f32 %v142, %v142
  %v167 = vmul.f32 %v143, %v143
  %168 = vadd.xlane.f32.xlu0 %v144
  %v169 = vpop.xlane.xlu0 %168
  %170 = vadd.xlane.f32.xlu0 %v145
  %v171 = vpop.xlane.xlu0 %170
  %v172 = vsel %vm42, %v146, 0.0
  %173 = vadd.xlane.f32.xlu0 %v172
  %v174 = vpop.xlane.xlu0 %173
  %175 = vadd.xlane.f32.xlu0 %v147
  %v176 = vpop.xlane.xlu0 %175
  %177 = vadd.xlane.f32.xlu0 %v148
  %v178 = vpop.xlane.xlu0 %177
  %v179 = vsel %vm42, %v149, 0.0
  %180 = vadd.xlane.f32.xlu0 %v179
  %v181 = vpop.xlane.xlu0 %180
  %182 = vadd.xlane.f32.xlu0 %v150
  %v183 = vpop.xlane.xlu0 %182
  %184 = vadd.xlane.f32.xlu0 %v151
  %v185 = vpop.xlane.xlu0 %184
  %v186 = vsel %vm42, %v152, 0.0
  %187 = vadd.xlane.f32.xlu0 %v186
  %v188 = vpop.xlane.xlu0 %187
  %189 = vadd.xlane.f32.xlu0 %v153
  %v190 = vpop.xlane.xlu0 %189
  %191 = vadd.xlane.f32.xlu0 %v154
  %v192 = vpop.xlane.xlu0 %191
  %v193 = vsel %vm42, %v155, 0.0
  %194 = vadd.xlane.f32.xlu0 %v193
  %v195 = vpop.xlane.xlu0 %194
  %196 = vadd.xlane.f32.xlu0 %v156
  %v197 = vpop.xlane.xlu0 %196
  %198 = vadd.xlane.f32.xlu0 %v157
  %v199 = vpop.xlane.xlu0 %198
  %v200 = vsel %vm42, %v158, 0.0
  %201 = vadd.xlane.f32.xlu0 %v200
  %v202 = vpop.xlane.xlu0 %201
  %203 = vadd.xlane.f32.xlu0 %v159
  %v204 = vpop.xlane.xlu0 %203
  %205 = vadd.xlane.f32.xlu0 %v160
  %v206 = vpop.xlane.xlu0 %205
  %v207 = vsel %vm42, %v161, 0.0
  %208 = vadd.xlane.f32.xlu0 %v207
  %v209 = vpop.xlane.xlu0 %208
  %210 = vadd.xlane.f32.xlu0 %v162
  %v211 = vpop.xlane.xlu0 %210
  %212 = vadd.xlane.f32.xlu0 %v163
  %v213 = vpop.xlane.xlu0 %212
  %v214 = vsel %vm42, %v164, 0.0
  %215 = vadd.xlane.f32.xlu0 %v214
  %v216 = vpop.xlane.xlu0 %215
  %217 = vadd.xlane.f32.xlu0 %v165
  %v218 = vpop.xlane.xlu0 %217
  %219 = vadd.xlane.f32.xlu0 %v166
  %v220 = vpop.xlane.xlu0 %219
  %v221 = vsel %vm42, %v167, 0.0
  %222 = vadd.xlane.f32.xlu0 %v221
  %v223 = vpop.xlane.xlu0 %222
  %v224 = vmul.f32 %v169, %v95
  %v225 = vmul.f32 %v171, %v95
  %v226 = vmul.f32 %v174, %v95
  %v227 = vmul.f32 %v176, %v95
  %v228 = vmul.f32 %v178, %v95
  %v229 = vmul.f32 %v181, %v95
  %v230 = vmul.f32 %v183, %v95
  %v231 = vmul.f32 %v185, %v95
  %v232 = vmul.f32 %v188, %v95
  %v233 = vmul.f32 %v190, %v95
  %v234 = vmul.f32 %v192, %v95
  %v235 = vmul.f32 %v195, %v95
  %v236 = vmul.f32 %v197, %v95
  %v237 = vmul.f32 %v199, %v95
  %v238 = vmul.f32 %v202, %v95
  %v239 = vmul.f32 %v204, %v95
  %v240 = vmul.f32 %v206, %v95
  %v241 = vmul.f32 %v209, %v95
  %v242 = vmul.f32 %v211, %v95
  %v243 = vmul.f32 %v213, %v95
  %v244 = vmul.f32 %v216, %v95
  %v245 = vmul.f32 %v218, %v95
  %v246 = vmul.f32 %v220, %v95
  %v247 = vmul.f32 %v223, %v95
  %v248 = vadd.f32 %v224, 1e-12
  %v249 = vadd.f32 %v225, 1e-12
  %v250 = vadd.f32 %v226, 1e-12
  %v251 = vadd.f32 %v227, 1e-12
  %v252 = vadd.f32 %v228, 1e-12
  %v253 = vadd.f32 %v229, 1e-12
  %v254 = vadd.f32 %v230, 1e-12
  %v255 = vadd.f32 %v231, 1e-12
  %v256 = vadd.f32 %v232, 1e-12
  %v257 = vadd.f32 %v233, 1e-12
  %v258 = vadd.f32 %v234, 1e-12
  %v259 = vadd.f32 %v235, 1e-12
  %v260 = vadd.f32 %v236, 1e-12
  %v261 = vadd.f32 %v237, 1e-12
  %v262 = vadd.f32 %v238, 1e-12
  %v263 = vadd.f32 %v239, 1e-12
  %v264 = vadd.f32 %v240, 1e-12
  %v265 = vadd.f32 %v241, 1e-12
  %v266 = vadd.f32 %v242, 1e-12
  %v267 = vadd.f32 %v243, 1e-12
  %v268 = vadd.f32 %v244, 1e-12
  %v269 = vadd.f32 %v245, 1e-12
  %v270 = vadd.f32 %v246, 1e-12
  %v271 = vadd.f32 %v247, 1e-12
  %v272 = vrsqrt.pop %v248
  %v273 = vrsqrt.pop %v249
  %v274 = vrsqrt.pop %v250
  %v275 = vrsqrt.pop %v251
  %v276 = vrsqrt.pop %v252
  %v277 = vrsqrt.pop %v253
  %v278 = vrsqrt.pop %v254
  %v279 = vrsqrt.pop %v255
  %v280 = vrsqrt.pop %v256
  %v281 = vrsqrt.pop %v257
  %v282 = vrsqrt.pop %v258
  %v283 = vrsqrt.pop %v259
  %v284 = vrsqrt.pop %v260
  %v285 = vrsqrt.pop %v261
  %v286 = vrsqrt.pop %v262
  %v287 = vrsqrt.pop %v263
  %v288 = vrsqrt.pop %v264
  %v289 = vrsqrt.pop %v265
  %v290 = vrsqrt.pop %v266
  %v291 = vrsqrt.pop %v267
  %v292 = vrsqrt.pop %v268
  %v293 = vrsqrt.pop %v269
  %v294 = vrsqrt.pop %v270
  %v295 = vrsqrt.pop %v271
  %v296 = vmul.f32 %v120, %v272
  %v297 = vmul.f32 %v121, %v273
  %v298 = vmul.f32 %v122, %v274
  %v299 = vmul.f32 %v123, %v275
  %v300 = vmul.f32 %v124, %v276
  %v301 = vmul.f32 %v125, %v277
  %v302 = vmul.f32 %v126, %v278
  %v303 = vmul.f32 %v127, %v279
  %v304 = vmul.f32 %v128, %v280
  %v305 = vmul.f32 %v129, %v281
  %v306 = vmul.f32 %v130, %v282
  %v307 = vmul.f32 %v131, %v283
  %v308 = vmul.f32 %v132, %v284
  %v309 = vmul.f32 %v133, %v285
  %v310 = vmul.f32 %v134, %v286
  %v311 = vmul.f32 %v135, %v287
  %v312 = vmul.f32 %v136, %v288
  %v313 = vmul.f32 %v137, %v289
  %v314 = vmul.f32 %v138, %v290
  %v315 = vmul.f32 %v139, %v291
  %v316 = vmul.f32 %v140, %v292
  %v317 = vmul.f32 %v141, %v293
  %v318 = vmul.f32 %v142, %v294
  %v319 = vmul.f32 %v143, %v295
  %v320 = vld [vmem:[%s1] sm:$0x1]
  %v322 = vlaneseq
  %v323 = vshrl.u32 %v322, 7
  %v324 = vsub.s32 0, %v323
  %v325 = vrot.slane %v320, %v324
  %v327 = vmul.f32 %v296, %v325
  %v328 = vmul.f32 %v297, %v325
  %v329 = vmul.f32 %v298, %v325
  %v330 = vmul.f32 %v299, %v325
  %v331 = vmul.f32 %v300, %v325
  %v332 = vmul.f32 %v301, %v325
  %v333 = vmul.f32 %v302, %v325
  %v334 = vmul.f32 %v303, %v325
  %v335 = vmul.f32 %v304, %v325
  %v336 = vmul.f32 %v305, %v325
  %v337 = vmul.f32 %v306, %v325
  %v338 = vmul.f32 %v307, %v325
  %v339 = vmul.f32 %v308, %v325
  %v340 = vmul.f32 %v309, %v325
  %v341 = vmul.f32 %v310, %v325
  %v342 = vmul.f32 %v311, %v325
  %v343 = vmul.f32 %v312, %v325
  %v344 = vmul.f32 %v313, %v325
  %v345 = vmul.f32 %v314, %v325
  %v346 = vmul.f32 %v315, %v325
  %v347 = vmul.f32 %v316, %v325
  %v348 = vmul.f32 %v317, %v325
  %v349 = vmul.f32 %v318, %v325
  %v350 = vmul.f32 %v319, %v325
  %v351 = vld [vmem:[%s2] sm:$0x1]
  %v353 = vlaneseq
  %v354 = vshrl.u32 %v353, 7
  %v355 = vsub.s32 0, %v354
  %v356 = vrot.slane %v351, %v355
  %v358 = vadd.f32 %v327, %v356
  %v359 = vadd.f32 %v328, %v356
  %v360 = vadd.f32 %v329, %v356
  %v361 = vadd.f32 %v330, %v356
  %v362 = vadd.f32 %v331, %v356
  %v363 = vadd.f32 %v332, %v356
  %v364 = vadd.f32 %v333, %v356
  %v365 = vadd.f32 %v334, %v356
  %v366 = vadd.f32 %v335, %v356
  %v367 = vadd.f32 %v336, %v356
  %v368 = vadd.f32 %v337, %v356
  %v369 = vadd.f32 %v338, %v356
  %v370 = vadd.f32 %v339, %v356
  %v371 = vadd.f32 %v340, %v356
  %v372 = vadd.f32 %v341, %v356
  %v373 = vadd.f32 %v342, %v356
  %v374 = vadd.f32 %v343, %v356
  %v375 = vadd.f32 %v344, %v356
  %v376 = vadd.f32 %v345, %v356
  %v377 = vadd.f32 %v346, %v356
  %v378 = vadd.f32 %v347, %v356
  %v379 = vadd.f32 %v348, %v356
  %v380 = vadd.f32 %v349, %v356
  %v381 = vadd.f32 %v350, %v356
  %v382 = vadd.f32 %v358, %v359
  %v383 = vsel %vm42, %v360, 0.0
  %v384 = vadd.f32 %v382, %v383
  %v385 = vrot.slane %v384, 4
  %v386 = vadd.f32 %v384, %v385
  %v387 = vrot.slane %v386, 2
  %v388 = vadd.f32 %v386, %v387
  %v389 = vrot.slane %v388, 1
  %v390 = vadd.f32 %v388, %v389
  %v391 = vadd.f32 %v361, %v362
  %v392 = vsel %vm42, %v363, 0.0
  %v393 = vadd.f32 %v391, %v392
  %v394 = vrot.slane %v393, 4
  %v395 = vadd.f32 %v393, %v394
  %v396 = vrot.slane %v395, 2
  %v397 = vadd.f32 %v395, %v396
  %v398 = vrot.slane %v397, 1
  %v399 = vadd.f32 %v397, %v398
  %v400 = vadd.f32 %v364, %v365
  %v401 = vsel %vm42, %v366, 0.0
  %v402 = vadd.f32 %v400, %v401
  %v403 = vrot.slane %v402, 4
  %v404 = vadd.f32 %v402, %v403
  %v405 = vrot.slane %v404, 2
  %v406 = vadd.f32 %v404, %v405
  %v407 = vrot.slane %v406, 1
  %v408 = vadd.f32 %v406, %v407
  %v409 = vadd.f32 %v367, %v368
  %v410 = vsel %vm42, %v369, 0.0
  %v411 = vadd.f32 %v409, %v410
  %v412 = vrot.slane %v411, 4
  %v413 = vadd.f32 %v411, %v412
  %v414 = vrot.slane %v413, 2
  %v415 = vadd.f32 %v413, %v414
  %v416 = vrot.slane %v415, 1
  %v417 = vadd.f32 %v415, %v416
  %v418 = vadd.f32 %v370, %v371
  %v419 = vsel %vm42, %v372, 0.0
  %v420 = vadd.f32 %v418, %v419
  %v421 = vrot.slane %v420, 4
  %v422 = vadd.f32 %v420, %v421
  %v423 = vrot.slane %v422, 2
  %v424 = vadd.f32 %v422, %v423
  %v425 = vrot.slane %v424, 1
  %v426 = vadd.f32 %v424, %v425
  %v427 = vadd.f32 %v373, %v374
  %v428 = vsel %vm42, %v375, 0.0
  %v429 = vadd.f32 %v427, %v428
  %v430 = vrot.slane %v429, 4
  %v431 = vadd.f32 %v429, %v430
  %v432 = vrot.slane %v431, 2
  %v433 = vadd.f32 %v431, %v432
  %v434 = vrot.slane %v433, 1
  %v435 = vadd.f32 %v433, %v434
  %v436 = vadd.f32 %v376, %v377
  %v437 = vsel %vm42, %v378, 0.0
  %v438 = vadd.f32 %v436, %v437
  %v439 = vrot.slane %v438, 4
  %v440 = vadd.f32 %v438, %v439
  %v441 = vrot.slane %v440, 2
  %v442 = vadd.f32 %v440, %v441
  %v443 = vrot.slane %v442, 1
  %v444 = vadd.f32 %v442, %v443
  %v445 = vadd.f32 %v379, %v380
  %v446 = vsel %vm42, %v381, 0.0
  %v447 = vadd.f32 %v445, %v446
  %v448 = vrot.slane %v447, 4
  %v449 = vadd.f32 %v447, %v448
  %v450 = vrot.slane %v449, 2
  %v451 = vadd.f32 %v449, %v450
  %v452 = vrot.slane %v451, 1
  %v453 = vadd.f32 %v451, %v452
  %v454 = vrcp.pop 17.0
  %v455 = vmul.f32 %v390, %v454
  %v456 = vmul.f32 %v399, %v454
  %v457 = vmul.f32 %v408, %v454
  %v458 = vmul.f32 %v417, %v454
  %v459 = vmul.f32 %v426, %v454
  %v460 = vmul.f32 %v435, %v454
  %v461 = vmul.f32 %v444, %v454
  %v462 = vmul.f32 %v453, %v454
  %vm471 = vcmask 1041409
  %v472 = vsel %vm471, %v456, %v455
  %vm473 = vcmask 1042434
  %v474 = vsel %vm473, %v457, %v472
  %vm475 = vcmask 1043459
  %v476 = vsel %vm475, %v458, %v474
  %vm477 = vcmask 1044484
  %v478 = vsel %vm477, %v459, %v476
  %vm479 = vcmask 1045509
  %v480 = vsel %vm479, %v460, %v478
  %vm481 = vcmask 1046534
  %v482 = vsel %vm481, %v461, %v480
  %vm483 = vcmask 1047559
  %v484 = vsel %vm483, %v462, %v482
  %486 = vst [vmem:[%s3] sm:$0xff] %v484
  // Predicated region
  $region14: #{vit_encoder_forward.19} parent=0 // pred_check
    _
  $region15: #{vit_encoder_forward.19} parent=0 // pred_check_branch
    %488 = sbr.rel (0) target = $region17
  $region16: #{vit_encoder_forward.19} parent=0 // pred_region
    _
  $region17: #{vit_encoder_forward.19} parent=0 // pred_fallthru
    _
  // Predicated region
  $region18: #{vit_encoder_forward.19} parent=0 // pred_check
    _
  $region19: #{vit_encoder_forward.19} parent=0 // pred_check_branch
    %490 = sbr.rel (0) target = $region21
  $region20: #{vit_encoder_forward.19} parent=0 // pred_region
    _
  $region21: #{vit_encoder_forward.19} parent=0 // pred_fallthru
    _

// kernel: vit_encoder_forward.15
$region0: #{vit_encoder_forward.15}
  #allocation0 [shape = 'u32[]', space=smem, size = 0x4, offset = 0x4, fixed_abs, tag = 'smem constant byte address 0x4 - core index']
  #allocation1 [shape = 'u32[144,128]{1,0:T(1,128)}', space=vmem, size = 0x12000, scoped, tag = 'internal scratch']
  %s0 = inlined_call_operand.vmem [shape: f32[136,128], index: 0, kind: input, shape index: {}]
  %s1 = inlined_call_operand.vmem [shape: f32[1,128], index: 1, kind: input, shape index: {}]
  %s2 = inlined_call_operand.vmem [shape: f32[1,128], index: 2, kind: input, shape index: {}]
  %s3 = inlined_call_operand.vmem [shape: bf16[128,256], index: 3, kind: input, shape index: {}]
  %s4 = inlined_call_operand.vmem [shape: f32[1,256], index: 4, kind: input, shape index: {}]
  %s5 = inlined_call_operand.vmem [shape: bf16[256,128], index: 5, kind: input, shape index: {}]
  %s6 = inlined_call_operand.vmem [shape: f32[1,128], index: 6, kind: input, shape index: {}]
  %s7 = inlined_call_operand.vmem [shape: f32[136,128], index: 7, kind: output, shape index: {}]
  %s8 = sld [smem:[#allocation0]]
  $region38: #{vit_encoder_forward.15} parent=0
    _
  %s10 = ssub.s32 1, %s8
  %s11 = scalar_select 0, %s10, %s8
  // Predicated region
  $region2: #{vit_encoder_forward.15} parent=0 // pred_check
    _
  $region3: #{vit_encoder_forward.15} parent=0 // pred_check_branch
    %13 = sbr.rel (0) target = $region5
  $region4: #{vit_encoder_forward.15} parent=0 // pred_region
    _
  $region5: #{vit_encoder_forward.15} parent=0 // pred_fallthru
    _
  // Predicated region
  $region6: #{vit_encoder_forward.15} parent=0 // pred_check
    _
  $region7: #{vit_encoder_forward.15} parent=0 // pred_check_branch
    %15 = sbr.rel (0) target = $region9
  $region8: #{vit_encoder_forward.15} parent=0 // pred_region
    _
  $region9: #{vit_encoder_forward.15} parent=0 // pred_fallthru
    _
  // Predicated region
  $region10: #{vit_encoder_forward.15} parent=0 // pred_check
    _
  $region11: #{vit_encoder_forward.15} parent=0 // pred_check_branch
    %17 = sbr.rel (0) target = $region13
  $region12: #{vit_encoder_forward.15} parent=0 // pred_region
    _
  $region13: #{vit_encoder_forward.15} parent=0 // pred_fallthru
    _
  // Predicated region
  $region14: #{vit_encoder_forward.15} parent=0 // pred_check
    _
  $region15: #{vit_encoder_forward.15} parent=0 // pred_check_branch
    %19 = sbr.rel (0) target = $region17
  $region16: #{vit_encoder_forward.15} parent=0 // pred_region
    _
  $region17: #{vit_encoder_forward.15} parent=0 // pred_fallthru
    _
  // Predicated region
  $region18: #{vit_encoder_forward.15} parent=0 // pred_check
    _
  $region19: #{vit_encoder_forward.15} parent=0 // pred_check_branch
    %21 = sbr.rel (0) target = $region21
  $region20: #{vit_encoder_forward.15} parent=0 // pred_region
    _
  $region21: #{vit_encoder_forward.15} parent=0 // pred_fallthru
    _
  // Predicated region
  $region22: #{vit_encoder_forward.15} parent=0 // pred_check
    _
  $region23: #{vit_encoder_forward.15} parent=0 // pred_check_branch
    %23 = sbr.rel (0) target = $region25
  $region24: #{vit_encoder_forward.15} parent=0 // pred_region
    _
  $region25: #{vit_encoder_forward.15} parent=0 // pred_fallthru
    _
  // Predicated region
  $region26: #{vit_encoder_forward.15} parent=0 // pred_check
    _
  $region27: #{vit_encoder_forward.15} parent=0 // pred_check_branch
    %25 = sbr.rel (0) target = $region29
  $region28: #{vit_encoder_forward.15} parent=0 // pred_region
    _
  $region29: #{vit_encoder_forward.15} parent=0 // pred_fallthru
    _
  %v27 = vld [vmem:[%s0] sm:$0xff]
  %v28 = vld [vmem:[%s0 + $0x8] sm:$0xff]
  %v29 = vld [vmem:[%s0 + $0x10] sm:$0xff]
  %v30 = vld [vmem:[%s0 + $0x18] sm:$0xff]
  %v31 = vld [vmem:[%s0 + $0x20] sm:$0xff]
  %v32 = vld [vmem:[%s0 + $0x28] sm:$0xff]
  %v33 = vld [vmem:[%s0 + $0x30] sm:$0xff]
  %v34 = vld [vmem:[%s0 + $0x38] sm:$0xff]
  %v35 = vld [vmem:[%s0 + $0x40] sm:$0xff]
  %v36 = vld [vmem:[%s0 + $0x48] sm:$0xff]
  %v37 = vld [vmem:[%s0 + $0x50] sm:$0xff]
  %v38 = vld [vmem:[%s0 + $0x58] sm:$0xff]
  %v39 = vld [vmem:[%s0 + $0x60] sm:$0xff]
  %v40 = vld [vmem:[%s0 + $0x68] sm:$0xff]
  %v41 = vld [vmem:[%s0 + $0x70] sm:$0xff]
  %v42 = vld [vmem:[%s0 + $0x78] sm:$0xff]
  %v43 = vld [vmem:[%s0 + $0x80] sm:$0xff]
  %44 = vadd.xlane.f32.xlu0 %v27
  %v45 = vpop.xlane.xlu0 %44
  %46 = vadd.xlane.f32.xlu0 %v28
  %v47 = vpop.xlane.xlu0 %46
  %48 = vadd.xlane.f32.xlu0 %v29
  %v49 = vpop.xlane.xlu0 %48
  %50 = vadd.xlane.f32.xlu0 %v30
  %v51 = vpop.xlane.xlu0 %50
  %52 = vadd.xlane.f32.xlu0 %v31
  %v53 = vpop.xlane.xlu0 %52
  %54 = vadd.xlane.f32.xlu0 %v32
  %v55 = vpop.xlane.xlu0 %54
  %56 = vadd.xlane.f32.xlu0 %v33
  %v57 = vpop.xlane.xlu0 %56
  %58 = vadd.xlane.f32.xlu0 %v34
  %v59 = vpop.xlane.xlu0 %58
  %60 = vadd.xlane.f32.xlu0 %v35
  %v61 = vpop.xlane.xlu0 %60
  %62 = vadd.xlane.f32.xlu0 %v36
  %v63 = vpop.xlane.xlu0 %62
  %64 = vadd.xlane.f32.xlu0 %v37
  %v65 = vpop.xlane.xlu0 %64
  %66 = vadd.xlane.f32.xlu0 %v38
  %v67 = vpop.xlane.xlu0 %66
  %68 = vadd.xlane.f32.xlu0 %v39
  %v69 = vpop.xlane.xlu0 %68
  %70 = vadd.xlane.f32.xlu0 %v40
  %v71 = vpop.xlane.xlu0 %70
  %72 = vadd.xlane.f32.xlu0 %v41
  %v73 = vpop.xlane.xlu0 %72
  %74 = vadd.xlane.f32.xlu0 %v42
  %v75 = vpop.xlane.xlu0 %74
  %76 = vadd.xlane.f32.xlu0 %v43
  %v77 = vpop.xlane.xlu0 %76
  %v78 = vrcp.pop 128.0
  %v79 = vmul.f32 %v45, %v78
  %v80 = vmul.f32 %v47, %v78
  %v81 = vmul.f32 %v49, %v78
  %v82 = vmul.f32 %v51, %v78
  %v83 = vmul.f32 %v53, %v78
  %v84 = vmul.f32 %v55, %v78
  %v85 = vmul.f32 %v57, %v78
  %v86 = vmul.f32 %v59, %v78
  %v87 = vmul.f32 %v61, %v78
  %v88 = vmul.f32 %v63, %v78
  %v89 = vmul.f32 %v65, %v78
  %v90 = vmul.f32 %v67, %v78
  %v91 = vmul.f32 %v69, %v78
  %v92 = vmul.f32 %v71, %v78
  %v93 = vmul.f32 %v73, %v78
  %v94 = vmul.f32 %v75, %v78
  %v95 = vmul.f32 %v77, %v78
  %v96 = vsub.f32 %v27, %v79
  %v97 = vsub.f32 %v28, %v80
  %v98 = vsub.f32 %v29, %v81
  %v99 = vsub.f32 %v30, %v82
  %v100 = vsub.f32 %v31, %v83
  %v101 = vsub.f32 %v32, %v84
  %v102 = vsub.f32 %v33, %v85
  %v103 = vsub.f32 %v34, %v86
  %v104 = vsub.f32 %v35, %v87
  %v105 = vsub.f32 %v36, %v88
  %v106 = vsub.f32 %v37, %v89
  %v107 = vsub.f32 %v38, %v90
  %v108 = vsub.f32 %v39, %v91
  %v109 = vsub.f32 %v40, %v92
  %v110 = vsub.f32 %v41, %v93
  %v111 = vsub.f32 %v42, %v94
  %v112 = vsub.f32 %v43, %v95
  %v113 = vmul.f32 %v96, %v96
  %v114 = vmul.f32 %v97, %v97
  %v115 = vmul.f32 %v98, %v98
  %v116 = vmul.f32 %v99, %v99
  %v117 = vmul.f32 %v100, %v100
  %v118 = vmul.f32 %v101, %v101
  %v119 = vmul.f32 %v102, %v102
  %v120 = vmul.f32 %v103, %v103
  %v121 = vmul.f32 %v104, %v104
  %v122 = vmul.f32 %v105, %v105
  %v123 = vmul.f32 %v106, %v106
  %v124 = vmul.f32 %v107, %v107
  %v125 = vmul.f32 %v108, %v108
  %v126 = vmul.f32 %v109, %v109
  %v127 = vmul.f32 %v110, %v110
  %v128 = vmul.f32 %v111, %v111
  %v129 = vmul.f32 %v112, %v112
  %130 = vadd.xlane.f32.xlu0 %v113
  %v131 = vpop.xlane.xlu0 %130
  %132 = vadd.xlane.f32.xlu0 %v114
  %v133 = vpop.xlane.xlu0 %132
  %134 = vadd.xlane.f32.xlu0 %v115
  %v135 = vpop.xlane.xlu0 %134
  %136 = vadd.xlane.f32.xlu0 %v116
  %v137 = vpop.xlane.xlu0 %136
  %138 = vadd.xlane.f32.xlu0 %v117
  %v139 = vpop.xlane.xlu0 %138
  %140 = vadd.xlane.f32.xlu0 %v118
  %v141 = vpop.xlane.xlu0 %140
  %142 = vadd.xlane.f32.xlu0 %v119
  %v143 = vpop.xlane.xlu0 %142
  %144 = vadd.xlane.f32.xlu0 %v120
  %v145 = vpop.xlane.xlu0 %144
  %146 = vadd.xlane.f32.xlu0 %v121
  %v147 = vpop.xlane.xlu0 %146
  %148 = vadd.xlane.f32.xlu0 %v122
  %v149 = vpop.xlane.xlu0 %148
  %150 = vadd.xlane.f32.xlu0 %v123
  %v151 = vpop.xlane.xlu0 %150
  %152 = vadd.xlane.f32.xlu0 %v124
  %v153 = vpop.xlane.xlu0 %152
  %154 = vadd.xlane.f32.xlu0 %v125
  %v155 = vpop.xlane.xlu0 %154
  %156 = vadd.xlane.f32.xlu0 %v126
  %v157 = vpop.xlane.xlu0 %156
  %158 = vadd.xlane.f32.xlu0 %v127
  %v159 = vpop.xlane.xlu0 %158
  %160 = vadd.xlane.f32.xlu0 %v128
  %v161 = vpop.xlane.xlu0 %160
  %162 = vadd.xlane.f32.xlu0 %v129
  %v163 = vpop.xlane.xlu0 %162
  %v164 = vmul.f32 %v131, %v78
  %v165 = vmul.f32 %v133, %v78
  %v166 = vmul.f32 %v135, %v78
  %v167 = vmul.f32 %v137, %v78
  %v168 = vmul.f32 %v139, %v78
  %v169 = vmul.f32 %v141, %v78
  %v170 = vmul.f32 %v143, %v78
  %v171 = vmul.f32 %v145, %v78
  %v172 = vmul.f32 %v147, %v78
  %v173 = vmul.f32 %v149, %v78
  %v174 = vmul.f32 %v151, %v78
  %v175 = vmul.f32 %v153, %v78
  %v176 = vmul.f32 %v155, %v78
  %v177 = vmul.f32 %v157, %v78
  %v178 = vmul.f32 %v159, %v78
  %v179 = vmul.f32 %v161, %v78
  %v180 = vmul.f32 %v163, %v78
  %v181 = vadd.f32 %v164, 1e-12
  %v182 = vadd.f32 %v165, 1e-12
  %v183 = vadd.f32 %v166, 1e-12
  %v184 = vadd.f32 %v167, 1e-12
  %v185 = vadd.f32 %v168, 1e-12
  %v186 = vadd.f32 %v169, 1e-12
  %v187 = vadd.f32 %v170, 1e-12
  %v188 = vadd.f32 %v171, 1e-12
  %v189 = vadd.f32 %v172, 1e-12
  %v190 = vadd.f32 %v173, 1e-12
  %v191 = vadd.f32 %v174, 1e-12
  %v192 = vadd.f32 %v175, 1e-12
  %v193 = vadd.f32 %v176, 1e-12
  %v194 = vadd.f32 %v177, 1e-12
  %v195 = vadd.f32 %v178, 1e-12
  %v196 = vadd.f32 %v179, 1e-12
  %v197 = vadd.f32 %v180, 1e-12
  %v198 = vrsqrt.pop %v181
  %v199 = vrsqrt.pop %v182
  %v200 = vrsqrt.pop %v183
  %v201 = vrsqrt.pop %v184
  %v202 = vrsqrt.pop %v185
  %v203 = vrsqrt.pop %v186
  %v204 = vrsqrt.pop %v187
  %v205 = vrsqrt.pop %v188
  %v206 = vrsqrt.pop %v189
  %v207 = vrsqrt.pop %v190
  %v208 = vrsqrt.pop %v191
  %v209 = vrsqrt.pop %v192
  %v210 = vrsqrt.pop %v193
  %v211 = vrsqrt.pop %v194
  %v212 = vrsqrt.pop %v195
  %v213 = vrsqrt.pop %v196
  %v214 = vrsqrt.pop %v197
  %v215 = vmul.f32 %v96, %v198
  %v216 = vmul.f32 %v97, %v199
  %v217 = vmul.f32 %v98, %v200
  %v218 = vmul.f32 %v99, %v201
  %v219 = vmul.f32 %v100, %v202
  %v220 = vmul.f32 %v101, %v203
  %v221 = vmul.f32 %v102, %v204
  %v222 = vmul.f32 %v103, %v205
  %v223 = vmul.f32 %v104, %v206
  %v224 = vmul.f32 %v105, %v207
  %v225 = vmul.f32 %v106, %v208
  %v226 = vmul.f32 %v107, %v209
  %v227 = vmul.f32 %v108, %v210
  %v228 = vmul.f32 %v109, %v211
  %v229 = vmul.f32 %v110, %v212
  %v230 = vmul.f32 %v111, %v213
  %v231 = vmul.f32 %v112, %v214
  %v232 = vld [vmem:[%s1] sm:$0x1]
  %v234 = vlaneseq
  %v235 = vshrl.u32 %v234, 7
  %v236 = vsub.s32 0, %v235
  %v237 = vrot.slane %v232, %v236
  %v239 = vmul.f32 %v215, %v237
  %v240 = vmul.f32 %v216, %v237
  %v241 = vmul.f32 %v217, %v237
  %v242 = vmul.f32 %v218, %v237
  %v243 = vmul.f32 %v219, %v237
  %v244 = vmul.f32 %v220, %v237
  %v245 = vmul.f32 %v221, %v237
  %v246 = vmul.f32 %v222, %v237
  %v247 = vmul.f32 %v223, %v237
  %v248 = vmul.f32 %v224, %v237
  %v249 = vmul.f32 %v225, %v237
  %v250 = vmul.f32 %v226, %v237
  %v251 = vmul.f32 %v227, %v237
  %v252 = vmul.f32 %v228, %v237
  %v253 = vmul.f32 %v229, %v237
  %v254 = vmul.f32 %v230, %v237
  %v255 = vmul.f32 %v231, %v237
  %v256 = vld [vmem:[%s2] sm:$0x1]
  %v258 = vlaneseq
  %v259 = vshrl.u32 %v258, 7
  %v260 = vsub.s32 0, %v259
  %v261 = vrot.slane %v256, %v260
  %v263 = vadd.f32 %v239, %v261
  %v264 = vadd.f32 %v240, %v261
  %v265 = vadd.f32 %v241, %v261
  %v266 = vadd.f32 %v242, %v261
  %v267 = vadd.f32 %v243, %v261
  %v268 = vadd.f32 %v244, %v261
  %v269 = vadd.f32 %v245, %v261
  %v270 = vadd.f32 %v246, %v261
  %v271 = vadd.f32 %v247, %v261
  %v272 = vadd.f32 %v248, %v261
  %v273 = vadd.f32 %v249, %v261
  %v274 = vadd.f32 %v250, %v261
  %v275 = vadd.f32 %v251, %v261
  %v276 = vadd.f32 %v252, %v261
  %v277 = vadd.f32 %v253, %v261
  %v278 = vadd.f32 %v254, %v261
  %v279 = vadd.f32 %v255, %v261
  %v280 = vpack.c.bf16 %v264, %v263
  %v281 = vpack.c.bf16 %v266, %v265
  %v282 = vpack.c.bf16 %v268, %v267
  %v283 = vpack.c.bf16 %v270, %v269
  %v284 = vpack.c.bf16 %v272, %v271
  %v285 = vpack.c.bf16 %v274, %v273
  %v286 = vpack.c.bf16 %v276, %v275
  %v287 = vpack.c.bf16 %v278, %v277
  %v288 = vpack.c.bf16 %v279, %v279
  %v289 = vld [vmem:[%s3] sm:$0xff]
  %v290 = vld [vmem:[%s3 + $0x8] sm:$0xff]
  %v291 = vld [vmem:[%s3 + $0x10] sm:$0xff]
  %v292 = vld [vmem:[%s3 + $0x18] sm:$0xff]
  %v293 = vld [vmem:[%s3 + $0x20] sm:$0xff]
  %v294 = vld [vmem:[%s3 + $0x28] sm:$0xff]
  %v295 = vld [vmem:[%s3 + $0x30] sm:$0xff]
  %v296 = vld [vmem:[%s3 + $0x38] sm:$0xff]
  %v297 = vld [vmem:[%s3 + $0x40] sm:$0xff]
  %v298 = vld [vmem:[%s3 + $0x48] sm:$0xff]
  %v299 = vld [vmem:[%s3 + $0x50] sm:$0xff]
  %v300 = vld [vmem:[%s3 + $0x58] sm:$0xff]
  %v301 = vld [vmem:[%s3 + $0x60] sm:$0xff]
  %v302 = vld [vmem:[%s3 + $0x68] sm:$0xff]
  %v303 = vld [vmem:[%s3 + $0x70] sm:$0xff]
  %v304 = vld [vmem:[%s3 + $0x78] sm:$0xff]
  %v305 = vld [vmem:[%s4] sm:$0x3]
  %v307 = vlaneseq
  %v308 = vshrl.u32 %v307, 7
  %v309 = vsub.s32 0, %v308
  %v310 = vrot.slane %v305, %v309
  %v311 = vlaneseq
  %v312 = vshrl.u32 %v311, 7
  %v313 = vsub.s32 1, %v312
  %v314 = vrot.slane %v305, %v313
  %v333 = vunpack.c.l.b16 %v289
  %v334 = vunpack.c.h.b16 %v289
  %v335 = vunpack.c.l.b16 %v290
  %v336 = vunpack.c.h.b16 %v290
  %v337 = vunpack.c.l.b16 %v291
  %v338 = vunpack.c.h.b16 %v291
  %v339 = vunpack.c.l.b16 %v292
  %v340 = vunpack.c.h.b16 %v292
  %v341 = vunpack.c.l.b16 %v293
  %v342 = vunpack.c.h.b16 %v293
  %v343 = vunpack.c.l.b16 %v294
  %v344 = vunpack.c.h.b16 %v294
  %v345 = vunpack.c.l.b16 %v295
  %v346 = vunpack.c.h.b16 %v295
  %v347 = vunpack.c.l.b16 %v296
  %v348 = vunpack.c.h.b16 %v296
  %v349 = vunpack.c.l.b16 %v297
  %v350 = vunpack.c.h.b16 %v297
  %v351 = vunpack.c.l.b16 %v298
  %v352 = vunpack.c.h.b16 %v298
  %v353 = vunpack.c.l.b16 %v299
  %v354 = vunpack.c.h.b16 %v299
  %v355 = vunpack.c.l.b16 %v300
  %v356 = vunpack.c.h.b16 %v300
  %v357 = vunpack.c.l.b16 %v301
  %v358 = vunpack.c.h.b16 %v301
  %v359 = vunpack.c.l.b16 %v302
  %v360 = vunpack.c.h.b16 %v302
  %v361 = vunpack.c.l.b16 %v303
  %v362 = vunpack.c.h.b16 %v303
  %v363 = vunpack.c.l.b16 %v304
  %v364 = vunpack.c.h.b16 %v304
  %v365 = vpack.c.b16 %v335, %v333
  %v366 = vpack.c.b16 %v336, %v334
  %v367 = vpack.c.b16 %v339, %v337
  %v368 = vpack.c.b16 %v340, %v338
  %v369 = vpack.c.b16 %v343, %v341
  %v370 = vpack.c.b16 %v344, %v342
  %v371 = vpack.c.b16 %v347, %v345
  %v372 = vpack.c.b16 %v348, %v346
  %v373 = vpack.c.b16 %v351, %v349
  %v374 = vpack.c.b16 %v352, %v350
  %v375 = vpack.c.b16 %v355, %v353
  %v376 = vpack.c.b16 %v356, %v354
  %v377 = vpack.c.b16 %v359, %v357
  %v378 = vpack.c.b16 %v360, %v358
  %v379 = vpack.c.b16 %v363, %v361
  %v380 = vpack.c.b16 %v364, %v362
  %397 = vmatprep.subr.bf16.mxu0 %v380
  %398 = vmatpush1.bf16.msra.mxu0 %v379
  %399 = vmatprep.subr.bf16.mxu0 %v378
  %400 = vmatpush1.bf16.msra.mxu0 %v377
  %401 = vmatprep.subr.bf16.mxu0 %v376
  %402 = vmatpush1.bf16.msra.mxu0 %v375
  %403 = vmatprep.subr.bf16.mxu0 %v374
  %404 = vmatpush1.bf16.msra.mxu0 %v373
  %405 = vmatprep.subr.bf16.mxu0 %v372
  %406 = vmatpush1.bf16.msra.mxu0 %v371
  %407 = vmatprep.subr.bf16.mxu0 %v370
  %408 = vmatpush1.bf16.msra.mxu0 %v369
  %409 = vmatprep.subr.bf16.mxu0 %v368
  %410 = vmatpush1.bf16.msra.mxu0 %v367
  %411 = vmatprep.subr.bf16.mxu0 %v366
  %412 = vmatpush1.bf16.msra.mxu0 %v365
  %413 = vmatprep.subr.bf16.mxu0 0
  %414 = vmatpush2.bf16.msra.mxu0 0
  %415 = vmatprep.subr.bf16.mxu0 0
  %416 = vmatpush2.bf16.msra.mxu0 0
  %417 = vmatprep.subr.bf16.mxu0 0
  %418 = vmatpush2.bf16.msra.mxu0 0
  %419 = vmatprep.subr.bf16.mxu0 0
  %420 = vmatpush2.bf16.msra.mxu0 0
  %421 = vmatprep.subr.bf16.mxu0 0
  %422 = vmatpush2.bf16.msra.mxu0 0
  %423 = vmatprep.subr.bf16.mxu0 0
  %424 = vmatpush2.bf16.msra.mxu0 0
  %425 = vmatprep.subr.bf16.mxu0 0
  %426 = vmatpush2.bf16.msra.mxu0 0
  %427 = vmatprep.subr.bf16.mxu0 0
  %428 = vmatpush2.bf16.msra.mxu0 0
  %429 = vmatprep.mubr.bf16.mxu0 0
  %430 = vmatmul.mubr.bf16.gmra.mxu0 %v280
  %v431 = vpop.f32.mrf.mxu0
  %v432 = vadd.f32 %v310, %v431
  %v433 = vpop.f32.mrf.mxu0
  %v434 = vadd.f32 %v314, %v433
  %v435 = vpop.f32.mrf.mxu0
  %v436 = vadd.f32 %v310, %v435
  %v437 = vpop.f32.mrf.mxu0
  %v438 = vadd.f32 %v314, %v437
  %439 = vmatprep.mubr.bf16.mxu0 0
  %440 = vmatmul.mubr.bf16.gmra.mxu0 %v281
  %v441 = vpop.f32.mrf.mxu0
  %v442 = vadd.f32 %v310, %v441
  %v443 = vpop.f32.mrf.mxu0
  %v444 = vadd.f32 %v314, %v443
  %v445 = vpop.f32.mrf.mxu0
  %v446 = vadd.f32 %v310, %v445
  %v447 = vpop.f32.mrf.mxu0
  %v448 = vadd.f32 %v314, %v447
  %449 = vmatprep.mubr.bf16.mxu0 0
  %450 = vmatmul.mubr.bf16.gmra.mxu0 %v282
  %v451 = vpop.f32.mrf.mxu0
  %v452 = vadd.f32 %v310, %v451
  %v453 = vpop.f32.mrf.mxu0
  %v454 = vadd.f32 %v314, %v453
  %v455 = vpop.f32.mrf.mxu0
  %v456 = vadd.f32 %v310, %v455
  %v457 = vpop.f32.mrf.mxu0
  %v458 = vadd.f32 %v314, %v457
  %459 = vmatprep.mubr.bf16.mxu0 0
  %460 = vmatmul.mubr.bf16.gmra.mxu0 %v283
  %v461 = vpop.f32.mrf.mxu0
  %v462 = vadd.f32 %v310, %v461
  %v463 = vpop.f32.mrf.mxu0
  %v464 = vadd.f32 %v314, %v463
  %v465 = vpop.f32.mrf.mxu0
  %v466 = vadd.f32 %v310, %v465
  %v467 = vpop.f32.mrf.mxu0
  %v468 = vadd.f32 %v314, %v467
  %469 = vmatprep.mubr.bf16.mxu0 0
  %470 = vmatmul.mubr.bf16.gmra.mxu0 %v284
  %v471 = vpop.f32.mrf.mxu0
  %v472 = vadd.f32 %v310, %v471
  %v473 = vpop.f32.mrf.mxu0
  %v474 = vadd.f32 %v314, %v473
  %v475 = vpop.f32.mrf.mxu0
  %v476 = vadd.f32 %v310, %v475
  %v477 = vpop.f32.mrf.mxu0
  %v478 = vadd.f32 %v314, %v477
  %479 = vmatprep.mubr.bf16.mxu0 0
  %480 = vmatmul.mubr.bf16.gmra.mxu0 %v285
  %v481 = vpop.f32.mrf.mxu0
  %v482 = vadd.f32 %v310, %v481
  %v483 = vpop.f32.mrf.mxu0
  %v484 = vadd.f32 %v314, %v483
  %v485 = vpop.f32.mrf.mxu0
  %v486 = vadd.f32 %v310, %v485
  %v487 = vpop.f32.mrf.mxu0
  %v488 = vadd.f32 %v314, %v487
  %489 = vmatprep.mubr.bf16.mxu0 0
  %490 = vmatmul.mubr.bf16.gmra.mxu0 %v286
  %v491 = vpop.f32.mrf.mxu0
  %v492 = vadd.f32 %v310, %v491
  %v493 = vpop.f32.mrf.mxu0
  %v494 = vadd.f32 %v314, %v493
  %v495 = vpop.f32.mrf.mxu0
  %v496 = vadd.f32 %v310, %v495
  %v497 = vpop.f32.mrf.mxu0
  %v498 = vadd.f32 %v314, %v497
  %499 = vmatprep.mubr.bf16.mxu0 0
  %500 = vmatmul.mubr.bf16.gmra.mxu0 %v287
  %v501 = vpop.f32.mrf.mxu0
  %v502 = vadd.f32 %v310, %v501
  %v503 = vpop.f32.mrf.mxu0
  %v504 = vadd.f32 %v314, %v503
  %v505 = vpop.f32.mrf.mxu0
  %v506 = vadd.f32 %v310, %v505
  %v507 = vpop.f32.mrf.mxu0
  %v508 = vadd.f32 %v314, %v507
  %509 = vmatprep.mubr.bf16.mxu0 0
  %510 = vmatmul.mubr.bf16.gmra.mxu0 %v288
  %v511 = vpop.f32.mrf.mxu0
  %v512 = vadd.f32 %v310, %v511
  %v513 = vpop.f32.mrf.mxu0
  %v514 = vadd.f32 %v314, %v513
  %v515 = vpop.f32.mrf.mxu0
  %v516 = vpop.f32.mrf.mxu0
  %517 = vdwg.mxu0
  %v518 = vmul.f32 %v432, %v432
  %v519 = vmul.f32 %v434, %v434
  %v520 = vmul.f32 %v436, %v436
  %v521 = vmul.f32 %v438, %v438
  %v522 = vmul.f32 %v442, %v442
  %v523 = vmul.f32 %v444, %v444
  %v524 = vmul.f32 %v446, %v446
  %v525 = vmul.f32 %v448, %v448
  %v526 = vmul.f32 %v452, %v452
  %v527 = vmul.f32 %v454, %v454
  %v528 = vmul.f32 %v456, %v456
  %v529 = vmul.f32 %v458, %v458
  %v530 = vmul.f32 %v462, %v462
  %v531 = vmul.f32 %v464, %v464
  %v532 = vmul.f32 %v466, %v466
  %v533 = vmul.f32 %v468, %v468
  %v534 = vmul.f32 %v472, %v472
  %v535 = vmul.f32 %v474, %v474
  %v536 = vmul.f32 %v476, %v476
  %v537 = vmul.f32 %v478, %v478
  %v538 = vmul.f32 %v482, %v482
  %v539 = vmul.f32 %v484, %v484
  %v540 = vmul.f32 %v486, %v486
  %v541 = vmul.f32 %v488, %v488
  %v542 = vmul.f32 %v492, %v492
  %v543 = vmul.f32 %v494, %v494
  %v544 = vmul.f32 %v496, %v496
  %v545 = vmul.f32 %v498, %v498
  %v546 = vmul.f32 %v502, %v502
  %v547 = vmul.f32 %v504, %v504
  %v548 = vmul.f32 %v506, %v506
  %v549 = vmul.f32 %v508, %v508
  %v550 = vmul.f32 %v512, %v512
  %v551 = vmul.f32 %v514, %v514
  %v552 = vmul.f32 %v432, %v518
  %v553 = vmul.f32 %v434, %v519
  %v554 = vmul.f32 %v436, %v520
  %v555 = vmul.f32 %v438, %v521
  %v556 = vmul.f32 %v442, %v522
  %v557 = vmul.f32 %v444, %v523
  %v558 = vmul.f32 %v446, %v524
  %v559 = vmul.f32 %v448, %v525
  %v560 = vmul.f32 %v452, %v526
  %v561 = vmul.f32 %v454, %v527
  %v562 = vmul.f32 %v456, %v528
  %v563 = vmul.f32 %v458, %v529
  %v564 = vmul.f32 %v462, %v530
  %v565 = vmul.f32 %v464, %v531
  %v566 = vmul.f32 %v466, %v532
  %v567 = vmul.f32 %v468, %v533
  %v568 = vmul.f32 %v472, %v534
  %v569 = vmul.f32 %v474, %v535
  %v570 = vmul.f32 %v476, %v536
  %v571 = vmul.f32 %v478, %v537
  %v572 = vmul.f32 %v482, %v538
  %v573 = vmul.f32 %v484, %v539
  %v574 = vmul.f32 %v486, %v540
  %v575 = vmul.f32 %v488, %v541
  %v576 = vmul.f32 %v492, %v542
  %v577 = vmul.f32 %v494, %v543
  %v578 = vmul.f32 %v496, %v544
  %v579 = vmul.f32 %v498, %v545
  %v580 = vmul.f32 %v502, %v546
  %v581 = vmul.f32 %v504, %v547
  %v582 = vmul.f32 %v506, %v548
  %v583 = vmul.f32 %v508, %v549
  %v584 = vmul.f32 %v512, %v550
  %v585 = vmul.f32 %v514, %v551
  %v586 = vmul.f32 %v552, 0.044715
  %v587 = vmul.f32 %v553, 0.044715
  %v588 = vmul.f32 %v554, 0.044715
  %v589 = vmul.f32 %v555, 0.044715
  %v590 = vmul.f32 %v556, 0.044715
  %v591 = vmul.f32 %v557, 0.044715
  %v592 = vmul.f32 %v558, 0.044715
  %v593 = vmul.f32 %v559, 0.044715
  %v594 = vmul.f32 %v560, 0.044715
  %v595 = vmul.f32 %v561, 0.044715
  %v596 = vmul.f32 %v562, 0.044715
  %v597 = vmul.f32 %v563, 0.044715
  %v598 = vmul.f32 %v564, 0.044715
  %v599 = vmul.f32 %v565, 0.044715
  %v600 = vmul.f32 %v566, 0.044715
  %v601 = vmul.f32 %v567, 0.044715
  %v602 = vmul.f32 %v568, 0.044715
  %v603 = vmul.f32 %v569, 0.044715
  %v604 = vmul.f32 %v570, 0.044715
  %v605 = vmul.f32 %v571, 0.044715
  %v606 = vmul.f32 %v572, 0.044715
  %v607 = vmul.f32 %v573, 0.044715
  %v608 = vmul.f32 %v574, 0.044715
  %v609 = vmul.f32 %v575, 0.044715
  %v610 = vmul.f32 %v576, 0.044715
  %v611 = vmul.f32 %v577, 0.044715
  %v612 = vmul.f32 %v578, 0.044715
  %v613 = vmul.f32 %v579, 0.044715
  %v614 = vmul.f32 %v580, 0.044715
  %v615 = vmul.f32 %v581, 0.044715
  %v616 = vmul.f32 %v582, 0.044715
  %v617 = vmul.f32 %v583, 0.044715
  %v618 = vmul.f32 %v584, 0.044715
  %v619 = vmul.f32 %v585, 0.044715
  %v620 = vadd.f32 %v432, %v586
  %v621 = vadd.f32 %v434, %v587
  %v622 = vadd.f32 %v436, %v588
  %v623 = vadd.f32 %v438, %v589
  %v624 = vadd.f32 %v442, %v590
  %v625 = vadd.f32 %v444, %v591
  %v626 = vadd.f32 %v446, %v592
  %v627 = vadd.f32 %v448, %v593
  %v628 = vadd.f32 %v452, %v594
  %v629 = vadd.f32 %v454, %v595
  %v630 = vadd.f32 %v456, %v596
  %v631 = vadd.f32 %v458, %v597
  %v632 = vadd.f32 %v462, %v598
  %v633 = vadd.f32 %v464, %v599
  %v634 = vadd.f32 %v466, %v600
  %v635 = vadd.f32 %v468, %v601
  %v636 = vadd.f32 %v472, %v602
  %v637 = vadd.f32 %v474, %v603
  %v638 = vadd.f32 %v476, %v604
  %v639 = vadd.f32 %v478, %v605
  %v640 = vadd.f32 %v482, %v606
  %v641 = vadd.f32 %v484, %v607
  %v642 = vadd.f32 %v486, %v608
  %v643 = vadd.f32 %v488, %v609
  %v644 = vadd.f32 %v492, %v610
  %v645 = vadd.f32 %v494, %v611
  %v646 = vadd.f32 %v496, %v612
  %v647 = vadd.f32 %v498, %v613
  %v648 = vadd.f32 %v502, %v614
  %v649 = vadd.f32 %v504, %v615
  %v650 = vadd.f32 %v506, %v616
  %v651 = vadd.f32 %v508, %v617
  %v652 = vadd.f32 %v512, %v618
  %v653 = vadd.f32 %v514, %v619
  %v654 = vmul.f32 %v620, 0.7978846
  %v655 = vmul.f32 %v621, 0.7978846
  %v656 = vmul.f32 %v622, 0.7978846
  %v657 = vmul.f32 %v623, 0.7978846
  %v658 = vmul.f32 %v624, 0.7978846
  %v659 = vmul.f32 %v625, 0.7978846
  %v660 = vmul.f32 %v626, 0.7978846
  %v661 = vmul.f32 %v627, 0.7978846
  %v662 = vmul.f32 %v628, 0.7978846
  %v663 = vmul.f32 %v629, 0.7978846
  %v664 = vmul.f32 %v630, 0.7978846
  %v665 = vmul.f32 %v631, 0.7978846
  %v666 = vmul.f32 %v632, 0.7978846
  %v667 = vmul.f32 %v633, 0.7978846
  %v668 = vmul.f32 %v634, 0.7978846
  %v669 = vmul.f32 %v635, 0.7978846
  %v670 = vmul.f32 %v636, 0.7978846
  %v671 = vmul.f32 %v637, 0.7978846
  %v672 = vmul.f32 %v638, 0.7978846
  %v673 = vmul.f32 %v639, 0.7978846
  %v674 = vmul.f32 %v640, 0.7978846
  %v675 = vmul.f32 %v641, 0.7978846
  %v676 = vmul.f32 %v642, 0.7978846
  %v677 = vmul.f32 %v643, 0.7978846
  %v678 = vmul.f32 %v644, 0.7978846
  %v679 = vmul.f32 %v645, 0.7978846
  %v680 = vmul.f32 %v646, 0.7978846
  %v681 = vmul.f32 %v647, 0.7978846
  %v682 = vmul.f32 %v648, 0.7978846
  %v683 = vmul.f32 %v649, 0.7978846
  %v684 = vmul.f32 %v650, 0.7978846
  %v685 = vmul.f32 %v651, 0.7978846
  %v686 = vmul.f32 %v652, 0.7978846
  %v687 = vmul.f32 %v653, 0.7978846
  %v688 = vtanh.pop %v654
  %v689 = vtanh.pop %v655
  %v690 = vtanh.pop %v656
  %v691 = vtanh.pop %v657
  %v692 = vtanh.pop %v658
  %v693 = vtanh.pop %v659
  %v694 = vtanh.pop %v660
  %v695 = vtanh.pop %v661
  %v696 = vtanh.pop %v662
  %v697 = vtanh.pop %v663
  %v698 = vtanh.pop %v664
  %v699 = vtanh.pop %v665
  %v700 = vtanh.pop %v666
  %v701 = vtanh.pop %v667
  %v702 = vtanh.pop %v668
  %v703 = vtanh.pop %v669
  %v704 = vtanh.pop %v670
  %v705 = vtanh.pop %v671
  %v706 = vtanh.pop %v672
  %v707 = vtanh.pop %v673
  %v708 = vtanh.pop %v674
  %v709 = vtanh.pop %v675
  %v710 = vtanh.pop %v676
  %v711 = vtanh.pop %v677
  %v712 = vtanh.pop %v678
  %v713 = vtanh.pop %v679
  %v714 = vtanh.pop %v680
  %v715 = vtanh.pop %v681
  %v716 = vtanh.pop %v682
  %v717 = vtanh.pop %v683
  %v718 = vtanh.pop %v684
  %v719 = vtanh.pop %v685
  %v720 = vtanh.pop %v686
  %v721 = vtanh.pop %v687
  %v722 = vadd.f32 %v688, 1.0
  %v723 = vadd.f32 %v689, 1.0
  %v724 = vadd.f32 %v690, 1.0
  %v725 = vadd.f32 %v691, 1.0
  %v726 = vadd.f32 %v692, 1.0
  %v727 = vadd.f32 %v693, 1.0
  %v728 = vadd.f32 %v694, 1.0
  %v729 = vadd.f32 %v695, 1.0
  %v730 = vadd.f32 %v696, 1.0
  %v731 = vadd.f32 %v697, 1.0
  %v732 = vadd.f32 %v698, 1.0
  %v733 = vadd.f32 %v699, 1.0
  %v734 = vadd.f32 %v700, 1.0
  %v735 = vadd.f32 %v701, 1.0
  %v736 = vadd.f32 %v702, 1.0
  %v737 = vadd.f32 %v703, 1.0
  %v738 = vadd.f32 %v704, 1.0
  %v739 = vadd.f32 %v705, 1.0
  %v740 = vadd.f32 %v706, 1.0
  %v741 = vadd.f32 %v707, 1.0
  %v742 = vadd.f32 %v708, 1.0
  %v743 = vadd.f32 %v709, 1.0
  %v744 = vadd.f32 %v710, 1.0
  %v745 = vadd.f32 %v711, 1.0
  %v746 = vadd.f32 %v712, 1.0
  %v747 = vadd.f32 %v713, 1.0
  %v748 = vadd.f32 %v714, 1.0
  %v749 = vadd.f32 %v715, 1.0
  %v750 = vadd.f32 %v716, 1.0
  %v751 = vadd.f32 %v717, 1.0
  %v752 = vadd.f32 %v718, 1.0
  %v753 = vadd.f32 %v719, 1.0
  %v754 = vadd.f32 %v720, 1.0
  %v755 = vadd.f32 %v721, 1.0
  %v756 = vmul.f32 %v722, 0.5
  %v757 = vmul.f32 %v723, 0.5
  %v758 = vmul.f32 %v724, 0.5
  %v759 = vmul.f32 %v725, 0.5
  %v760 = vmul.f32 %v726, 0.5
  %v761 = vmul.f32 %v727, 0.5
  %v762 = vmul.f32 %v728, 0.5
  %v763 = vmul.f32 %v729, 0.5
  %v764 = vmul.f32 %v730, 0.5
  %v765 = vmul.f32 %v731, 0.5
  %v766 = vmul.f32 %v732, 0.5
  %v767 = vmul.f32 %v733, 0.5
  %v768 = vmul.f32 %v734, 0.5
  %v769 = vmul.f32 %v735, 0.5
  %v770 = vmul.f32 %v736, 0.5
  %v771 = vmul.f32 %v737, 0.5
  %v772 = vmul.f32 %v738, 0.5
  %v773 = vmul.f32 %v739, 0.5
  %v774 = vmul.f32 %v740, 0.5
  %v775 = vmul.f32 %v741, 0.5
  %v776 = vmul.f32 %v742, 0.5
  %v777 = vmul.f32 %v743, 0.5
  %v778 = vmul.f32 %v744, 0.5
  %v779 = vmul.f32 %v745, 0.5
  %v780 = vmul.f32 %v746, 0.5
  %v781 = vmul.f32 %v747, 0.5
  %v782 = vmul.f32 %v748, 0.5
  %v783 = vmul.f32 %v749, 0.5
  %v784 = vmul.f32 %v750, 0.5
  %v785 = vmul.f32 %v751, 0.5
  %v786 = vmul.f32 %v752, 0.5
  %v787 = vmul.f32 %v753, 0.5
  %v788 = vmul.f32 %v754, 0.5
  %v789 = vmul.f32 %v755, 0.5
  %v790 = vmul.f32 %v432, %v756
  %v791 = vmul.f32 %v434, %v757
  %v792 = vmul.f32 %v436, %v758
  %v793 = vmul.f32 %v438, %v759
  %v794 = vmul.f32 %v442, %v760
  %v795 = vmul.f32 %v444, %v761
  %v796 = vmul.f32 %v446, %v762
  %v797 = vmul.f32 %v448, %v763
  %v798 = vmul.f32 %v452, %v764
  %v799 = vmul.f32 %v454, %v765
  %v800 = vmul.f32 %v456, %v766
  %v801 = vmul.f32 %v458, %v767
  %v802 = vmul.f32 %v462, %v768
  %v803 = vmul.f32 %v464, %v769
  %v804 = vmul.f32 %v466, %v770
  %v805 = vmul.f32 %v468, %v771
  %v806 = vmul.f32 %v472, %v772
  %v807 = vmul.f32 %v474, %v773
  %v808 = vmul.f32 %v476, %v774
  %v809 = vmul.f32 %v478, %v775
  %v810 = vmul.f32 %v482, %v776
  %v811 = vmul.f32 %v484, %v777
  %v812 = vmul.f32 %v486, %v778
  %v813 = vmul.f32 %v488, %v779
  %v814 = vmul.f32 %v492, %v780
  %v815 = vmul.f32 %v494, %v781
  %v816 = vmul.f32 %v496, %v782
  %v817 = vmul.f32 %v498, %v783
  %v818 = vmul.f32 %v502, %v784
  %v819 = vmul.f32 %v504, %v785
  %v820 = vmul.f32 %v506, %v786
  %v821 = vmul.f32 %v508, %v787
  %v822 = vmul.f32 %v512, %v788
  %v823 = vmul.f32 %v514, %v789
  %v824 = vpack.c.bf16 %v792, %v790
  %v825 = vpack.c.bf16 %v793, %v791
  %v826 = vpack.c.bf16 %v796, %v794
  %v827 = vpack.c.bf16 %v797, %v795
  %v828 = vpack.c.bf16 %v800, %v798
  %v829 = vpack.c.bf16 %v801, %v799
  %v830 = vpack.c.bf16 %v804, %v802
  %v831 = vpack.c.bf16 %v805, %v803
  %v832 = vpack.c.bf16 %v808, %v806
  %v833 = vpack.c.bf16 %v809, %v807
  %v834 = vpack.c.bf16 %v812, %v810
  %v835 = vpack.c.bf16 %v813, %v811
  %v836 = vpack.c.bf16 %v816, %v814
  %v837 = vpack.c.bf16 %v817, %v815
  %v838 = vpack.c.bf16 %v820, %v818
  %v839 = vpack.c.bf16 %v821, %v819
  %v840 = vpack.c.bf16 %v822, %v822
  %v841 = vpack.c.bf16 %v823, %v823
  %v842 = vld [vmem:[%s5] sm:$0xf]
  %v843 = vld [vmem:[%s5 + $0x4] sm:$0xf]
  %v844 = vld [vmem:[%s5 + $0x8] sm:$0xf]
  %v845 = vld [vmem:[%s5 + $0xc] sm:$0xf]
  %v846 = vld [vmem:[%s5 + $0x10] sm:$0xf]
  %v847 = vld [vmem:[%s5 + $0x14] sm:$0xf]
  %v848 = vld [vmem:[%s5 + $0x18] sm:$0xf]
  %v849 = vld [vmem:[%s5 + $0x1c] sm:$0xf]
  %v850 = vld [vmem:[%s5 + $0x20] sm:$0xf]
  %v851 = vld [vmem:[%s5 + $0x24] sm:$0xf]
  %v852 = vld [vmem:[%s5 + $0x28] sm:$0xf]
  %v853 = vld [vmem:[%s5 + $0x2c] sm:$0xf]
  %v854 = vld [vmem:[%s5 + $0x30] sm:$0xf]
  %v855 = vld [vmem:[%s5 + $0x34] sm:$0xf]
  %v856 = vld [vmem:[%s5 + $0x38] sm:$0xf]
  %v857 = vld [vmem:[%s5 + $0x3c] sm:$0xf]
  %v858 = vld [vmem:[%s5 + $0x40] sm:$0xf]
  %v859 = vld [vmem:[%s5 + $0x44] sm:$0xf]
  %v860 = vld [vmem:[%s5 + $0x48] sm:$0xf]
  %v861 = vld [vmem:[%s5 + $0x4c] sm:$0xf]
  %v862 = vld [vmem:[%s5 + $0x50] sm:$0xf]
  %v863 = vld [vmem:[%s5 + $0x54] sm:$0xf]
  %v864 = vld [vmem:[%s5 + $0x58] sm:$0xf]
  %v865 = vld [vmem:[%s5 + $0x5c] sm:$0xf]
  %v866 = vld [vmem:[%s5 + $0x60] sm:$0xf]
  %v867 = vld [vmem:[%s5 + $0x64] sm:$0xf]
  %v868 = vld [vmem:[%s5 + $0x68] sm:$0xf]
  %v869 = vld [vmem:[%s5 + $0x6c] sm:$0xf]
  %v870 = vld [vmem:[%s5 + $0x70] sm:$0xf]
  %v871 = vld [vmem:[%s5 + $0x74] sm:$0xf]
  %v872 = vld [vmem:[%s5 + $0x78] sm:$0xf]
  %v873 = vld [vmem:[%s5 + $0x7c] sm:$0xf]
  %v874 = vld [vmem:[%s6] sm:$0x1]
  %v876 = vlaneseq
  %v877 = vshrl.u32 %v876, 7
  %v878 = vsub.s32 0, %v877
  %v879 = vrot.slane %v874, %v878
  %v913 = vunpack.c.l.b16 %v842
  %v914 = vunpack.c.l.b16 %v843
  %v915 = vunpack.c.l.b16 %v844
  %v916 = vunpack.c.l.b16 %v845
  %v917 = vunpack.c.l.b16 %v846
  %v918 = vunpack.c.l.b16 %v847
  %v919 = vunpack.c.l.b16 %v848
  %v920 = vunpack.c.l.b16 %v849
  %v921 = vunpack.c.l.b16 %v850
  %v922 = vunpack.c.l.b16 %v851
  %v923 = vunpack.c.l.b16 %v852
  %v924 = vunpack.c.l.b16 %v853
  %v925 = vunpack.c.l.b16 %v854
  %v926 = vunpack.c.l.b16 %v855
  %v927 = vunpack.c.l.b16 %v856
  %v928 = vunpack.c.l.b16 %v857
  %v929 = vunpack.c.l.b16 %v858
  %v930 = vunpack.c.l.b16 %v859
  %v931 = vunpack.c.l.b16 %v860
  %v932 = vunpack.c.l.b16 %v861
  %v933 = vunpack.c.l.b16 %v862
  %v934 = vunpack.c.l.b16 %v863
  %v935 = vunpack.c.l.b16 %v864
  %v936 = vunpack.c.l.b16 %v865
  %v937 = vunpack.c.l.b16 %v866
  %v938 = vunpack.c.l.b16 %v867
  %v939 = vunpack.c.l.b16 %v868
  %v940 = vunpack.c.l.b16 %v869
  %v941 = vunpack.c.l.b16 %v870
  %v942 = vunpack.c.l.b16 %v871
  %v943 = vunpack.c.l.b16 %v872
  %v944 = vunpack.c.l.b16 %v873
  %v945 = vpack.c.b16 %v914, %v913
  %v946 = vpack.c.b16 %v916, %v915
  %v947 = vpack.c.b16 %v918, %v917
  %v948 = vpack.c.b16 %v920, %v919
  %v949 = vpack.c.b16 %v922, %v921
  %v950 = vpack.c.b16 %v924, %v923
  %v951 = vpack.c.b16 %v926, %v925
  %v952 = vpack.c.b16 %v928, %v927
  %v953 = vpack.c.b16 %v930, %v929
  %v954 = vpack.c.b16 %v932, %v931
  %v955 = vpack.c.b16 %v934, %v933
  %v956 = vpack.c.b16 %v936, %v935
  %v957 = vpack.c.b16 %v938, %v937
  %v958 = vpack.c.b16 %v940, %v939
  %v959 = vpack.c.b16 %v942, %v941
  %v960 = vpack.c.b16 %v944, %v943
  %977 = vmatprep.subr.bf16.mxu0 0
  %978 = vmatpush1.bf16.msra.mxu0 %v952
  %979 = vmatprep.subr.bf16.mxu0 0
  %980 = vmatpush1.bf16.msra.mxu0 %v951
  %981 = vmatprep.subr.bf16.mxu0 0
  %982 = vmatpush1.bf16.msra.mxu0 %v950
  %983 = vmatprep.subr.bf16.mxu0 0
  %984 = vmatpush1.bf16.msra.mxu0 %v949
  %985 = vmatprep.subr.bf16.mxu0 0
  %986 = vmatpush1.bf16.msra.mxu0 %v948
  %987 = vmatprep.subr.bf16.mxu0 0
  %988 = vmatpush1.bf16.msra.mxu0 %v947
  %989 = vmatprep.subr.bf16.mxu0 0
  %990 = vmatpush1.bf16.msra.mxu0 %v946
  %991 = vmatprep.subr.bf16.mxu0 0
  %992 = vmatpush1.bf16.msra.mxu0 %v945
  %993 = vmatprep.subr.bf16.mxu0 0
  %994 = vmatpush2.bf16.msra.mxu0 %v960
  %995 = vmatprep.subr.bf16.mxu0 0
  %996 = vmatpush2.bf16.msra.mxu0 %v959
  %997 = vmatprep.subr.bf16.mxu0 0
  %998 = vmatpush2.bf16.msra.mxu0 %v958
  %999 = vmatprep.subr.bf16.mxu0 0
  %1000 = vmatpush2.bf16.msra.mxu0 %v957
  %1001 = vmatprep.subr.bf16.mxu0 0
  %1002 = vmatpush2.bf16.msra.mxu0 %v956
  %1003 = vmatprep.subr.bf16.mxu0 0
  %1004 = vmatpush2.bf16.msra.mxu0 %v955
  %1005 = vmatprep.subr.bf16.mxu0 0
  %1006 = vmatpush2.bf16.msra.mxu0 %v954
  %1007 = vmatprep.subr.bf16.mxu0 0
  %1008 = vmatpush2.bf16.msra.mxu0 %v953
  %1009 = vmatprep.mubr.bf16.mxu0 %v825
  %1010 = vmatmul.mubr.bf16.gmra.mxu0 %v824
  %v1011 = vpop.f32.mrf.mxu0
  %v1012 = vadd.f32 %v879, %v1011
  %v1013 = vpop.f32.mrf.mxu0
  %v1014 = vpop.f32.mrf.mxu0
  %v1015 = vadd.f32 %v879, %v1014
  %v1016 = vpop.f32.mrf.mxu0
  %1017 = vmatprep.mubr.bf16.mxu0 %v827
  %1018 = vmatmul.mubr.bf16.gmra.mxu0 %v826
  %v1019 = vpop.f32.mrf.mxu0
  %v1020 = vadd.f32 %v879, %v1019
  %v1021 = vpop.f32.mrf.mxu0
  %v1022 = vpop.f32.mrf.mxu0
  %v1023 = vadd.f32 %v879, %v1022
  %v1024 = vpop.f32.mrf.mxu0
  %1025 = vmatprep.mubr.bf16.mxu0 %v829
  %1026 = vmatmul.mubr.bf16.gmra.mxu0 %v828
  %v1027 = vpop.f32.mrf.mxu0
  %v1028 = vadd.f32 %v879, %v1027
  %v1029 = vpop.f32.mrf.mxu0
  %v1030 = vpop.f32.mrf.mxu0
  %v1031 = vadd.f32 %v879, %v1030
  %v1032 = vpop.f32.mrf.mxu0
  %1033 = vmatprep.mubr.bf16.mxu0 %v831
  %1034 = vmatmul.mubr.bf16.gmra.mxu0 %v830
  %v1035 = vpop.f32.mrf.mxu0
  %v1036 = vadd.f32 %v879, %v1035
  %v1037 = vpop.f32.mrf.mxu0
  %v1038 = vpop.f32.mrf.mxu0
  %v1039 = vadd.f32 %v879, %v1038
  %v1040 = vpop.f32.mrf.mxu0
  %1041 = vmatprep.mubr.bf16.mxu0 %v833
  %1042 = vmatmul.mubr.bf16.gmra.mxu0 %v832
  %v1043 = vpop.f32.mrf.mxu0
  %v1044 = vadd.f32 %v879, %v1043
  %v1045 = vpop.f32.mrf.mxu0
  %v1046 = vpop.f32.mrf.mxu0
  %v1047 = vadd.f32 %v879, %v1046
  %v1048 = vpop.f32.mrf.mxu0
  %1049 = vmatprep.mubr.bf16.mxu0 %v835
  %1050 = vmatmul.mubr.bf16.gmra.mxu0 %v834
  %v1051 = vpop.f32.mrf.mxu0
  %v1052 = vadd.f32 %v879, %v1051
  %v1053 = vpop.f32.mrf.mxu0
  %v1054 = vpop.f32.mrf.mxu0
  %v1055 = vadd.f32 %v879, %v1054
  %v1056 = vpop.f32.mrf.mxu0
  %1057 = vmatprep.mubr.bf16.mxu0 %v837
  %1058 = vmatmul.mubr.bf16.gmra.mxu0 %v836
  %v1059 = vpop.f32.mrf.mxu0
  %v1060 = vadd.f32 %v879, %v1059
  %v1061 = vpop.f32.mrf.mxu0
  %v1062 = vpop.f32.mrf.mxu0
  %v1063 = vadd.f32 %v879, %v1062
  %v1064 = vpop.f32.mrf.mxu0
  %1065 = vmatprep.mubr.bf16.mxu0 %v839
  %1066 = vmatmul.mubr.bf16.gmra.mxu0 %v838
  %v1067 = vpop.f32.mrf.mxu0
  %v1068 = vadd.f32 %v879, %v1067
  %v1069 = vpop.f32.mrf.mxu0
  %v1070 = vpop.f32.mrf.mxu0
  %v1071 = vadd.f32 %v879, %v1070
  %v1072 = vpop.f32.mrf.mxu0
  %1073 = vmatprep.mubr.bf16.mxu0 %v841
  %1074 = vmatmul.mubr.bf16.gmra.mxu0 %v840
  %v1075 = vpop.f32.mrf.mxu0
  %v1076 = vadd.f32 %v879, %v1075
  %v1077 = vpop.f32.mrf.mxu0
  %v1078 = vpop.f32.mrf.mxu0
  %v1079 = vpop.f32.mrf.mxu0
  %1080 = vdwg.mxu0
  %v1081 = vadd.f32 %v1012, %v27
  %v1082 = vadd.f32 %v1015, %v28
  %v1083 = vadd.f32 %v1020, %v29
  %v1084 = vadd.f32 %v1023, %v30
  %v1085 = vadd.f32 %v1028, %v31
  %v1086 = vadd.f32 %v1031, %v32
  %v1087 = vadd.f32 %v1036, %v33
  %v1088 = vadd.f32 %v1039, %v34
  %v1089 = vadd.f32 %v1044, %v35
  %v1090 = vadd.f32 %v1047, %v36
  %v1091 = vadd.f32 %v1052, %v37
  %v1092 = vadd.f32 %v1055, %v38
  %v1093 = vadd.f32 %v1060, %v39
  %v1094 = vadd.f32 %v1063, %v40
  %v1095 = vadd.f32 %v1068, %v41
  %v1096 = vadd.f32 %v1071, %v42
  %v1097 = vadd.f32 %v1076, %v43
  %1098 = vst [vmem:[%s7] sm:$0xff] %v1081
  %1099 = vst [vmem:[%s7 + $0x8] sm:$0xff] %v1082
  %1100 = vst [vmem:[%s7 + $0x10] sm:$0xff] %v1083
  %1101 = vst [vmem:[%s7 + $0x18] sm:$0xff] %v1084
  %1102 = vst [vmem:[%s7 + $0x20] sm:$0xff] %v1085
  %1103 = vst [vmem:[%s7 + $0x28] sm:$0xff] %v1086
  %1104 = vst [vmem:[%s7 + $0x30] sm:$0xff] %v1087
  %1105 = vst [vmem:[%s7 + $0x38] sm:$0xff] %v1088
  %1106 = vst [vmem:[%s7 + $0x40] sm:$0xff] %v1089
  %1107 = vst [vmem:[%s7 + $0x48] sm:$0xff] %v1090
  %1108 = vst [vmem:[%s7 + $0x50] sm:$0xff] %v1091
  %1109 = vst [vmem:[%s7 + $0x58] sm:$0xff] %v1092
  %1110 = vst [vmem:[%s7 + $0x60] sm:$0xff] %v1093
  %1111 = vst [vmem:[%s7 + $0x68] sm:$0xff] %v1094
  %1112 = vst [vmem:[%s7 + $0x70] sm:$0xff] %v1095
  %1113 = vst [vmem:[%s7 + $0x78] sm:$0xff] %v1096
  %1114 = vst [vmem:[%s7 + $0x80] sm:$0xff] %v1097
  // Predicated region
  $region30: #{vit_encoder_forward.15} parent=0 // pred_check
    _
  $region31: #{vit_encoder_forward.15} parent=0 // pred_check_branch
    %1116 = sbr.rel (0) target = $region33
  $region32: #{vit_encoder_forward.15} parent=0 // pred_region
    _
  $region33: #{vit_encoder_forward.15} parent=0 // pred_fallthru
    _
  // Predicated region
  $region34: #{vit_encoder_forward.15} parent=0 // pred_check
    _
  $region35: #{vit_encoder_forward.15} parent=0 // pred_check_branch
    %1118 = sbr.rel (0) target = $region37
  $region36: #{vit_encoder_forward.15} parent=0 // pred_region
    _
  $region37: #{vit_encoder_forward.15} parent=0 // pred_fallthru
    _

// kernel: vit_encoder_forward.22
$region0: #{vit_encoder_forward.22}
  #allocation0 [shape = 'u32[]', space=smem, size = 0x4, offset = 0x4, fixed_abs, tag = 'smem constant byte address 0x4 - core index']
  #allocation1 [shape = 'u32[144,128]{1,0:T(1,128)}', space=vmem, size = 0x12000, scoped, tag = 'internal scratch']
  %s0 = inlined_call_operand.vmem [shape: f32[2,4,16], index: 0, kind: input, shape index: {}]
  %s1 = inlined_call_operand.vmem [shape: f32[4,16], index: 1, kind: input, shape index: {}]
  %s2 = inlined_call_operand.vmem [shape: f32[2,16], index: 2, kind: output, shape index: {}]
  %s3 = sld [smem:[#allocation0]]
  $region18: #{vit_encoder_forward.22} parent=0
    _
  %s5 = ssub.s32 1, %s3
  %s6 = scalar_select 0, %s5, %s3
  // Predicated region
  $region2: #{vit_encoder_forward.22} parent=0 // pred_check
    _
  $region3: #{vit_encoder_forward.22} parent=0 // pred_check_branch
    %8 = sbr.rel (0) target = $region5
  $region4: #{vit_encoder_forward.22} parent=0 // pred_region
    _
  $region5: #{vit_encoder_forward.22} parent=0 // pred_fallthru
    _
  // Predicated region
  $region6: #{vit_encoder_forward.22} parent=0 // pred_check
    _
  $region7: #{vit_encoder_forward.22} parent=0 // pred_check_branch
    %10 = sbr.rel (0) target = $region9
  $region8: #{vit_encoder_forward.22} parent=0 // pred_region
    _
  $region9: #{vit_encoder_forward.22} parent=0 // pred_fallthru
    _
  %v11 = vld [vmem:[%s0] sm:$0xf]
  %v12 = vld [vmem:[%s0 + $0x4] sm:$0xf]
  %v13 = vld [vmem:[%s1] sm:$0xf]
  %v14 = vmul.f32 %v11, %v13
  %v15 = vmul.f32 %v12, %v13
  %vm16 = vcmask 125952
  %v17 = vsel %vm16, %v14, 0.0
  %18 = vadd.xlane.f32.xlu0 %v17
  %v19 = vpop.xlane.xlu0 %18
  %v20 = vsel %vm16, %v15, 0.0
  %21 = vadd.xlane.f32.xlu0 %v20
  %v22 = vpop.xlane.xlu0 %21
  %v23 = vmul.f32 %v19, %v11
  %v24 = vmul.f32 %v22, %v12
  %v25 = vsel %vm16, %v23, 0.0
  %v26 = vrot.slane %v25, 4
  %v27 = vadd.f32 %v25, %v26
  %v28 = vrot.slane %v27, 2
  %v29 = vadd.f32 %v27, %v28
  %v30 = vrot.slane %v29, 1
  %v31 = vadd.f32 %v29, %v30
  %v32 = vsel %vm16, %v24, 0.0
  %v33 = vrot.slane %v32, 4
  %v34 = vadd.f32 %v32, %v33
  %v35 = vrot.slane %v34, 2
  %v36 = vadd.f32 %v34, %v35
  %v37 = vrot.slane %v36, 1
  %v38 = vadd.f32 %v36, %v37
  %vm41 = vcmask 1041409
  %v42 = vsel %vm41, %v38, %v31
  %vm44 = vcmask 123904
  %45 = vst.msk [vmem:[%s2] sm:$0x3] %vm44, %v42
  // Predicated region
  $region10: #{vit_encoder_forward.22} parent=0 // pred_check
    _
  $region11: #{vit_encoder_forward.22} parent=0 // pred_check_branch
    %47 = sbr.rel (0) target = $region13
  $region12: #{vit_encoder_forward.22} parent=0 // pred_region
    _
  $region13: #{vit_encoder_forward.22} parent=0 // pred_fallthru
    _
  // Predicated region
  $region14: #{vit_encoder_forward.22} parent=0 // pred_check
    _
  $region15: #{vit_encoder_forward.22} parent=0 // pred_check_branch
    %49 = sbr.rel (0) target = $region17
  $region16: #{vit_encoder_forward.22} parent=0 // pred_region
    _
  $region17: #{vit_encoder_forward.22} parent=0 // pred_fallthru
    _

// kernel: vit_encoder_forward.21
$region0: #{vit_encoder_forward.21}
  #allocation0 [shape = 'u32[]', space=smem, size = 0x4, offset = 0x4, fixed_abs, tag = 'smem constant byte address 0x4 - core index']
  #allocation1 [shape = 'u32[144,128]{1,0:T(1,128)}', space=vmem, size = 0x12000, scoped, tag = 'internal scratch']
  #allocation2 [shape = 'f32[8,16]{1,0:T(8,128)}', space=vmem, size = 0x1000, scoped, tag = 'scratch operand']
  %s0 = inlined_call_operand.vmem [shape: bf16[8,16], index: 0, kind: input, shape index: {}]
  %s1 = inlined_call_operand.vmem [shape: bf16[16,16], index: 1, kind: input, shape index: {}]
  %s2 = inlined_call_operand.vmem [shape: f32[1,16], index: 2, kind: input, shape index: {}]
  %s3 = inlined_call_operand.vmem [shape: f32[8,16], index: 3, kind: output, shape index: {}]
  %s4 = sld [smem:[#allocation0]]
  $region30: #{vit_encoder_forward.21} parent=0
    _
  %s6 = ssub.s32 1, %s4
  %s7 = scalar_select 0, %s6, %s4
  // Predicated region
  $region2: #{vit_encoder_forward.21} parent=0 // pred_check
    _
  $region3: #{vit_encoder_forward.21} parent=0 // pred_check_branch
    %9 = sbr.rel (0) target = $region5
  $region4: #{vit_encoder_forward.21} parent=0 // pred_region
    _
  $region5: #{vit_encoder_forward.21} parent=0 // pred_fallthru
    _
  // Predicated region
  $region6: #{vit_encoder_forward.21} parent=0 // pred_check
    _
  $region7: #{vit_encoder_forward.21} parent=0 // pred_check_branch
    %11 = sbr.rel (0) target = $region9
  $region8: #{vit_encoder_forward.21} parent=0 // pred_region
    _
  $region9: #{vit_encoder_forward.21} parent=0 // pred_fallthru
    _
  // Predicated region
  $region10: #{vit_encoder_forward.21} parent=0 // pred_check
    _
  $region11: #{vit_encoder_forward.21} parent=0 // pred_check_branch
    %13 = sbr.rel (0) target = $region13
  $region12: #{vit_encoder_forward.21} parent=0 // pred_region
    _
  $region13: #{vit_encoder_forward.21} parent=0 // pred_fallthru
    _
  %p15 = scmp.eq.s32.totalorder 0, 0
  // Predicated region
  $region14: #{vit_encoder_forward.21} parent=0 // pred_check
    %p16 = pneg %p15
  $region15: #{vit_encoder_forward.21} parent=0 // pred_check_branch
    %18 = sbr.rel (%p16) target = $region17
  $region16: #{vit_encoder_forward.21} parent=0 // pred_region
    %vm19 = vcmask 130048
    %20 = vst.msk [vmem:[#allocation2] sm:$0xff] %vm19, 0.0
  $region17: #{vit_encoder_forward.21} parent=0 // pred_fallthru
    _
  %v21 = vld [vmem:[#allocation2] sm:$0xff]
  %v22 = vld [vmem:[%s0] sm:$0xf]
  %v23 = vld [vmem:[%s1] sm:$0xf]
  %v24 = vld [vmem:[%s1 + $0x4] sm:$0xf]
  %v27 = vunpack.c.l.b16 %v23
  %v28 = vunpack.c.l.b16 %v24
  %v29 = vpack.c.b16 %v28, %v27
  %vm31 = vcmask 130048
  %v33 = vsel %vm31, %v22, 0
  %35 = vmatprep.subr.bf16.mxu0 0
  %36 = vmatpush1.bf16.msra.mxu0 0
  %37 = vmatprep.subr.bf16.mxu0 0
  %38 = vmatpush1.bf16.msra.mxu0 0
  %39 = vmatprep.subr.bf16.mxu0 0
  %40 = vmatpush1.bf16.msra.mxu0 0
  %41 = vmatprep.subr.bf16.mxu0 0
  %42 = vmatpush1.bf16.msra.mxu0 0
  %43 = vmatprep.subr.bf16.mxu0 0
  %44 = vmatpush1.bf16.msra.mxu0 0
  %45 = vmatprep.subr.bf16.mxu0 0
  %46 = vmatpush1.bf16.msra.mxu0 0
  %47 = vmatprep.subr.bf16.mxu0 0
  %48 = vmatpush1.bf16.msra.mxu0 0
  %49 = vmatprep.subr.bf16.mxu0 0
  %50 = vmatpush1.bf16.msra.mxu0 %v29
  %51 = vmatprep.subr.bf16.mxu0 0
  %52 = vmatpush2.bf16.msra.mxu0 0
  %53 = vmatprep.subr.bf16.mxu0 0
  %54 = vmatpush2.bf16.msra.mxu0 0
  %55 = vmatprep.subr.bf16.mxu0 0
  %56 = vmatpush2.bf16.msra.mxu0 0
  %57 = vmatprep.subr.bf16.mxu0 0
  %58 = vmatpush2.bf16.msra.mxu0 0
  %59 = vmatprep.subr.bf16.mxu0 0
  %60 = vmatpush2.bf16.msra.mxu0 0
  %61 = vmatprep.subr.bf16.mxu0 0
  %62 = vmatpush2.bf16.msra.mxu0 0
  %63 = vmatprep.subr.bf16.mxu0 0
  %64 = vmatpush2.bf16.msra.mxu0 0
  %65 = vmatprep.subr.bf16.mxu0 0
  %66 = vmatpush2.bf16.msra.mxu0 0
  %67 = vmatprep.mubr.bf16.mxu0 0
  %68 = vmatmul.mubr.bf16.gmra.mxu0 %v33
  %v69 = vpop.f32.mrf.mxu0
  %v70 = vadd.f32 0.0, %v69
  %v71 = vpop.f32.mrf.mxu0
  %v72 = vpop.f32.mrf.mxu0
  %v73 = vpop.f32.mrf.mxu0
  %74 = vdwg.mxu0
  %v75 = vadd.f32 %v21, %v70
  %76 = vst.msk [vmem:[#allocation2] sm:$0xff] %vm31, %v75
  // Predicated region
  $region18: #{vit_encoder_forward.21} parent=0 // pred_check
    %p77 = pneg %p15
  $region19: #{vit_encoder_forward.21} parent=0 // pred_check_branch
    %79 = sbr.rel (%p77) target = $region21
  $region20: #{vit_encoder_forward.21} parent=0 // pred_region
    %v80 = vld [vmem:[#allocation2] sm:$0xff]
    %v81 = vld [vmem:[%s2] sm:$0x1]
    %v83 = vlaneseq
    %v84 = vshrl.u32 %v83, 7
    %v85 = vsub.s32 0, %v84
    %v86 = vrot.slane %v81, %v85
    %v88 = vadd.f32 %v80, %v86
    %89 = vst.msk [vmem:[%s3] sm:$0xff] %vm31, %v88
  $region21: #{vit_encoder_forward.21} parent=0 // pred_fallthru
    _
  // Predicated region
  $region22: #{vit_encoder_forward.21} parent=0 // pred_check
    _
  $region23: #{vit_encoder_forward.21} parent=0 // pred_check_branch
    %91 = sbr.rel (0) target = $region25
  $region24: #{vit_encoder_forward.21} parent=0 // pred_region
    _
  $region25: #{vit_encoder_forward.21} parent=0 // pred_fallthru
    _
  // Predicated region
  $region26: #{vit_encoder_forward.21} parent=0 // pred_check
    _
  $region27: #{vit_encoder_forward.21} parent=0 // pred_check_branch
    %93 = sbr.rel (0) target = $region29
  $region28: #{vit_encoder_forward.21} parent=0 // pred_region
    _
  $region29: #{vit_encoder_forward.21} parent=0 // pred_fallthru
    _

// kernel: vit_encoder_forward.20
$region0: #{vit_encoder_forward.20}
  #allocation0 [shape = 'u32[]', space=smem, size = 0x4, offset = 0x4, fixed_abs, tag = 'smem constant byte address 0x4 - core index']
  #allocation1 [shape = 'u32[144,128]{1,0:T(1,128)}', space=vmem, size = 0x12000, scoped, tag = 'internal scratch']
  #allocation2 [shape = 'f32[8,16]{1,0:T(8,128)}', space=vmem, size = 0x1000, scoped, tag = 'scratch operand']
  %s0 = inlined_call_operand.vmem [shape: bf16[8,132], index: 0, kind: input, shape index: {}]
  %s1 = inlined_call_operand.vmem [shape: bf16[132,16], index: 1, kind: input, shape index: {}]
  %s2 = inlined_call_operand.vmem [shape: f32[1,16], index: 2, kind: input, shape index: {}]
  %s3 = inlined_call_operand.vmem [shape: f32[8,16], index: 3, kind: output, shape index: {}]
  %s4 = sld [smem:[#allocation0]]
  $region30: #{vit_encoder_forward.20} parent=0
    _
  %s6 = ssub.s32 1, %s4
  %s7 = scalar_select 0, %s6, %s4
  // Predicated region
  $region2: #{vit_encoder_forward.20} parent=0 // pred_check
    _
  $region3: #{vit_encoder_forward.20} parent=0 // pred_check_branch
    %9 = sbr.rel (0) target = $region5
  $region4: #{vit_encoder_forward.20} parent=0 // pred_region
    _
  $region5: #{vit_encoder_forward.20} parent=0 // pred_fallthru
    _
  // Predicated region
  $region6: #{vit_encoder_forward.20} parent=0 // pred_check
    _
  $region7: #{vit_encoder_forward.20} parent=0 // pred_check_branch
    %11 = sbr.rel (0) target = $region9
  $region8: #{vit_encoder_forward.20} parent=0 // pred_region
    _
  $region9: #{vit_encoder_forward.20} parent=0 // pred_fallthru
    _
  // Predicated region
  $region10: #{vit_encoder_forward.20} parent=0 // pred_check
    _
  $region11: #{vit_encoder_forward.20} parent=0 // pred_check_branch
    %13 = sbr.rel (0) target = $region13
  $region12: #{vit_encoder_forward.20} parent=0 // pred_region
    _
  $region13: #{vit_encoder_forward.20} parent=0 // pred_fallthru
    _
  %p15 = scmp.eq.s32.totalorder 0, 0
  // Predicated region
  $region14: #{vit_encoder_forward.20} parent=0 // pred_check
    %p16 = pneg %p15
  $region15: #{vit_encoder_forward.20} parent=0 // pred_check_branch
    %18 = sbr.rel (%p16) target = $region17
  $region16: #{vit_encoder_forward.20} parent=0 // pred_region
    %vm19 = vcmask 130048
    %20 = vst.msk [vmem:[#allocation2] sm:$0xff] %vm19, 0.0
  $region17: #{vit_encoder_forward.20} parent=0 // pred_fallthru
    _
  %v21 = vld [vmem:[#allocation2] sm:$0xff]
  %v22 = vld [vmem:[%s0] sm:$0xff]
  %v23 = vld [vmem:[%s1] sm:$0xf]
  %v24 = vld [vmem:[%s1 + $0x4] sm:$0xf]
  %v25 = vld [vmem:[%s1 + $0x8] sm:$0xf]
  %v26 = vld [vmem:[%s1 + $0xc] sm:$0xf]
  %v27 = vld [vmem:[%s1 + $0x10] sm:$0xf]
  %v28 = vld [vmem:[%s1 + $0x14] sm:$0xf]
  %v29 = vld [vmem:[%s1 + $0x18] sm:$0xf]
  %v30 = vld [vmem:[%s1 + $0x1c] sm:$0xf]
  %v31 = vld [vmem:[%s1 + $0x20] sm:$0xf]
  %v32 = vld [vmem:[%s1 + $0x24] sm:$0xf]
  %v33 = vld [vmem:[%s1 + $0x28] sm:$0xf]
  %v34 = vld [vmem:[%s1 + $0x2c] sm:$0xf]
  %v35 = vld [vmem:[%s1 + $0x30] sm:$0xf]
  %v36 = vld [vmem:[%s1 + $0x34] sm:$0xf]
  %v37 = vld [vmem:[%s1 + $0x38] sm:$0xf]
  %v38 = vld [vmem:[%s1 + $0x3c] sm:$0xf]
  %v39 = vld [vmem:[%s1 + $0x40] sm:$0x3]
  %v41 = vunpack.c.l.b16 %v22
  %v42 = vunpack.c.h.b16 %v22
  %v43 = vpack.c.b16 %v41, %v41
  %v44 = vpack.c.b16 %v42, %v42
  %v63 = vunpack.c.l.b16 %v23
  %v64 = vunpack.c.l.b16 %v24
  %v65 = vunpack.c.l.b16 %v25
  %v66 = vunpack.c.l.b16 %v26
  %v67 = vunpack.c.l.b16 %v27
  %v68 = vunpack.c.l.b16 %v28
  %v69 = vunpack.c.l.b16 %v29
  %v70 = vunpack.c.l.b16 %v30
  %v71 = vunpack.c.l.b16 %v31
  %v72 = vunpack.c.l.b16 %v32
  %v73 = vunpack.c.l.b16 %v33
  %v74 = vunpack.c.l.b16 %v34
  %v75 = vunpack.c.l.b16 %v35
  %v76 = vunpack.c.l.b16 %v36
  %v77 = vunpack.c.l.b16 %v37
  %v78 = vunpack.c.l.b16 %v38
  %v79 = vunpack.c.l.b16 %v39
  %v80 = vpack.c.b16 %v64, %v63
  %v81 = vpack.c.b16 %v66, %v65
  %v82 = vpack.c.b16 %v68, %v67
  %v83 = vpack.c.b16 %v70, %v69
  %v84 = vpack.c.b16 %v72, %v71
  %v85 = vpack.c.b16 %v74, %v73
  %v86 = vpack.c.b16 %v76, %v75
  %v87 = vpack.c.b16 %v78, %v77
  %v88 = vpack.c.b16 %v79, %v79
  %vm97 = vcmask 31744
  %v99 = vsel %vm97, %v44, 0
  %vm101 = vcmask 1041408
  %v103 = vsel %vm101, %v88, 0
  %105 = vmatprep.subr.bf16.mxu0 0
  %106 = vmatpush1.bf16.msra.mxu0 %v87
  %107 = vmatprep.subr.bf16.mxu0 0
  %108 = vmatpush1.bf16.msra.mxu0 %v86
  %109 = vmatprep.subr.bf16.mxu0 0
  %110 = vmatpush1.bf16.msra.mxu0 %v85
  %111 = vmatprep.subr.bf16.mxu0 0
  %112 = vmatpush1.bf16.msra.mxu0 %v84
  %113 = vmatprep.subr.bf16.mxu0 0
  %114 = vmatpush1.bf16.msra.mxu0 %v83
  %115 = vmatprep.subr.bf16.mxu0 0
  %116 = vmatpush1.bf16.msra.mxu0 %v82
  %117 = vmatprep.subr.bf16.mxu0 0
  %118 = vmatpush1.bf16.msra.mxu0 %v81
  %119 = vmatprep.subr.bf16.mxu0 0
  %120 = vmatpush1.bf16.msra.mxu0 %v80
  %121 = vmatprep.subr.bf16.mxu0 0
  %122 = vmatpush2.bf16.msra.mxu0 0
  %123 = vmatprep.subr.bf16.mxu0 0
  %124 = vmatpush2.bf16.msra.mxu0 0
  %125 = vmatprep.subr.bf16.mxu0 0
  %126 = vmatpush2.bf16.msra.mxu0 0
  %127 = vmatprep.subr.bf16.mxu0 0
  %128 = vmatpush2.bf16.msra.mxu0 0
  %129 = vmatprep.subr.bf16.mxu0 0
  %130 = vmatpush2.bf16.msra.mxu0 0
  %131 = vmatprep.subr.bf16.mxu0 0
  %132 = vmatpush2.bf16.msra.mxu0 0
  %133 = vmatprep.subr.bf16.mxu0 0
  %134 = vmatpush2.bf16.msra.mxu0 0
  %135 = vmatprep.subr.bf16.mxu0 0
  %136 = vmatpush2.bf16.msra.mxu0 %v103
  %137 = vmatprep.mubr.bf16.mxu0 %v99
  %138 = vmatmul.mubr.bf16.gmra.mxu0 %v43
  %v139 = vpop.f32.mrf.mxu0
  %v140 = vadd.f32 0.0, %v139
  %v141 = vpop.f32.mrf.mxu0
  %v142 = vpop.f32.mrf.mxu0
  %v143 = vpop.f32.mrf.mxu0
  %144 = vdwg.mxu0
  %v145 = vadd.f32 %v21, %v140
  %vm146 = vcmask 130048
  %147 = vst.msk [vmem:[#allocation2] sm:$0xff] %vm146, %v145
  // Predicated region
  $region18: #{vit_encoder_forward.20} parent=0 // pred_check
    %p148 = pneg %p15
  $region19: #{vit_encoder_forward.20} parent=0 // pred_check_branch
    %150 = sbr.rel (%p148) target = $region21
  $region20: #{vit_encoder_forward.20} parent=0 // pred_region
    %v151 = vld [vmem:[#allocation2] sm:$0xff]
    %v152 = vld [vmem:[%s2] sm:$0x1]
    %v154 = vlaneseq
    %v155 = vshrl.u32 %v154, 7
    %v156 = vsub.s32 0, %v155
    %v157 = vrot.slane %v152, %v156
    %v159 = vadd.f32 %v151, %v157
    %v160 = vmax.f32 %v159, 0.0
    %161 = vst.msk [vmem:[%s3] sm:$0xff] %vm146, %v160
  $region21: #{vit_encoder_forward.20} parent=0 // pred_fallthru
    _
  // Predicated region
  $region22: #{vit_encoder_forward.20} parent=0 // pred_check
    _
  $region23: #{vit_encoder_forward.20} parent=0 // pred_check_branch
    %163 = sbr.rel (0) target = $region25
  $region24: #{vit_encoder_forward.20} parent=0 // pred_region
    _
  $region25: #{vit_encoder_forward.20} parent=0 // pred_fallthru
    _
  // Predicated region
  $region26: #{vit_encoder_forward.20} parent=0 // pred_check
    _
  $region27: #{vit_encoder_forward.20} parent=0 // pred_check_branch
    %165 = sbr.rel (0) target = $region29
  $region28: #{vit_encoder_forward.20} parent=0 // pred_region
    _
  $region29: #{vit_encoder_forward.20} parent=0 // pred_fallthru
    _

// kernel: vit_encoder_forward.23
$region0: #{vit_encoder_forward.23}
  #allocation0 [shape = 'u32[]', space=smem, size = 0x4, offset = 0x4, fixed_abs, tag = 'smem constant byte address 0x4 - core index']
  #allocation1 [shape = 'u32[144,128]{1,0:T(1,128)}', space=vmem, size = 0x12000, scoped, tag = 'internal scratch']
  #allocation2 [shape = 'f32[2,16]{1,0:T(2,128)}', space=vmem, size = 0x400, scoped, tag = 'scratch operand']
  %s0 = inlined_call_operand.vmem [shape: bf16[2,34], index: 0, kind: input, shape index: {}]
  %s1 = inlined_call_operand.vmem [shape: bf16[34,16], index: 1, kind: input, shape index: {}]
  %s2 = inlined_call_operand.vmem [shape: f32[1,16], index: 2, kind: input, shape index: {}]
  %s3 = inlined_call_operand.hbm [shape: f32[2,16], index: 3, kind: output, shape index: {}]
  %s4 = sld [smem:[#allocation0]]
  $region30: #{vit_encoder_forward.23} parent=0
    _
  %s6 = ssub.s32 1, %s4
  %s7 = scalar_select 0, %s6, %s4
  $region1: #{vit_encoder_forward.23} parent=0
    #allocation3 [shape = 'u8[1024]{0}', space=vmem, size = 0x400, scoped, tag = 'output window, operand 0, single buffered']
    #allocation4 [shape = 's32[1]{0}', space=sflag, size = 0x4, scoped, tag = 'scoped memory for vit_encoder_forward.23']
    %8 = vsyncpa [#allocation4], 0
    // Predicated region
    $region2: #{vit_encoder_forward.23} parent=1 // pred_check
      _
    $region3: #{vit_encoder_forward.23} parent=1 // pred_check_branch
      %10 = sbr.rel (0) target = $region5
    $region4: #{vit_encoder_forward.23} parent=1 // pred_region
      _
    $region5: #{vit_encoder_forward.23} parent=1 // pred_fallthru
      _
    // Predicated region
    $region6: #{vit_encoder_forward.23} parent=1 // pred_check
      _
    $region7: #{vit_encoder_forward.23} parent=1 // pred_check_branch
      %12 = sbr.rel (0) target = $region9
    $region8: #{vit_encoder_forward.23} parent=1 // pred_region
      _
    $region9: #{vit_encoder_forward.23} parent=1 // pred_fallthru
      _
    // Predicated region
    $region10: #{vit_encoder_forward.23} parent=1 // pred_check
      _
    $region11: #{vit_encoder_forward.23} parent=1 // pred_check_branch
      %14 = sbr.rel (0) target = $region13
    $region12: #{vit_encoder_forward.23} parent=1 // pred_region
      _
    $region13: #{vit_encoder_forward.23} parent=1 // pred_fallthru
      _
    %p16 = scmp.eq.s32.totalorder 0, 0
    // Predicated region
    $region14: #{vit_encoder_forward.23} parent=1 // pred_check
      %p17 = pneg %p16
    $region15: #{vit_encoder_forward.23} parent=1 // pred_check_branch
      %19 = sbr.rel (%p17) target = $region17
    $region16: #{vit_encoder_forward.23} parent=1 // pred_region
      %vm20 = vcmask 123904
      %21 = vst.msk [vmem:[#allocation2] sm:$0x3] %vm20, 0.0
    $region17: #{vit_encoder_forward.23} parent=1 // pred_fallthru
      _
    %v22 = vld [vmem:[#allocation2] sm:$0x3]
    %v23 = vld [vmem:[%s0] sm:$0x1]
    %v24 = vld [vmem:[%s1] sm:$0xf]
    %v25 = vld [vmem:[%s1 + $0x4] sm:$0xf]
    %v26 = vld [vmem:[%s1 + $0x8] sm:$0xf]
    %v27 = vld [vmem:[%s1 + $0xc] sm:$0xf]
    %v28 = vld [vmem:[%s1 + $0x10] sm:$0x1]
    %v34 = vunpack.c.l.b16 %v24
    %v35 = vunpack.c.l.b16 %v25
    %v36 = vunpack.c.l.b16 %v26
    %v37 = vunpack.c.l.b16 %v27
    %v38 = vunpack.c.l.b16 %v28
    %v39 = vpack.c.b16 %v35, %v34
    %v40 = vpack.c.b16 %v37, %v36
    %v41 = vpack.c.b16 %v38, %v38
    %vm44 = vcmask 277504
    %v46 = vsel %vm44, %v23, 0
    %vm48 = vcmask 1040384
    %v50 = vsel %vm48, %v41, 0
    %52 = vmatprep.subr.bf16.mxu0 0
    %53 = vmatpush1.bf16.msra.mxu0 0
    %54 = vmatprep.subr.bf16.mxu0 0
    %55 = vmatpush1.bf16.msra.mxu0 0
    %56 = vmatprep.subr.bf16.mxu0 0
    %57 = vmatpush1.bf16.msra.mxu0 0
    %58 = vmatprep.subr.bf16.mxu0 0
    %59 = vmatpush1.bf16.msra.mxu0 0
    %60 = vmatprep.subr.bf16.mxu0 0
    %61 = vmatpush1.bf16.msra.mxu0 0
    %62 = vmatprep.subr.bf16.mxu0 0
    %63 = vmatpush1.bf16.msra.mxu0 %v50
    %64 = vmatprep.subr.bf16.mxu0 0
    %65 = vmatpush1.bf16.msra.mxu0 %v40
    %66 = vmatprep.subr.bf16.mxu0 0
    %67 = vmatpush1.bf16.msra.mxu0 %v39
    %68 = vmatprep.subr.bf16.mxu0 0
    %69 = vmatpush2.bf16.msra.mxu0 0
    %70 = vmatprep.subr.bf16.mxu0 0
    %71 = vmatpush2.bf16.msra.mxu0 0
    %72 = vmatprep.subr.bf16.mxu0 0
    %73 = vmatpush2.bf16.msra.mxu0 0
    %74 = vmatprep.subr.bf16.mxu0 0
    %75 = vmatpush2.bf16.msra.mxu0 0
    %76 = vmatprep.subr.bf16.mxu0 0
    %77 = vmatpush2.bf16.msra.mxu0 0
    %78 = vmatprep.subr.bf16.mxu0 0
    %79 = vmatpush2.bf16.msra.mxu0 0
    %80 = vmatprep.subr.bf16.mxu0 0
    %81 = vmatpush2.bf16.msra.mxu0 0
    %82 = vmatprep.subr.bf16.mxu0 0
    %83 = vmatpush2.bf16.msra.mxu0 0
    %84 = vmatprep.mubr.bf16.mxu0 0
    %85 = vmatmul.mubr.bf16.gmra.mxu0 %v46
    %v86 = vpop.f32.mrf.mxu0
    %v87 = vadd.f32 0.0, %v86
    %v88 = vpop.f32.mrf.mxu0
    %v89 = vpop.f32.mrf.mxu0
    %v90 = vpop.f32.mrf.mxu0
    %91 = vdwg.mxu0
    %v92 = vadd.f32 %v22, %v87
    %vm93 = vcmask 123904
    %94 = vst.msk [vmem:[#allocation2] sm:$0x3] %vm93, %v92
    // Predicated region
    $region18: #{vit_encoder_forward.23} parent=1 // pred_check
      %p95 = pneg %p16
    $region19: #{vit_encoder_forward.23} parent=1 // pred_check_branch
      %97 = sbr.rel (%p95) target = $region21
    $region20: #{vit_encoder_forward.23} parent=1 // pred_region
      %v98 = vld [vmem:[#allocation2] sm:$0x3]
      %v99 = vld [vmem:[%s2] sm:$0x1]
      %v101 = vlaneseq
      %v102 = vshrl.u32 %v101, 7
      %v103 = vsub.s32 0, %v102
      %v104 = vrot.slane %v99, %v103
      %v106 = vadd.f32 %v98, %v104
      %107 = vst.msk [vmem:[#allocation3] sm:$0x3] %vm93, %v106
    $region21: #{vit_encoder_forward.23} parent=1 // pred_fallthru
      _
    // Predicated region
    $region22: #{vit_encoder_forward.23} parent=1 // pred_check
      _
    $region23: #{vit_encoder_forward.23} parent=1 // pred_check_branch
      %109 = sbr.rel (0) target = $region25
    $region24: #{vit_encoder_forward.23} parent=1 // pred_region
      %s111 = ssub.s32 32, 32
      %112 = vsyncadd [#allocation4], %s111
      %s114 = sshll.u32 [#allocation3], 4
      %s115 = int_to_ptr.vmem [resolvable:$true] %s114
      %117 = dma.vmem_to_hbm [thread:$0]  %s115, 32, %s3, [#allocation4]
    $region25: #{vit_encoder_forward.23} parent=1 // pred_fallthru
      _
    // Predicated region
    $region26: #{vit_encoder_forward.23} parent=1 // pred_check
      _
    $region27: #{vit_encoder_forward.23} parent=1 // pred_check_branch
      %119 = sbr.rel (0) target = $region29
    $region28: #{vit_encoder_forward.23} parent=1 // pred_region
      %120 = dma.done [#allocation4], 32
    $region29: #{vit_encoder_forward.23} parent=1 // pred_fallthru
      _
    %121 = vsyncpa [#allocation4], 1

</llo_original>
